<compile_context>
chip_gen: v7x
topology: tpu7x:2x2x1
jax: 0.10.0
libtpu: 0.0.40
codegen_flags: <defaults>
</compile_context>

<pallas_src>
import jax
import jax.numpy as jnp
from jax import lax
from jax.experimental import pallas as pl
from jax.experimental.pallas import tpu as pltpu

HP = 128  # each GRU gate padded to one full 128-lane block


def _bigru_kernel(emb_ref, sl_ref, wih_ref, whh_f_ref, whh_b_ref,
                  bin_ref, bhnf_ref, bhnb_ref,
                  out_ref, hid_ref, gi_ref):
    T, B, E = emb_ref.shape
    Hp = whh_f_ref.shape[0]          # padded hidden width per gate (= 128)
    G = 3 * Hp                       # padded gate-block width per direction

    # ---- Hoisted input transform: ONE MXU matmul covers every timestep and both
    # directions; input bias + r/z recurrent bias are pre-folded into bin_ref.
    emb2d = emb_ref[...].reshape(T * B, E)
    gi = jnp.dot(emb2d, wih_ref[...], preferred_element_type=jnp.float32) + bin_ref[...]
    gi_ref[...] = gi.reshape(T, B, 2 * G)

    whh_f = whh_f_ref[...]
    whh_b = whh_b_ref[...]
    # Pre-broadcast the n-gate recurrent biases once (outside the unrolled loop).
    bhn_f = jnp.broadcast_to(bhnf_ref[...], (B, Hp))
    bhn_b = jnp.broadcast_to(bhnb_ref[...], (B, Hp))
    sl = sl_ref[...]                 # [B, 1] int32 sequence lengths

    # Both directions accumulate into out_ref, so zero it first.
    out_ref[...] = jnp.zeros_like(out_ref)

    def gru_step(gi_t, h, whh, bhn):
        # PyTorch GRU cell (gate order r, z, n). All gate slices are 128-lane aligned.
        gh = jnp.dot(h, whh, preferred_element_type=jnp.float32)        # [B, 3*Hp]
        r = jax.nn.sigmoid(gi_t[:, 0:Hp] + gh[:, 0:Hp])
        z = jax.nn.sigmoid(gi_t[:, Hp:2 * Hp] + gh[:, Hp:2 * Hp])
        n = jnp.tanh(gi_t[:, 2 * Hp:3 * Hp] + r * (gh[:, 2 * Hp:3 * Hp] + bhn))
        return (1.0 - z) * n + z * h

    # ---- Fused, fully-unrolled time loop: iteration i runs the forward step at
    # t = i and the backward step at t = T-1-i; hidden states live in registers.
    def step(i, carry):
        hf, hb = carry
        tf = i
        tb = T - 1 - i

        gi_f = gi_ref[tf]                                    # [B, 2*G]
        h_new_f = gru_step(gi_f[:, 0:G], hf, whh_f, bhn_f)
        m_f = tf < sl                                        # [B, 1] validity mask
        hf = jnp.where(m_f, h_new_f, hf)                     # freeze hidden on pad
        out_ref[tf] = out_ref[tf] + jnp.where(m_f, h_new_f, 0.0)

        gi_b = gi_ref[tb]
        h_new_b = gru_step(gi_b[:, G:2 * G], hb, whh_b, bhn_b)
        m_b = tb < sl
        hb = jnp.where(m_b, h_new_b, hb)
        out_ref[tb] = out_ref[tb] + jnp.where(m_b, h_new_b, 0.0)
        return hf, hb

    h0 = jnp.zeros((B, Hp), jnp.float32)
    hf, hb = lax.fori_loop(0, T, step, (h0, h0), unroll=True)
    hid_ref[0] = hf
    hid_ref[1] = hb


def _pad_gates(w, H, Hp, rows_to=None):
    """Re-lay out [R, 3H] (gate order r,z,n) as [rows_to or R, 3*Hp], gate g in
    columns [g*Hp, g*Hp + H); everything else zero."""
    R = w.shape[0]
    Rp = R if rows_to is None else rows_to
    out = jnp.zeros((Rp, 3 * Hp), w.dtype)
    for g in range(3):
        out = out.at[:R, g * Hp:g * Hp + H].set(w[:, g * H:(g + 1) * H])
    return out


def _pad_lanes(b, H, Hp):
    """[1, H] -> [1, Hp] zero-padded."""
    return jnp.zeros((1, Hp), b.dtype).at[:, :H].set(b)


def encoder_forward(tokens, seq_lens, params):
    """tokens: [T, B] int32, seq_lens: [B] int32 -> (outputs [T,B,H], hidden [2,B,H])."""
    T, B = tokens.shape
    H = params['whh_f'].shape[0]

    # Embedding gather stays in XLA (data-dependent gather; no clean BlockSpec form).
    emb = jnp.take(params['embedding'], tokens, axis=0)            # [T, B, E]
    sl = seq_lens.astype(jnp.int32).reshape(B, 1)                  # [B, 1]

    # --- 128-lane-aligned gate layout + bias folding (cheap, once per call).
    wih_f = _pad_gates(params['wih_f'], H, HP)                     # [E, 3*HP]
    wih_b = _pad_gates(params['wih_b'], H, HP)
    whh_f = _pad_gates(params['whh_f'], H, HP, rows_to=HP)         # [HP, 3*HP]
    whh_b = _pad_gates(params['whh_b'], H, HP, rows_to=HP)
    # Fold input bias + r/z recurrent bias into the hoisted matmul's bias; keep the
    # n-gate recurrent bias separate (it sits inside the r * (.) term).
    bhh_f_rz = params['bhh_f'].at[:, 2 * H:].set(0.0)
    bhh_b_rz = params['bhh_b'].at[:, 2 * H:].set(0.0)
    bin_f = _pad_gates(params['bih_f'] + bhh_f_rz, H, HP)          # [1, 3*HP]
    bin_b = _pad_gates(params['bih_b'] + bhh_b_rz, H, HP)
    bhn_f = _pad_lanes(params['bhh_f'][:, 2 * H:], H, HP)          # [1, HP]
    bhn_b = _pad_lanes(params['bhh_b'][:, 2 * H:], H, HP)

    wih_cat = jnp.concatenate([wih_f, wih_b], axis=1)              # [E, 6*HP]
    bin_cat = jnp.concatenate([bin_f, bin_b], axis=1)              # [1, 6*HP]

    vmem = pl.BlockSpec(memory_space=pltpu.MemorySpace.VMEM)
    # TODO(synk): for production-size T, add a sequential time-chunk grid
    # (grid=(T//TT,), dimension_semantics=("arbitrary",), VMEM-sized TT for v7x's
    # 64 MiB) with hf/hb persisted in scratch, and on v7x split the two directions
    # across the two TensorCores; unnecessary at these toy sizes.
    out_p, hid_p = pl.pallas_call(
        _bigru_kernel,
        out_shape=(jax.ShapeDtypeStruct((T, B, HP), jnp.float32),
                   jax.ShapeDtypeStruct((2, B, HP), jnp.float32)),
        in_specs=[vmem] * 8,
        out_specs=(vmem, vmem),
        scratch_shapes=[pltpu.VMEM((T, B, 6 * HP), jnp.float32)],   # hoisted gi
    )(emb, sl, wih_cat, whh_f, whh_b, bin_cat, bhn_f, bhn_b)

    # Drop the lane padding (gates/hidden were padded to 128 lanes for alignment).
    return out_p[:, :, :H], hid_p[:, :, :H]


def encoder_reference(tokens, seq_lens, params):
    """Pure-JAX reference for correctness checking (unpadded layout)."""
    emb = jnp.take(params['embedding'], tokens, axis=0)
    T, B, _ = emb.shape
    H = params['whh_f'].shape[0]
    mask = (jnp.arange(T)[:, None] < seq_lens[None, :]).astype(jnp.float32)[:, :, None]

    def cell(x, h, wih, whh, bih, bhh):
        gi = x @ wih + bih
        gh = h @ whh + bhh
        i_r, i_z, i_n = jnp.split(gi, 3, axis=-1)
        h_r, h_z, h_n = jnp.split(gh, 3, axis=-1)
        r = jax.nn.sigmoid(i_r + h_r)
        z = jax.nn.sigmoid(i_z + h_z)
        n = jnp.tanh(i_n + r * h_n)
        return (1.0 - z) * n + z * h

    h0 = jnp.zeros((B, H), jnp.float32)

    def fwd_step(h, xm):
        x, m = xm
        h_new = cell(x, h, params['wih_f'], params['whh_f'], params['bih_f'], params['bhh_f'])
        return m * h_new + (1.0 - m) * h, m * h_new

    hf, out_f = lax.scan(fwd_step, h0, (emb, mask))

    def bwd_step(h, xm):
        x, m = xm
        h_new = cell(x, h, params['wih_b'], params['whh_b'], params['bih_b'], params['bhh_b'])
        return m * h_new + (1.0 - m) * h, m * h_new

    hb, out_b_rev = lax.scan(bwd_step, h0, (emb[::-1], mask[::-1]))
    out_b = out_b_rev[::-1]
    return out_f + out_b, jnp.stack([hf, hb], axis=0)


if __name__ == "__main__":
    vocab_size, E, H = 50, 32, 32   # config.embedding_dim = 32, config.hidden_size = 32
    T, B = 8, 8
    init_uniform_mag = 0.08         # config.init_uniform_mag
    init_normal_std = 0.1           # config.init_normal_std

    key = jax.random.PRNGKey(0)
    keys = jax.random.split(key, 8)

    # Deterministic synthetic parameters matching the PyTorch init scheme.
    params = {
        'embedding': init_normal_std * jax.random.normal(keys[0], (vocab_size, E), jnp.float32),
        'wih_f': jax.random.uniform(keys[1], (E, 3 * H), jnp.float32, -init_uniform_mag, init_uniform_mag),
        'whh_f': jax.random.uniform(keys[2], (H, 3 * H), jnp.float32, -init_uniform_mag, init_uniform_mag),
        'wih_b': jax.random.uniform(keys[3], (E, 3 * H), jnp.float32, -init_uniform_mag, init_uniform_mag),
        'whh_b': jax.random.uniform(keys[4], (H, 3 * H), jnp.float32, -init_uniform_mag, init_uniform_mag),
    }
    # init_rnn_wt bias pattern: zeros, with bias[n//4 : n//2] = 1.0 (n = 3H).
    bias = jnp.zeros((3 * H,), jnp.float32).at[(3 * H) // 4:(3 * H) // 2].set(1.0).reshape(1, 3 * H)
    params['bih_f'] = bias
    params['bhh_f'] = bias
    params['bih_b'] = bias
    params['bhh_b'] = bias

    tokens = jax.random.randint(keys[5], (T, B), 0, vocab_size, dtype=jnp.int32)   # [T, B]
    seq_lens = jnp.array([8, 7, 5, 5, 3, 2, 2, 1], dtype=jnp.int32)                # descending, [B]

    outs, hidden = jax.jit(encoder_forward)(tokens, seq_lens, params)
    jax.block_until_ready((outs, hidden))

    ref_out, ref_hid = encoder_reference(tokens, seq_lens, params)
    assert outs.shape == (T, B, H) and hidden.shape == (2, B, H)
    assert jnp.allclose(outs, ref_out, atol=1e-5), "outputs mismatch vs reference"
    assert jnp.allclose(hidden, ref_hid, atol=1e-5), "hidden mismatch vs reference"

    print("KERNEL_OK")
</pallas_src>

<mosaic_0001>
module attributes {stable_mosaic.version = 11 : i64} {
  func.func @_bigru_kernel(%arg0: memref<8x8x32xf32, #tpu.memory_space<vmem>>, %arg1: memref<8x1xi32, #tpu.memory_space<vmem>>, %arg2: memref<32x768xf32, #tpu.memory_space<vmem>>, %arg3: memref<128x384xf32, #tpu.memory_space<vmem>>, %arg4: memref<128x384xf32, #tpu.memory_space<vmem>>, %arg5: memref<1x768xf32, #tpu.memory_space<vmem>>, %arg6: memref<1x128xf32, #tpu.memory_space<vmem>>, %arg7: memref<1x128xf32, #tpu.memory_space<vmem>>, %arg8: memref<8x8x128xf32, #tpu.memory_space<vmem>>, %arg9: memref<2x8x128xf32, #tpu.memory_space<vmem>>, %arg10: memref<8x8x768xf32, #tpu.memory_space<vmem>>) attributes {dimension_semantics = [], scalar_prefetch = 0 : i64, scratch_operands = 1 : i64, tpu.core_type = #tpu.core_type<tc>} {
    %c0 = arith.constant 0 : index
    %c0_0 = arith.constant 0 : index
    %c0_1 = arith.constant 0 : index
    %0 = vector.load %arg0[%c0, %c0_0, %c0_1] : memref<8x8x32xf32, #tpu.memory_space<vmem>>, vector<8x8x32xf32>
    %1 = vector.shape_cast %0 : vector<8x8x32xf32> to vector<64x32xf32>
    %c0_2 = arith.constant 0 : index
    %c0_3 = arith.constant 0 : index
    %2 = vector.load %arg2[%c0_2, %c0_3] : memref<32x768xf32, #tpu.memory_space<vmem>>, vector<32x768xf32>
    %cst = arith.constant dense<0.000000e+00> : vector<64x768xf32>
    %3 = tpu.matmul %1, %2, %cst {dimension_numbers = #tpu.dot_dimension_numbers<[1], [0], [0], [1], [0, 0, 1, 1], [], []>} : vector<64x32xf32>, vector<32x768xf32>, vector<64x768xf32> -> vector<64x768xf32>
    %c0_4 = arith.constant 0 : index
    %c0_5 = arith.constant 0 : index
    %4 = vector.load %arg5[%c0_4, %c0_5] : memref<1x768xf32, #tpu.memory_space<vmem>>, vector<1x768xf32>
    %5 = vector.broadcast %4 : vector<1x768xf32> to vector<64x768xf32>
    %6 = arith.addf %3, %5 : vector<64x768xf32>
    %7 = vector.shape_cast %6 : vector<64x768xf32> to vector<8x8x768xf32>
    %c0_6 = arith.constant 0 : index
    %c0_7 = arith.constant 0 : index
    %c0_8 = arith.constant 0 : index
    %8 = vector.load %arg10[%c0_6, %c0_7, %c0_8] : memref<8x8x768xf32, #tpu.memory_space<vmem>>, vector<8x8x768xf32>
    tpu.vector_store %arg10[%c0_6, %c0_7, %c0_8], %7 {strides = array<i32>} : memref<8x8x768xf32, #tpu.memory_space<vmem>>, vector<8x8x768xf32>,
    %c0_9 = arith.constant 0 : index
    %c0_10 = arith.constant 0 : index
    %9 = vector.load %arg3[%c0_9, %c0_10] : memref<128x384xf32, #tpu.memory_space<vmem>>, vector<128x384xf32>
    %c0_11 = arith.constant 0 : index
    %c0_12 = arith.constant 0 : index
    %10 = vector.load %arg4[%c0_11, %c0_12] : memref<128x384xf32, #tpu.memory_space<vmem>>, vector<128x384xf32>
    %c0_13 = arith.constant 0 : index
    %c0_14 = arith.constant 0 : index
    %11 = vector.load %arg6[%c0_13, %c0_14] : memref<1x128xf32, #tpu.memory_space<vmem>>, vector<1x128xf32>
    %12 = vector.shape_cast %11 : vector<1x128xf32> to vector<1x128xf32>
    %13 = vector.broadcast %12 : vector<1x128xf32> to vector<8x128xf32>
    %c0_15 = arith.constant 0 : index
    %c0_16 = arith.constant 0 : index
    %14 = vector.load %arg7[%c0_15, %c0_16] : memref<1x128xf32, #tpu.memory_space<vmem>>, vector<1x128xf32>
    %15 = vector.shape_cast %14 : vector<1x128xf32> to vector<1x128xf32>
    %16 = vector.broadcast %15 : vector<1x128xf32> to vector<8x128xf32>
    %c0_17 = arith.constant 0 : index
    %c0_18 = arith.constant 0 : index
    %17 = vector.load %arg1[%c0_17, %c0_18] : memref<8x1xi32, #tpu.memory_space<vmem>>, vector<8x1xi32>
    %cst_19 = arith.constant 0.000000e+00 : f32
    %18 = vector.broadcast %cst_19 : f32 to vector<8x8x128xf32>
    %c0_20 = arith.constant 0 : index
    %c0_21 = arith.constant 0 : index
    %c0_22 = arith.constant 0 : index
    %19 = vector.load %arg8[%c0_20, %c0_21, %c0_22] : memref<8x8x128xf32, #tpu.memory_space<vmem>>, vector<8x8x128xf32>
    tpu.vector_store %arg8[%c0_20, %c0_21, %c0_22], %18 {strides = array<i32>} : memref<8x8x128xf32, #tpu.memory_space<vmem>>, vector<8x8x128xf32>,
    %cst_23 = arith.constant 0.000000e+00 : f32
    %20 = vector.broadcast %cst_23 : f32 to vector<8x128xf32>
    %c0_i32 = arith.constant 0 : i32
    %c7_i32 = arith.constant 7 : i32
    %21 = arith.subi %c7_i32, %c0_i32 : i32
    %22 = arith.index_cast %c0_i32 : i32 to index
    %c0_24 = arith.constant 0 : index
    %c0_25 = arith.constant 0 : index
    %23 = vector.load %arg10[%22, %c0_24, %c0_25] : memref<8x8x768xf32, #tpu.memory_space<vmem>>, vector<1x8x768xf32>
    %24 = vector.shape_cast %23 : vector<1x8x768xf32> to vector<8x768xf32>
    %25 = vector.extract_strided_slice %24 {offsets = [0, 0], sizes = [8, 384], strides = [1, 1]} : vector<8x768xf32> to vector<8x384xf32>
    %cst_26 = arith.constant dense<0.000000e+00> : vector<8x384xf32>
    %26 = tpu.matmul %20, %9, %cst_26 {dimension_numbers = #tpu.dot_dimension_numbers<[1], [0], [0], [1], [0, 0, 1, 1], [], []>} : vector<8x128xf32>, vector<128x384xf32>, vector<8x384xf32> -> vector<8x384xf32>
    %27 = vector.extract_strided_slice %25 {offsets = [0, 0], sizes = [8, 128], strides = [1, 1]} : vector<8x384xf32> to vector<8x128xf32>
    %28 = vector.extract_strided_slice %26 {offsets = [0, 0], sizes = [8, 128], strides = [1, 1]} : vector<8x384xf32> to vector<8x128xf32>
    %29 = arith.addf %27, %28 : vector<8x128xf32>
    %30 = arith.negf %29 : vector<8x128xf32>
    %31 = math.exp %30 : vector<8x128xf32>
    %cst_27 = arith.constant 1.000000e+00 : f32
    %32 = vector.broadcast %cst_27 : f32 to vector<8x128xf32>
    %33 = arith.addf %32, %31 : vector<8x128xf32>
    %34 = arith.divf %32, %33 : vector<8x128xf32>
    %35 = vector.extract_strided_slice %25 {offsets = [0, 128], sizes = [8, 128], strides = [1, 1]} : vector<8x384xf32> to vector<8x128xf32>
    %36 = vector.extract_strided_slice %26 {offsets = [0, 128], sizes = [8, 128], strides = [1, 1]} : vector<8x384xf32> to vector<8x128xf32>
    %37 = arith.addf %35, %36 : vector<8x128xf32>
    %38 = arith.negf %37 : vector<8x128xf32>
    %39 = math.exp %38 : vector<8x128xf32>
    %cst_28 = arith.constant 1.000000e+00 : f32
    %40 = vector.broadcast %cst_28 : f32 to vector<8x128xf32>
    %41 = arith.addf %40, %39 : vector<8x128xf32>
    %42 = arith.divf %40, %41 : vector<8x128xf32>
    %43 = vector.extract_strided_slice %25 {offsets = [0, 256], sizes = [8, 128], strides = [1, 1]} : vector<8x384xf32> to vector<8x128xf32>
    %44 = vector.extract_strided_slice %26 {offsets = [0, 256], sizes = [8, 128], strides = [1, 1]} : vector<8x384xf32> to vector<8x128xf32>
    %45 = arith.addf %44, %13 : vector<8x128xf32>
    %46 = arith.mulf %34, %45 : vector<8x128xf32>
    %47 = arith.addf %43, %46 : vector<8x128xf32>
    %48 = math.tanh %47 : vector<8x128xf32>
    %cst_29 = arith.constant 1.000000e+00 : f32
    %49 = vector.broadcast %cst_29 : f32 to vector<8x128xf32>
    %50 = arith.subf %49, %42 : vector<8x128xf32>
    %51 = arith.mulf %50, %48 : vector<8x128xf32>
    %52 = arith.mulf %42, %20 : vector<8x128xf32>
    %53 = arith.addf %51, %52 : vector<8x128xf32>
    %54 = vector.broadcast %c0_i32 : i32 to vector<8x1xi32>
    %55 = arith.cmpi slt, %54, %17 : vector<8x1xi32>
    %56 = vector.shape_cast %55 : vector<8x1xi1> to vector<8x1xi1>
    %57 = vector.broadcast %56 : vector<8x1xi1> to vector<8x128xi1>
    %58 = arith.select %57, %53, %20 : vector<8x128xi1>, vector<8x128xf32>
    %59 = arith.index_cast %c0_i32 : i32 to index
    %c0_30 = arith.constant 0 : index
    %c0_31 = arith.constant 0 : index
    %60 = vector.load %arg8[%59, %c0_30, %c0_31] : memref<8x8x128xf32, #tpu.memory_space<vmem>>, vector<1x8x128xf32>
    %61 = vector.shape_cast %60 : vector<1x8x128xf32> to vector<8x128xf32>
    %cst_32 = arith.constant 0.000000e+00 : f32
    %62 = vector.shape_cast %55 : vector<8x1xi1> to vector<8x1xi1>
    %63 = vector.broadcast %62 : vector<8x1xi1> to vector<8x128xi1>
    %64 = vector.broadcast %cst_32 : f32 to vector<8x128xf32>
    %65 = arith.select %63, %53, %64 : vector<8x128xi1>, vector<8x128xf32>
    %66 = arith.addf %61, %65 : vector<8x128xf32>
    %67 = arith.index_cast %c0_i32 : i32 to index
    %c0_33 = arith.constant 0 : index
    %c0_34 = arith.constant 0 : index
    %68 = vector.load %arg8[%67, %c0_33, %c0_34] : memref<8x8x128xf32, #tpu.memory_space<vmem>>, vector<1x8x128xf32>
    %69 = vector.shape_cast %68 : vector<1x8x128xf32> to vector<8x128xf32>
    %70 = vector.shape_cast %66 : vector<8x128xf32> to vector<1x8x128xf32>
    tpu.vector_store %arg8[%67, %c0_33, %c0_34], %70 {strides = array<i32>} : memref<8x8x128xf32, #tpu.memory_space<vmem>>, vector<1x8x128xf32>,
    %71 = arith.index_cast %21 : i32 to index
    %c0_35 = arith.constant 0 : index
    %c0_36 = arith.constant 0 : index
    %72 = vector.load %arg10[%71, %c0_35, %c0_36] : memref<8x8x768xf32, #tpu.memory_space<vmem>>, vector<1x8x768xf32>
    %73 = vector.shape_cast %72 : vector<1x8x768xf32> to vector<8x768xf32>
    %74 = vector.extract_strided_slice %73 {offsets = [0, 384], sizes = [8, 384], strides = [1, 1]} : vector<8x768xf32> to vector<8x384xf32>
    %cst_37 = arith.constant dense<0.000000e+00> : vector<8x384xf32>
    %75 = tpu.matmul %20, %10, %cst_37 {dimension_numbers = #tpu.dot_dimension_numbers<[1], [0], [0], [1], [0, 0, 1, 1], [], []>} : vector<8x128xf32>, vector<128x384xf32>, vector<8x384xf32> -> vector<8x384xf32>
    %76 = vector.extract_strided_slice %74 {offsets = [0, 0], sizes = [8, 128], strides = [1, 1]} : vector<8x384xf32> to vector<8x128xf32>
    %77 = vector.extract_strided_slice %75 {offsets = [0, 0], sizes = [8, 128], strides = [1, 1]} : vector<8x384xf32> to vector<8x128xf32>
    %78 = arith.addf %76, %77 : vector<8x128xf32>
    %79 = arith.negf %78 : vector<8x128xf32>
    %80 = math.exp %79 : vector<8x128xf32>
    %cst_38 = arith.constant 1.000000e+00 : f32
    %81 = vector.broadcast %cst_38 : f32 to vector<8x128xf32>
    %82 = arith.addf %81, %80 : vector<8x128xf32>
    %83 = arith.divf %81, %82 : vector<8x128xf32>
    %84 = vector.extract_strided_slice %74 {offsets = [0, 128], sizes = [8, 128], strides = [1, 1]} : vector<8x384xf32> to vector<8x128xf32>
    %85 = vector.extract_strided_slice %75 {offsets = [0, 128], sizes = [8, 128], strides = [1, 1]} : vector<8x384xf32> to vector<8x128xf32>
    %86 = arith.addf %84, %85 : vector<8x128xf32>
    %87 = arith.negf %86 : vector<8x128xf32>
    %88 = math.exp %87 : vector<8x128xf32>
    %cst_39 = arith.constant 1.000000e+00 : f32
    %89 = vector.broadcast %cst_39 : f32 to vector<8x128xf32>
    %90 = arith.addf %89, %88 : vector<8x128xf32>
    %91 = arith.divf %89, %90 : vector<8x128xf32>
    %92 = vector.extract_strided_slice %74 {offsets = [0, 256], sizes = [8, 128], strides = [1, 1]} : vector<8x384xf32> to vector<8x128xf32>
    %93 = vector.extract_strided_slice %75 {offsets = [0, 256], sizes = [8, 128], strides = [1, 1]} : vector<8x384xf32> to vector<8x128xf32>
    %94 = arith.addf %93, %16 : vector<8x128xf32>
    %95 = arith.mulf %83, %94 : vector<8x128xf32>
    %96 = arith.addf %92, %95 : vector<8x128xf32>
    %97 = math.tanh %96 : vector<8x128xf32>
    %cst_40 = arith.constant 1.000000e+00 : f32
    %98 = vector.broadcast %cst_40 : f32 to vector<8x128xf32>
    %99 = arith.subf %98, %91 : vector<8x128xf32>
    %100 = arith.mulf %99, %97 : vector<8x128xf32>
    %101 = arith.mulf %91, %20 : vector<8x128xf32>
    %102 = arith.addf %100, %101 : vector<8x128xf32>
    %103 = vector.broadcast %21 : i32 to vector<8x1xi32>
    %104 = arith.cmpi slt, %103, %17 : vector<8x1xi32>
    %105 = vector.shape_cast %104 : vector<8x1xi1> to vector<8x1xi1>
    %106 = vector.broadcast %105 : vector<8x1xi1> to vector<8x128xi1>
    %107 = arith.select %106, %102, %20 : vector<8x128xi1>, vector<8x128xf32>
    %108 = arith.index_cast %21 : i32 to index
    %c0_41 = arith.constant 0 : index
    %c0_42 = arith.constant 0 : index
    %109 = vector.load %arg8[%108, %c0_41, %c0_42] : memref<8x8x128xf32, #tpu.memory_space<vmem>>, vector<1x8x128xf32>
    %110 = vector.shape_cast %109 : vector<1x8x128xf32> to vector<8x128xf32>
    %cst_43 = arith.constant 0.000000e+00 : f32
    %111 = vector.shape_cast %104 : vector<8x1xi1> to vector<8x1xi1>
    %112 = vector.broadcast %111 : vector<8x1xi1> to vector<8x128xi1>
    %113 = vector.broadcast %cst_43 : f32 to vector<8x128xf32>
    %114 = arith.select %112, %102, %113 : vector<8x128xi1>, vector<8x128xf32>
    %115 = arith.addf %110, %114 : vector<8x128xf32>
    %116 = arith.index_cast %21 : i32 to index
    %c0_44 = arith.constant 0 : index
    %c0_45 = arith.constant 0 : index
    %117 = vector.load %arg8[%116, %c0_44, %c0_45] : memref<8x8x128xf32, #tpu.memory_space<vmem>>, vector<1x8x128xf32>
    %118 = vector.shape_cast %117 : vector<1x8x128xf32> to vector<8x128xf32>
    %119 = vector.shape_cast %115 : vector<8x128xf32> to vector<1x8x128xf32>
    tpu.vector_store %arg8[%116, %c0_44, %c0_45], %119 {strides = array<i32>} : memref<8x8x128xf32, #tpu.memory_space<vmem>>, vector<1x8x128xf32>,
    %c1_i32 = arith.constant 1 : i32
    %c7_i32_46 = arith.constant 7 : i32
    %120 = arith.subi %c7_i32_46, %c1_i32 : i32
    %121 = arith.index_cast %c1_i32 : i32 to index
    %c0_47 = arith.constant 0 : index
    %c0_48 = arith.constant 0 : index
    %122 = vector.load %arg10[%121, %c0_47, %c0_48] : memref<8x8x768xf32, #tpu.memory_space<vmem>>, vector<1x8x768xf32>
    %123 = vector.shape_cast %122 : vector<1x8x768xf32> to vector<8x768xf32>
    %124 = vector.extract_strided_slice %123 {offsets = [0, 0], sizes = [8, 384], strides = [1, 1]} : vector<8x768xf32> to vector<8x384xf32>
    %cst_49 = arith.constant dense<0.000000e+00> : vector<8x384xf32>
    %125 = tpu.matmul %58, %9, %cst_49 {dimension_numbers = #tpu.dot_dimension_numbers<[1], [0], [0], [1], [0, 0, 1, 1], [], []>} : vector<8x128xf32>, vector<128x384xf32>, vector<8x384xf32> -> vector<8x384xf32>
    %126 = vector.extract_strided_slice %124 {offsets = [0, 0], sizes = [8, 128], strides = [1, 1]} : vector<8x384xf32> to vector<8x128xf32>
    %127 = vector.extract_strided_slice %125 {offsets = [0, 0], sizes = [8, 128], strides = [1, 1]} : vector<8x384xf32> to vector<8x128xf32>
    %128 = arith.addf %126, %127 : vector<8x128xf32>
    %129 = arith.negf %128 : vector<8x128xf32>
    %130 = math.exp %129 : vector<8x128xf32>
    %cst_50 = arith.constant 1.000000e+00 : f32
    %131 = vector.broadcast %cst_50 : f32 to vector<8x128xf32>
    %132 = arith.addf %131, %130 : vector<8x128xf32>
    %133 = arith.divf %131, %132 : vector<8x128xf32>
    %134 = vector.extract_strided_slice %124 {offsets = [0, 128], sizes = [8, 128], strides = [1, 1]} : vector<8x384xf32> to vector<8x128xf32>
    %135 = vector.extract_strided_slice %125 {offsets = [0, 128], sizes = [8, 128], strides = [1, 1]} : vector<8x384xf32> to vector<8x128xf32>
    %136 = arith.addf %134, %135 : vector<8x128xf32>
    %137 = arith.negf %136 : vector<8x128xf32>
    %138 = math.exp %137 : vector<8x128xf32>
    %cst_51 = arith.constant 1.000000e+00 : f32
    %139 = vector.broadcast %cst_51 : f32 to vector<8x128xf32>
    %140 = arith.addf %139, %138 : vector<8x128xf32>
    %141 = arith.divf %139, %140 : vector<8x128xf32>
    %142 = vector.extract_strided_slice %124 {offsets = [0, 256], sizes = [8, 128], strides = [1, 1]} : vector<8x384xf32> to vector<8x128xf32>
    %143 = vector.extract_strided_slice %125 {offsets = [0, 256], sizes = [8, 128], strides = [1, 1]} : vector<8x384xf32> to vector<8x128xf32>
    %144 = arith.addf %143, %13 : vector<8x128xf32>
    %145 = arith.mulf %133, %144 : vector<8x128xf32>
    %146 = arith.addf %142, %145 : vector<8x128xf32>
    %147 = math.tanh %146 : vector<8x128xf32>
    %cst_52 = arith.constant 1.000000e+00 : f32
    %148 = vector.broadcast %cst_52 : f32 to vector<8x128xf32>
    %149 = arith.subf %148, %141 : vector<8x128xf32>
    %150 = arith.mulf %149, %147 : vector<8x128xf32>
    %151 = arith.mulf %141, %58 : vector<8x128xf32>
    %152 = arith.addf %150, %151 : vector<8x128xf32>
    %153 = vector.broadcast %c1_i32 : i32 to vector<8x1xi32>
    %154 = arith.cmpi slt, %153, %17 : vector<8x1xi32>
    %155 = vector.shape_cast %154 : vector<8x1xi1> to vector<8x1xi1>
    %156 = vector.broadcast %155 : vector<8x1xi1> to vector<8x128xi1>
    %157 = arith.select %156, %152, %58 : vector<8x128xi1>, vector<8x128xf32>
    %158 = arith.index_cast %c1_i32 : i32 to index
    %c0_53 = arith.constant 0 : index
    %c0_54 = arith.constant 0 : index
    %159 = vector.load %arg8[%158, %c0_53, %c0_54] : memref<8x8x128xf32, #tpu.memory_space<vmem>>, vector<1x8x128xf32>
    %160 = vector.shape_cast %159 : vector<1x8x128xf32> to vector<8x128xf32>
    %cst_55 = arith.constant 0.000000e+00 : f32
    %161 = vector.shape_cast %154 : vector<8x1xi1> to vector<8x1xi1>
    %162 = vector.broadcast %161 : vector<8x1xi1> to vector<8x128xi1>
    %163 = vector.broadcast %cst_55 : f32 to vector<8x128xf32>
    %164 = arith.select %162, %152, %163 : vector<8x128xi1>, vector<8x128xf32>
    %165 = arith.addf %160, %164 : vector<8x128xf32>
    %166 = arith.index_cast %c1_i32 : i32 to index
    %c0_56 = arith.constant 0 : index
    %c0_57 = arith.constant 0 : index
    %167 = vector.load %arg8[%166, %c0_56, %c0_57] : memref<8x8x128xf32, #tpu.memory_space<vmem>>, vector<1x8x128xf32>
    %168 = vector.shape_cast %167 : vector<1x8x128xf32> to vector<8x128xf32>
    %169 = vector.shape_cast %165 : vector<8x128xf32> to vector<1x8x128xf32>
    tpu.vector_store %arg8[%166, %c0_56, %c0_57], %169 {strides = array<i32>} : memref<8x8x128xf32, #tpu.memory_space<vmem>>, vector<1x8x128xf32>,
    %170 = arith.index_cast %120 : i32 to index
    %c0_58 = arith.constant 0 : index
    %c0_59 = arith.constant 0 : index
    %171 = vector.load %arg10[%170, %c0_58, %c0_59] : memref<8x8x768xf32, #tpu.memory_space<vmem>>, vector<1x8x768xf32>
    %172 = vector.shape_cast %171 : vector<1x8x768xf32> to vector<8x768xf32>
    %173 = vector.extract_strided_slice %172 {offsets = [0, 384], sizes = [8, 384], strides = [1, 1]} : vector<8x768xf32> to vector<8x384xf32>
    %cst_60 = arith.constant dense<0.000000e+00> : vector<8x384xf32>
    %174 = tpu.matmul %107, %10, %cst_60 {dimension_numbers = #tpu.dot_dimension_numbers<[1], [0], [0], [1], [0, 0, 1, 1], [], []>} : vector<8x128xf32>, vector<128x384xf32>, vector<8x384xf32> -> vector<8x384xf32>
    %175 = vector.extract_strided_slice %173 {offsets = [0, 0], sizes = [8, 128], strides = [1, 1]} : vector<8x384xf32> to vector<8x128xf32>
    %176 = vector.extract_strided_slice %174 {offsets = [0, 0], sizes = [8, 128], strides = [1, 1]} : vector<8x384xf32> to vector<8x128xf32>
    %177 = arith.addf %175, %176 : vector<8x128xf32>
    %178 = arith.negf %177 : vector<8x128xf32>
    %179 = math.exp %178 : vector<8x128xf32>
    %cst_61 = arith.constant 1.000000e+00 : f32
    %180 = vector.broadcast %cst_61 : f32 to vector<8x128xf32>
    %181 = arith.addf %180, %179 : vector<8x128xf32>
    %182 = arith.divf %180, %181 : vector<8x128xf32>
    %183 = vector.extract_strided_slice %173 {offsets = [0, 128], sizes = [8, 128], strides = [1, 1]} : vector<8x384xf32> to vector<8x128xf32>
    %184 = vector.extract_strided_slice %174 {offsets = [0, 128], sizes = [8, 128], strides = [1, 1]} : vector<8x384xf32> to vector<8x128xf32>
    %185 = arith.addf %183, %184 : vector<8x128xf32>
    %186 = arith.negf %185 : vector<8x128xf32>
    %187 = math.exp %186 : vector<8x128xf32>
    %cst_62 = arith.constant 1.000000e+00 : f32
    %188 = vector.broadcast %cst_62 : f32 to vector<8x128xf32>
    %189 = arith.addf %188, %187 : vector<8x128xf32>
    %190 = arith.divf %188, %189 : vector<8x128xf32>
    %191 = vector.extract_strided_slice %173 {offsets = [0, 256], sizes = [8, 128], strides = [1, 1]} : vector<8x384xf32> to vector<8x128xf32>
    %192 = vector.extract_strided_slice %174 {offsets = [0, 256], sizes = [8, 128], strides = [1, 1]} : vector<8x384xf32> to vector<8x128xf32>
    %193 = arith.addf %192, %16 : vector<8x128xf32>
    %194 = arith.mulf %182, %193 : vector<8x128xf32>
    %195 = arith.addf %191, %194 : vector<8x128xf32>
    %196 = math.tanh %195 : vector<8x128xf32>
    %cst_63 = arith.constant 1.000000e+00 : f32
    %197 = vector.broadcast %cst_63 : f32 to vector<8x128xf32>
    %198 = arith.subf %197, %190 : vector<8x128xf32>
    %199 = arith.mulf %198, %196 : vector<8x128xf32>
    %200 = arith.mulf %190, %107 : vector<8x128xf32>
    %201 = arith.addf %199, %200 : vector<8x128xf32>
    %202 = vector.broadcast %120 : i32 to vector<8x1xi32>
    %203 = arith.cmpi slt, %202, %17 : vector<8x1xi32>
    %204 = vector.shape_cast %203 : vector<8x1xi1> to vector<8x1xi1>
    %205 = vector.broadcast %204 : vector<8x1xi1> to vector<8x128xi1>
    %206 = arith.select %205, %201, %107 : vector<8x128xi1>, vector<8x128xf32>
    %207 = arith.index_cast %120 : i32 to index
    %c0_64 = arith.constant 0 : index
    %c0_65 = arith.constant 0 : index
    %208 = vector.load %arg8[%207, %c0_64, %c0_65] : memref<8x8x128xf32, #tpu.memory_space<vmem>>, vector<1x8x128xf32>
    %209 = vector.shape_cast %208 : vector<1x8x128xf32> to vector<8x128xf32>
    %cst_66 = arith.constant 0.000000e+00 : f32
    %210 = vector.shape_cast %203 : vector<8x1xi1> to vector<8x1xi1>
    %211 = vector.broadcast %210 : vector<8x1xi1> to vector<8x128xi1>
    %212 = vector.broadcast %cst_66 : f32 to vector<8x128xf32>
    %213 = arith.select %211, %201, %212 : vector<8x128xi1>, vector<8x128xf32>
    %214 = arith.addf %209, %213 : vector<8x128xf32>
    %215 = arith.index_cast %120 : i32 to index
    %c0_67 = arith.constant 0 : index
    %c0_68 = arith.constant 0 : index
    %216 = vector.load %arg8[%215, %c0_67, %c0_68] : memref<8x8x128xf32, #tpu.memory_space<vmem>>, vector<1x8x128xf32>
    %217 = vector.shape_cast %216 : vector<1x8x128xf32> to vector<8x128xf32>
    %218 = vector.shape_cast %214 : vector<8x128xf32> to vector<1x8x128xf32>
    tpu.vector_store %arg8[%215, %c0_67, %c0_68], %218 {strides = array<i32>} : memref<8x8x128xf32, #tpu.memory_space<vmem>>, vector<1x8x128xf32>,
    %c2_i32 = arith.constant 2 : i32
    %c7_i32_69 = arith.constant 7 : i32
    %219 = arith.subi %c7_i32_69, %c2_i32 : i32
    %220 = arith.index_cast %c2_i32 : i32 to index
    %c0_70 = arith.constant 0 : index
    %c0_71 = arith.constant 0 : index
    %221 = vector.load %arg10[%220, %c0_70, %c0_71] : memref<8x8x768xf32, #tpu.memory_space<vmem>>, vector<1x8x768xf32>
    %222 = vector.shape_cast %221 : vector<1x8x768xf32> to vector<8x768xf32>
    %223 = vector.extract_strided_slice %222 {offsets = [0, 0], sizes = [8, 384], strides = [1, 1]} : vector<8x768xf32> to vector<8x384xf32>
    %cst_72 = arith.constant dense<0.000000e+00> : vector<8x384xf32>
    %224 = tpu.matmul %157, %9, %cst_72 {dimension_numbers = #tpu.dot_dimension_numbers<[1], [0], [0], [1], [0, 0, 1, 1], [], []>} : vector<8x128xf32>, vector<128x384xf32>, vector<8x384xf32> -> vector<8x384xf32>
    %225 = vector.extract_strided_slice %223 {offsets = [0, 0], sizes = [8, 128], strides = [1, 1]} : vector<8x384xf32> to vector<8x128xf32>
    %226 = vector.extract_strided_slice %224 {offsets = [0, 0], sizes = [8, 128], strides = [1, 1]} : vector<8x384xf32> to vector<8x128xf32>
    %227 = arith.addf %225, %226 : vector<8x128xf32>
    %228 = arith.negf %227 : vector<8x128xf32>
    %229 = math.exp %228 : vector<8x128xf32>
    %cst_73 = arith.constant 1.000000e+00 : f32
    %230 = vector.broadcast %cst_73 : f32 to vector<8x128xf32>
    %231 = arith.addf %230, %229 : vector<8x128xf32>
    %232 = arith.divf %230, %231 : vector<8x128xf32>
    %233 = vector.extract_strided_slice %223 {offsets = [0, 128], sizes = [8, 128], strides = [1, 1]} : vector<8x384xf32> to vector<8x128xf32>
    %234 = vector.extract_strided_slice %224 {offsets = [0, 128], sizes = [8, 128], strides = [1, 1]} : vector<8x384xf32> to vector<8x128xf32>
    %235 = arith.addf %233, %234 : vector<8x128xf32>
    %236 = arith.negf %235 : vector<8x128xf32>
    %237 = math.exp %236 : vector<8x128xf32>
    %cst_74 = arith.constant 1.000000e+00 : f32
    %238 = vector.broadcast %cst_74 : f32 to vector<8x128xf32>
    %239 = arith.addf %238, %237 : vector<8x128xf32>
    %240 = arith.divf %238, %239 : vector<8x128xf32>
    %241 = vector.extract_strided_slice %223 {offsets = [0, 256], sizes = [8, 128], strides = [1, 1]} : vector<8x384xf32> to vector<8x128xf32>
    %242 = vector.extract_strided_slice %224 {offsets = [0, 256], sizes = [8, 128], strides = [1, 1]} : vector<8x384xf32> to vector<8x128xf32>
    %243 = arith.addf %242, %13 : vector<8x128xf32>
    %244 = arith.mulf %232, %243 : vector<8x128xf32>
    %245 = arith.addf %241, %244 : vector<8x128xf32>
    %246 = math.tanh %245 : vector<8x128xf32>
    %cst_75 = arith.constant 1.000000e+00 : f32
    %247 = vector.broadcast %cst_75 : f32 to vector<8x128xf32>
    %248 = arith.subf %247, %240 : vector<8x128xf32>
    %249 = arith.mulf %248, %246 : vector<8x128xf32>
    %250 = arith.mulf %240, %157 : vector<8x128xf32>
    %251 = arith.addf %249, %250 : vector<8x128xf32>
    %252 = vector.broadcast %c2_i32 : i32 to vector<8x1xi32>
    %253 = arith.cmpi slt, %252, %17 : vector<8x1xi32>
    %254 = vector.shape_cast %253 : vector<8x1xi1> to vector<8x1xi1>
    %255 = vector.broadcast %254 : vector<8x1xi1> to vector<8x128xi1>
    %256 = arith.select %255, %251, %157 : vector<8x128xi1>, vector<8x128xf32>
    %257 = arith.index_cast %c2_i32 : i32 to index
    %c0_76 = arith.constant 0 : index
    %c0_77 = arith.constant 0 : index
    %258 = vector.load %arg8[%257, %c0_76, %c0_77] : memref<8x8x128xf32, #tpu.memory_space<vmem>>, vector<1x8x128xf32>
    %259 = vector.shape_cast %258 : vector<1x8x128xf32> to vector<8x128xf32>
    %cst_78 = arith.constant 0.000000e+00 : f32
    %260 = vector.shape_cast %253 : vector<8x1xi1> to vector<8x1xi1>
    %261 = vector.broadcast %260 : vector<8x1xi1> to vector<8x128xi1>
    %262 = vector.broadcast %cst_78 : f32 to vector<8x128xf32>
    %263 = arith.select %261, %251, %262 : vector<8x128xi1>, vector<8x128xf32>
    %264 = arith.addf %259, %263 : vector<8x128xf32>
    %265 = arith.index_cast %c2_i32 : i32 to index
    %c0_79 = arith.constant 0 : index
    %c0_80 = arith.constant 0 : index
    %266 = vector.load %arg8[%265, %c0_79, %c0_80] : memref<8x8x128xf32, #tpu.memory_space<vmem>>, vector<1x8x128xf32>
    %267 = vector.shape_cast %266 : vector<1x8x128xf32> to vector<8x128xf32>
    %268 = vector.shape_cast %264 : vector<8x128xf32> to vector<1x8x128xf32>
    tpu.vector_store %arg8[%265, %c0_79, %c0_80], %268 {strides = array<i32>} : memref<8x8x128xf32, #tpu.memory_space<vmem>>, vector<1x8x128xf32>,
    %269 = arith.index_cast %219 : i32 to index
    %c0_81 = arith.constant 0 : index
    %c0_82 = arith.constant 0 : index
    %270 = vector.load %arg10[%269, %c0_81, %c0_82] : memref<8x8x768xf32, #tpu.memory_space<vmem>>, vector<1x8x768xf32>
    %271 = vector.shape_cast %270 : vector<1x8x768xf32> to vector<8x768xf32>
    %272 = vector.extract_strided_slice %271 {offsets = [0, 384], sizes = [8, 384], strides = [1, 1]} : vector<8x768xf32> to vector<8x384xf32>
    %cst_83 = arith.constant dense<0.000000e+00> : vector<8x384xf32>
    %273 = tpu.matmul %206, %10, %cst_83 {dimension_numbers = #tpu.dot_dimension_numbers<[1], [0], [0], [1], [0, 0, 1, 1], [], []>} : vector<8x128xf32>, vector<128x384xf32>, vector<8x384xf32> -> vector<8x384xf32>
    %274 = vector.extract_strided_slice %272 {offsets = [0, 0], sizes = [8, 128], strides = [1, 1]} : vector<8x384xf32> to vector<8x128xf32>
    %275 = vector.extract_strided_slice %273 {offsets = [0, 0], sizes = [8, 128], strides = [1, 1]} : vector<8x384xf32> to vector<8x128xf32>
    %276 = arith.addf %274, %275 : vector<8x128xf32>
    %277 = arith.negf %276 : vector<8x128xf32>
    %278 = math.exp %277 : vector<8x128xf32>
    %cst_84 = arith.constant 1.000000e+00 : f32
    %279 = vector.broadcast %cst_84 : f32 to vector<8x128xf32>
    %280 = arith.addf %279, %278 : vector<8x128xf32>
    %281 = arith.divf %279, %280 : vector<8x128xf32>
    %282 = vector.extract_strided_slice %272 {offsets = [0, 128], sizes = [8, 128], strides = [1, 1]} : vector<8x384xf32> to vector<8x128xf32>
    %283 = vector.extract_strided_slice %273 {offsets = [0, 128], sizes = [8, 128], strides = [1, 1]} : vector<8x384xf32> to vector<8x128xf32>
    %284 = arith.addf %282, %283 : vector<8x128xf32>
    %285 = arith.negf %284 : vector<8x128xf32>
    %286 = math.exp %285 : vector<8x128xf32>
    %cst_85 = arith.constant 1.000000e+00 : f32
    %287 = vector.broadcast %cst_85 : f32 to vector<8x128xf32>
    %288 = arith.addf %287, %286 : vector<8x128xf32>
    %289 = arith.divf %287, %288 : vector<8x128xf32>
    %290 = vector.extract_strided_slice %272 {offsets = [0, 256], sizes = [8, 128], strides = [1, 1]} : vector<8x384xf32> to vector<8x128xf32>
    %291 = vector.extract_strided_slice %273 {offsets = [0, 256], sizes = [8, 128], strides = [1, 1]} : vector<8x384xf32> to vector<8x128xf32>
    %292 = arith.addf %291, %16 : vector<8x128xf32>
    %293 = arith.mulf %281, %292 : vector<8x128xf32>
    %294 = arith.addf %290, %293 : vector<8x128xf32>
    %295 = math.tanh %294 : vector<8x128xf32>
    %cst_86 = arith.constant 1.000000e+00 : f32
    %296 = vector.broadcast %cst_86 : f32 to vector<8x128xf32>
    %297 = arith.subf %296, %289 : vector<8x128xf32>
    %298 = arith.mulf %297, %295 : vector<8x128xf32>
    %299 = arith.mulf %289, %206 : vector<8x128xf32>
    %300 = arith.addf %298, %299 : vector<8x128xf32>
    %301 = vector.broadcast %219 : i32 to vector<8x1xi32>
    %302 = arith.cmpi slt, %301, %17 : vector<8x1xi32>
    %303 = vector.shape_cast %302 : vector<8x1xi1> to vector<8x1xi1>
    %304 = vector.broadcast %303 : vector<8x1xi1> to vector<8x128xi1>
    %305 = arith.select %304, %300, %206 : vector<8x128xi1>, vector<8x128xf32>
    %306 = arith.index_cast %219 : i32 to index
    %c0_87 = arith.constant 0 : index
    %c0_88 = arith.constant 0 : index
    %307 = vector.load %arg8[%306, %c0_87, %c0_88] : memref<8x8x128xf32, #tpu.memory_space<vmem>>, vector<1x8x128xf32>
    %308 = vector.shape_cast %307 : vector<1x8x128xf32> to vector<8x128xf32>
    %cst_89 = arith.constant 0.000000e+00 : f32
    %309 = vector.shape_cast %302 : vector<8x1xi1> to vector<8x1xi1>
    %310 = vector.broadcast %309 : vector<8x1xi1> to vector<8x128xi1>
    %311 = vector.broadcast %cst_89 : f32 to vector<8x128xf32>
    %312 = arith.select %310, %300, %311 : vector<8x128xi1>, vector<8x128xf32>
    %313 = arith.addf %308, %312 : vector<8x128xf32>
    %314 = arith.index_cast %219 : i32 to index
    %c0_90 = arith.constant 0 : index
    %c0_91 = arith.constant 0 : index
    %315 = vector.load %arg8[%314, %c0_90, %c0_91] : memref<8x8x128xf32, #tpu.memory_space<vmem>>, vector<1x8x128xf32>
    %316 = vector.shape_cast %315 : vector<1x8x128xf32> to vector<8x128xf32>
    %317 = vector.shape_cast %313 : vector<8x128xf32> to vector<1x8x128xf32>
    tpu.vector_store %arg8[%314, %c0_90, %c0_91], %317 {strides = array<i32>} : memref<8x8x128xf32, #tpu.memory_space<vmem>>, vector<1x8x128xf32>,
    %c3_i32 = arith.constant 3 : i32
    %c7_i32_92 = arith.constant 7 : i32
    %318 = arith.subi %c7_i32_92, %c3_i32 : i32
    %319 = arith.index_cast %c3_i32 : i32 to index
    %c0_93 = arith.constant 0 : index
    %c0_94 = arith.constant 0 : index
    %320 = vector.load %arg10[%319, %c0_93, %c0_94] : memref<8x8x768xf32, #tpu.memory_space<vmem>>, vector<1x8x768xf32>
    %321 = vector.shape_cast %320 : vector<1x8x768xf32> to vector<8x768xf32>
    %322 = vector.extract_strided_slice %321 {offsets = [0, 0], sizes = [8, 384], strides = [1, 1]} : vector<8x768xf32> to vector<8x384xf32>
    %cst_95 = arith.constant dense<0.000000e+00> : vector<8x384xf32>
    %323 = tpu.matmul %256, %9, %cst_95 {dimension_numbers = #tpu.dot_dimension_numbers<[1], [0], [0], [1], [0, 0, 1, 1], [], []>} : vector<8x128xf32>, vector<128x384xf32>, vector<8x384xf32> -> vector<8x384xf32>
    %324 = vector.extract_strided_slice %322 {offsets = [0, 0], sizes = [8, 128], strides = [1, 1]} : vector<8x384xf32> to vector<8x128xf32>
    %325 = vector.extract_strided_slice %323 {offsets = [0, 0], sizes = [8, 128], strides = [1, 1]} : vector<8x384xf32> to vector<8x128xf32>
    %326 = arith.addf %324, %325 : vector<8x128xf32>
    %327 = arith.negf %326 : vector<8x128xf32>
    %328 = math.exp %327 : vector<8x128xf32>
    %cst_96 = arith.constant 1.000000e+00 : f32
    %329 = vector.broadcast %cst_96 : f32 to vector<8x128xf32>
    %330 = arith.addf %329, %328 : vector<8x128xf32>
    %331 = arith.divf %329, %330 : vector<8x128xf32>
    %332 = vector.extract_strided_slice %322 {offsets = [0, 128], sizes = [8, 128], strides = [1, 1]} : vector<8x384xf32> to vector<8x128xf32>
    %333 = vector.extract_strided_slice %323 {offsets = [0, 128], sizes = [8, 128], strides = [1, 1]} : vector<8x384xf32> to vector<8x128xf32>
    %334 = arith.addf %332, %333 : vector<8x128xf32>
    %335 = arith.negf %334 : vector<8x128xf32>
    %336 = math.exp %335 : vector<8x128xf32>
    %cst_97 = arith.constant 1.000000e+00 : f32
    %337 = vector.broadcast %cst_97 : f32 to vector<8x128xf32>
    %338 = arith.addf %337, %336 : vector<8x128xf32>
    %339 = arith.divf %337, %338 : vector<8x128xf32>
    %340 = vector.extract_strided_slice %322 {offsets = [0, 256], sizes = [8, 128], strides = [1, 1]} : vector<8x384xf32> to vector<8x128xf32>
    %341 = vector.extract_strided_slice %323 {offsets = [0, 256], sizes = [8, 128], strides = [1, 1]} : vector<8x384xf32> to vector<8x128xf32>
    %342 = arith.addf %341, %13 : vector<8x128xf32>
    %343 = arith.mulf %331, %342 : vector<8x128xf32>
    %344 = arith.addf %340, %343 : vector<8x128xf32>
    %345 = math.tanh %344 : vector<8x128xf32>
    %cst_98 = arith.constant 1.000000e+00 : f32
    %346 = vector.broadcast %cst_98 : f32 to vector<8x128xf32>
    %347 = arith.subf %346, %339 : vector<8x128xf32>
    %348 = arith.mulf %347, %345 : vector<8x128xf32>
    %349 = arith.mulf %339, %256 : vector<8x128xf32>
    %350 = arith.addf %348, %349 : vector<8x128xf32>
    %351 = vector.broadcast %c3_i32 : i32 to vector<8x1xi32>
    %352 = arith.cmpi slt, %351, %17 : vector<8x1xi32>
    %353 = vector.shape_cast %352 : vector<8x1xi1> to vector<8x1xi1>
    %354 = vector.broadcast %353 : vector<8x1xi1> to vector<8x128xi1>
    %355 = arith.select %354, %350, %256 : vector<8x128xi1>, vector<8x128xf32>
    %356 = arith.index_cast %c3_i32 : i32 to index
    %c0_99 = arith.constant 0 : index
    %c0_100 = arith.constant 0 : index
    %357 = vector.load %arg8[%356, %c0_99, %c0_100] : memref<8x8x128xf32, #tpu.memory_space<vmem>>, vector<1x8x128xf32>
    %358 = vector.shape_cast %357 : vector<1x8x128xf32> to vector<8x128xf32>
    %cst_101 = arith.constant 0.000000e+00 : f32
    %359 = vector.shape_cast %352 : vector<8x1xi1> to vector<8x1xi1>
    %360 = vector.broadcast %359 : vector<8x1xi1> to vector<8x128xi1>
    %361 = vector.broadcast %cst_101 : f32 to vector<8x128xf32>
    %362 = arith.select %360, %350, %361 : vector<8x128xi1>, vector<8x128xf32>
    %363 = arith.addf %358, %362 : vector<8x128xf32>
    %364 = arith.index_cast %c3_i32 : i32 to index
    %c0_102 = arith.constant 0 : index
    %c0_103 = arith.constant 0 : index
    %365 = vector.load %arg8[%364, %c0_102, %c0_103] : memref<8x8x128xf32, #tpu.memory_space<vmem>>, vector<1x8x128xf32>
    %366 = vector.shape_cast %365 : vector<1x8x128xf32> to vector<8x128xf32>
    %367 = vector.shape_cast %363 : vector<8x128xf32> to vector<1x8x128xf32>
    tpu.vector_store %arg8[%364, %c0_102, %c0_103], %367 {strides = array<i32>} : memref<8x8x128xf32, #tpu.memory_space<vmem>>, vector<1x8x128xf32>,
    %368 = arith.index_cast %318 : i32 to index
    %c0_104 = arith.constant 0 : index
    %c0_105 = arith.constant 0 : index
    %369 = vector.load %arg10[%368, %c0_104, %c0_105] : memref<8x8x768xf32, #tpu.memory_space<vmem>>, vector<1x8x768xf32>
    %370 = vector.shape_cast %369 : vector<1x8x768xf32> to vector<8x768xf32>
    %371 = vector.extract_strided_slice %370 {offsets = [0, 384], sizes = [8, 384], strides = [1, 1]} : vector<8x768xf32> to vector<8x384xf32>
    %cst_106 = arith.constant dense<0.000000e+00> : vector<8x384xf32>
    %372 = tpu.matmul %305, %10, %cst_106 {dimension_numbers = #tpu.dot_dimension_numbers<[1], [0], [0], [1], [0, 0, 1, 1], [], []>} : vector<8x128xf32>, vector<128x384xf32>, vector<8x384xf32> -> vector<8x384xf32>
    %373 = vector.extract_strided_slice %371 {offsets = [0, 0], sizes = [8, 128], strides = [1, 1]} : vector<8x384xf32> to vector<8x128xf32>
    %374 = vector.extract_strided_slice %372 {offsets = [0, 0], sizes = [8, 128], strides = [1, 1]} : vector<8x384xf32> to vector<8x128xf32>
    %375 = arith.addf %373, %374 : vector<8x128xf32>
    %376 = arith.negf %375 : vector<8x128xf32>
    %377 = math.exp %376 : vector<8x128xf32>
    %cst_107 = arith.constant 1.000000e+00 : f32
    %378 = vector.broadcast %cst_107 : f32 to vector<8x128xf32>
    %379 = arith.addf %378, %377 : vector<8x128xf32>
    %380 = arith.divf %378, %379 : vector<8x128xf32>
    %381 = vector.extract_strided_slice %371 {offsets = [0, 128], sizes = [8, 128], strides = [1, 1]} : vector<8x384xf32> to vector<8x128xf32>
    %382 = vector.extract_strided_slice %372 {offsets = [0, 128], sizes = [8, 128], strides = [1, 1]} : vector<8x384xf32> to vector<8x128xf32>
    %383 = arith.addf %381, %382 : vector<8x128xf32>
    %384 = arith.negf %383 : vector<8x128xf32>
    %385 = math.exp %384 : vector<8x128xf32>
    %cst_108 = arith.constant 1.000000e+00 : f32
    %386 = vector.broadcast %cst_108 : f32 to vector<8x128xf32>
    %387 = arith.addf %386, %385 : vector<8x128xf32>
    %388 = arith.divf %386, %387 : vector<8x128xf32>
    %389 = vector.extract_strided_slice %371 {offsets = [0, 256], sizes = [8, 128], strides = [1, 1]} : vector<8x384xf32> to vector<8x128xf32>
    %390 = vector.extract_strided_slice %372 {offsets = [0, 256], sizes = [8, 128], strides = [1, 1]} : vector<8x384xf32> to vector<8x128xf32>
    %391 = arith.addf %390, %16 : vector<8x128xf32>
    %392 = arith.mulf %380, %391 : vector<8x128xf32>
    %393 = arith.addf %389, %392 : vector<8x128xf32>
    %394 = math.tanh %393 : vector<8x128xf32>
    %cst_109 = arith.constant 1.000000e+00 : f32
    %395 = vector.broadcast %cst_109 : f32 to vector<8x128xf32>
    %396 = arith.subf %395, %388 : vector<8x128xf32>
    %397 = arith.mulf %396, %394 : vector<8x128xf32>
    %398 = arith.mulf %388, %305 : vector<8x128xf32>
    %399 = arith.addf %397, %398 : vector<8x128xf32>
    %400 = vector.broadcast %318 : i32 to vector<8x1xi32>
    %401 = arith.cmpi slt, %400, %17 : vector<8x1xi32>
    %402 = vector.shape_cast %401 : vector<8x1xi1> to vector<8x1xi1>
    %403 = vector.broadcast %402 : vector<8x1xi1> to vector<8x128xi1>
    %404 = arith.select %403, %399, %305 : vector<8x128xi1>, vector<8x128xf32>
    %405 = arith.index_cast %318 : i32 to index
    %c0_110 = arith.constant 0 : index
    %c0_111 = arith.constant 0 : index
    %406 = vector.load %arg8[%405, %c0_110, %c0_111] : memref<8x8x128xf32, #tpu.memory_space<vmem>>, vector<1x8x128xf32>
    %407 = vector.shape_cast %406 : vector<1x8x128xf32> to vector<8x128xf32>
    %cst_112 = arith.constant 0.000000e+00 : f32
    %408 = vector.shape_cast %401 : vector<8x1xi1> to vector<8x1xi1>
    %409 = vector.broadcast %408 : vector<8x1xi1> to vector<8x128xi1>
    %410 = vector.broadcast %cst_112 : f32 to vector<8x128xf32>
    %411 = arith.select %409, %399, %410 : vector<8x128xi1>, vector<8x128xf32>
    %412 = arith.addf %407, %411 : vector<8x128xf32>
    %413 = arith.index_cast %318 : i32 to index
    %c0_113 = arith.constant 0 : index
    %c0_114 = arith.constant 0 : index
    %414 = vector.load %arg8[%413, %c0_113, %c0_114] : memref<8x8x128xf32, #tpu.memory_space<vmem>>, vector<1x8x128xf32>
    %415 = vector.shape_cast %414 : vector<1x8x128xf32> to vector<8x128xf32>
    %416 = vector.shape_cast %412 : vector<8x128xf32> to vector<1x8x128xf32>
    tpu.vector_store %arg8[%413, %c0_113, %c0_114], %416 {strides = array<i32>} : memref<8x8x128xf32, #tpu.memory_space<vmem>>, vector<1x8x128xf32>,
    %c4_i32 = arith.constant 4 : i32
    %c7_i32_115 = arith.constant 7 : i32
    %417 = arith.subi %c7_i32_115, %c4_i32 : i32
    %418 = arith.index_cast %c4_i32 : i32 to index
    %c0_116 = arith.constant 0 : index
    %c0_117 = arith.constant 0 : index
    %419 = vector.load %arg10[%418, %c0_116, %c0_117] : memref<8x8x768xf32, #tpu.memory_space<vmem>>, vector<1x8x768xf32>
    %420 = vector.shape_cast %419 : vector<1x8x768xf32> to vector<8x768xf32>
    %421 = vector.extract_strided_slice %420 {offsets = [0, 0], sizes = [8, 384], strides = [1, 1]} : vector<8x768xf32> to vector<8x384xf32>
    %cst_118 = arith.constant dense<0.000000e+00> : vector<8x384xf32>
    %422 = tpu.matmul %355, %9, %cst_118 {dimension_numbers = #tpu.dot_dimension_numbers<[1], [0], [0], [1], [0, 0, 1, 1], [], []>} : vector<8x128xf32>, vector<128x384xf32>, vector<8x384xf32> -> vector<8x384xf32>
    %423 = vector.extract_strided_slice %421 {offsets = [0, 0], sizes = [8, 128], strides = [1, 1]} : vector<8x384xf32> to vector<8x128xf32>
    %424 = vector.extract_strided_slice %422 {offsets = [0, 0], sizes = [8, 128], strides = [1, 1]} : vector<8x384xf32> to vector<8x128xf32>
    %425 = arith.addf %423, %424 : vector<8x128xf32>
    %426 = arith.negf %425 : vector<8x128xf32>
    %427 = math.exp %426 : vector<8x128xf32>
    %cst_119 = arith.constant 1.000000e+00 : f32
    %428 = vector.broadcast %cst_119 : f32 to vector<8x128xf32>
    %429 = arith.addf %428, %427 : vector<8x128xf32>
    %430 = arith.divf %428, %429 : vector<8x128xf32>
    %431 = vector.extract_strided_slice %421 {offsets = [0, 128], sizes = [8, 128], strides = [1, 1]} : vector<8x384xf32> to vector<8x128xf32>
    %432 = vector.extract_strided_slice %422 {offsets = [0, 128], sizes = [8, 128], strides = [1, 1]} : vector<8x384xf32> to vector<8x128xf32>
    %433 = arith.addf %431, %432 : vector<8x128xf32>
    %434 = arith.negf %433 : vector<8x128xf32>
    %435 = math.exp %434 : vector<8x128xf32>
    %cst_120 = arith.constant 1.000000e+00 : f32
    %436 = vector.broadcast %cst_120 : f32 to vector<8x128xf32>
    %437 = arith.addf %436, %435 : vector<8x128xf32>
    %438 = arith.divf %436, %437 : vector<8x128xf32>
    %439 = vector.extract_strided_slice %421 {offsets = [0, 256], sizes = [8, 128], strides = [1, 1]} : vector<8x384xf32> to vector<8x128xf32>
    %440 = vector.extract_strided_slice %422 {offsets = [0, 256], sizes = [8, 128], strides = [1, 1]} : vector<8x384xf32> to vector<8x128xf32>
    %441 = arith.addf %440, %13 : vector<8x128xf32>
    %442 = arith.mulf %430, %441 : vector<8x128xf32>
    %443 = arith.addf %439, %442 : vector<8x128xf32>
    %444 = math.tanh %443 : vector<8x128xf32>
    %cst_121 = arith.constant 1.000000e+00 : f32
    %445 = vector.broadcast %cst_121 : f32 to vector<8x128xf32>
    %446 = arith.subf %445, %438 : vector<8x128xf32>
    %447 = arith.mulf %446, %444 : vector<8x128xf32>
    %448 = arith.mulf %438, %355 : vector<8x128xf32>
    %449 = arith.addf %447, %448 : vector<8x128xf32>
    %450 = vector.broadcast %c4_i32 : i32 to vector<8x1xi32>
    %451 = arith.cmpi slt, %450, %17 : vector<8x1xi32>
    %452 = vector.shape_cast %451 : vector<8x1xi1> to vector<8x1xi1>
    %453 = vector.broadcast %452 : vector<8x1xi1> to vector<8x128xi1>
    %454 = arith.select %453, %449, %355 : vector<8x128xi1>, vector<8x128xf32>
    %455 = arith.index_cast %c4_i32 : i32 to index
    %c0_122 = arith.constant 0 : index
    %c0_123 = arith.constant 0 : index
    %456 = vector.load %arg8[%455, %c0_122, %c0_123] : memref<8x8x128xf32, #tpu.memory_space<vmem>>, vector<1x8x128xf32>
    %457 = vector.shape_cast %456 : vector<1x8x128xf32> to vector<8x128xf32>
    %cst_124 = arith.constant 0.000000e+00 : f32
    %458 = vector.shape_cast %451 : vector<8x1xi1> to vector<8x1xi1>
    %459 = vector.broadcast %458 : vector<8x1xi1> to vector<8x128xi1>
    %460 = vector.broadcast %cst_124 : f32 to vector<8x128xf32>
    %461 = arith.select %459, %449, %460 : vector<8x128xi1>, vector<8x128xf32>
    %462 = arith.addf %457, %461 : vector<8x128xf32>
    %463 = arith.index_cast %c4_i32 : i32 to index
    %c0_125 = arith.constant 0 : index
    %c0_126 = arith.constant 0 : index
    %464 = vector.load %arg8[%463, %c0_125, %c0_126] : memref<8x8x128xf32, #tpu.memory_space<vmem>>, vector<1x8x128xf32>
    %465 = vector.shape_cast %464 : vector<1x8x128xf32> to vector<8x128xf32>
    %466 = vector.shape_cast %462 : vector<8x128xf32> to vector<1x8x128xf32>
    tpu.vector_store %arg8[%463, %c0_125, %c0_126], %466 {strides = array<i32>} : memref<8x8x128xf32, #tpu.memory_space<vmem>>, vector<1x8x128xf32>,
    %467 = arith.index_cast %417 : i32 to index
    %c0_127 = arith.constant 0 : index
    %c0_128 = arith.constant 0 : index
    %468 = vector.load %arg10[%467, %c0_127, %c0_128] : memref<8x8x768xf32, #tpu.memory_space<vmem>>, vector<1x8x768xf32>
    %469 = vector.shape_cast %468 : vector<1x8x768xf32> to vector<8x768xf32>
    %470 = vector.extract_strided_slice %469 {offsets = [0, 384], sizes = [8, 384], strides = [1, 1]} : vector<8x768xf32> to vector<8x384xf32>
    %cst_129 = arith.constant dense<0.000000e+00> : vector<8x384xf32>
    %471 = tpu.matmul %404, %10, %cst_129 {dimension_numbers = #tpu.dot_dimension_numbers<[1], [0], [0], [1], [0, 0, 1, 1], [], []>} : vector<8x128xf32>, vector<128x384xf32>, vector<8x384xf32> -> vector<8x384xf32>
    %472 = vector.extract_strided_slice %470 {offsets = [0, 0], sizes = [8, 128], strides = [1, 1]} : vector<8x384xf32> to vector<8x128xf32>
    %473 = vector.extract_strided_slice %471 {offsets = [0, 0], sizes = [8, 128], strides = [1, 1]} : vector<8x384xf32> to vector<8x128xf32>
    %474 = arith.addf %472, %473 : vector<8x128xf32>
    %475 = arith.negf %474 : vector<8x128xf32>
    %476 = math.exp %475 : vector<8x128xf32>
    %cst_130 = arith.constant 1.000000e+00 : f32
    %477 = vector.broadcast %cst_130 : f32 to vector<8x128xf32>
    %478 = arith.addf %477, %476 : vector<8x128xf32>
    %479 = arith.divf %477, %478 : vector<8x128xf32>
    %480 = vector.extract_strided_slice %470 {offsets = [0, 128], sizes = [8, 128], strides = [1, 1]} : vector<8x384xf32> to vector<8x128xf32>
    %481 = vector.extract_strided_slice %471 {offsets = [0, 128], sizes = [8, 128], strides = [1, 1]} : vector<8x384xf32> to vector<8x128xf32>
    %482 = arith.addf %480, %481 : vector<8x128xf32>
    %483 = arith.negf %482 : vector<8x128xf32>
    %484 = math.exp %483 : vector<8x128xf32>
    %cst_131 = arith.constant 1.000000e+00 : f32
    %485 = vector.broadcast %cst_131 : f32 to vector<8x128xf32>
    %486 = arith.addf %485, %484 : vector<8x128xf32>
    %487 = arith.divf %485, %486 : vector<8x128xf32>
    %488 = vector.extract_strided_slice %470 {offsets = [0, 256], sizes = [8, 128], strides = [1, 1]} : vector<8x384xf32> to vector<8x128xf32>
    %489 = vector.extract_strided_slice %471 {offsets = [0, 256], sizes = [8, 128], strides = [1, 1]} : vector<8x384xf32> to vector<8x128xf32>
    %490 = arith.addf %489, %16 : vector<8x128xf32>
    %491 = arith.mulf %479, %490 : vector<8x128xf32>
    %492 = arith.addf %488, %491 : vector<8x128xf32>
    %493 = math.tanh %492 : vector<8x128xf32>
    %cst_132 = arith.constant 1.000000e+00 : f32
    %494 = vector.broadcast %cst_132 : f32 to vector<8x128xf32>
    %495 = arith.subf %494, %487 : vector<8x128xf32>
    %496 = arith.mulf %495, %493 : vector<8x128xf32>
    %497 = arith.mulf %487, %404 : vector<8x128xf32>
    %498 = arith.addf %496, %497 : vector<8x128xf32>
    %499 = vector.broadcast %417 : i32 to vector<8x1xi32>
    %500 = arith.cmpi slt, %499, %17 : vector<8x1xi32>
    %501 = vector.shape_cast %500 : vector<8x1xi1> to vector<8x1xi1>
    %502 = vector.broadcast %501 : vector<8x1xi1> to vector<8x128xi1>
    %503 = arith.select %502, %498, %404 : vector<8x128xi1>, vector<8x128xf32>
    %504 = arith.index_cast %417 : i32 to index
    %c0_133 = arith.constant 0 : index
    %c0_134 = arith.constant 0 : index
    %505 = vector.load %arg8[%504, %c0_133, %c0_134] : memref<8x8x128xf32, #tpu.memory_space<vmem>>, vector<1x8x128xf32>
    %506 = vector.shape_cast %505 : vector<1x8x128xf32> to vector<8x128xf32>
    %cst_135 = arith.constant 0.000000e+00 : f32
    %507 = vector.shape_cast %500 : vector<8x1xi1> to vector<8x1xi1>
    %508 = vector.broadcast %507 : vector<8x1xi1> to vector<8x128xi1>
    %509 = vector.broadcast %cst_135 : f32 to vector<8x128xf32>
    %510 = arith.select %508, %498, %509 : vector<8x128xi1>, vector<8x128xf32>
    %511 = arith.addf %506, %510 : vector<8x128xf32>
    %512 = arith.index_cast %417 : i32 to index
    %c0_136 = arith.constant 0 : index
    %c0_137 = arith.constant 0 : index
    %513 = vector.load %arg8[%512, %c0_136, %c0_137] : memref<8x8x128xf32, #tpu.memory_space<vmem>>, vector<1x8x128xf32>
    %514 = vector.shape_cast %513 : vector<1x8x128xf32> to vector<8x128xf32>
    %515 = vector.shape_cast %511 : vector<8x128xf32> to vector<1x8x128xf32>
    tpu.vector_store %arg8[%512, %c0_136, %c0_137], %515 {strides = array<i32>} : memref<8x8x128xf32, #tpu.memory_space<vmem>>, vector<1x8x128xf32>,
    %c5_i32 = arith.constant 5 : i32
    %c7_i32_138 = arith.constant 7 : i32
    %516 = arith.subi %c7_i32_138, %c5_i32 : i32
    %517 = arith.index_cast %c5_i32 : i32 to index
    %c0_139 = arith.constant 0 : index
    %c0_140 = arith.constant 0 : index
    %518 = vector.load %arg10[%517, %c0_139, %c0_140] : memref<8x8x768xf32, #tpu.memory_space<vmem>>, vector<1x8x768xf32>
    %519 = vector.shape_cast %518 : vector<1x8x768xf32> to vector<8x768xf32>
    %520 = vector.extract_strided_slice %519 {offsets = [0, 0], sizes = [8, 384], strides = [1, 1]} : vector<8x768xf32> to vector<8x384xf32>
    %cst_141 = arith.constant dense<0.000000e+00> : vector<8x384xf32>
    %521 = tpu.matmul %454, %9, %cst_141 {dimension_numbers = #tpu.dot_dimension_numbers<[1], [0], [0], [1], [0, 0, 1, 1], [], []>} : vector<8x128xf32>, vector<128x384xf32>, vector<8x384xf32> -> vector<8x384xf32>
    %522 = vector.extract_strided_slice %520 {offsets = [0, 0], sizes = [8, 128], strides = [1, 1]} : vector<8x384xf32> to vector<8x128xf32>
    %523 = vector.extract_strided_slice %521 {offsets = [0, 0], sizes = [8, 128], strides = [1, 1]} : vector<8x384xf32> to vector<8x128xf32>
    %524 = arith.addf %522, %523 : vector<8x128xf32>
    %525 = arith.negf %524 : vector<8x128xf32>
    %526 = math.exp %525 : vector<8x128xf32>
    %cst_142 = arith.constant 1.000000e+00 : f32
    %527 = vector.broadcast %cst_142 : f32 to vector<8x128xf32>
    %528 = arith.addf %527, %526 : vector<8x128xf32>
    %529 = arith.divf %527, %528 : vector<8x128xf32>
    %530 = vector.extract_strided_slice %520 {offsets = [0, 128], sizes = [8, 128], strides = [1, 1]} : vector<8x384xf32> to vector<8x128xf32>
    %531 = vector.extract_strided_slice %521 {offsets = [0, 128], sizes = [8, 128], strides = [1, 1]} : vector<8x384xf32> to vector<8x128xf32>
    %532 = arith.addf %530, %531 : vector<8x128xf32>
    %533 = arith.negf %532 : vector<8x128xf32>
    %534 = math.exp %533 : vector<8x128xf32>
    %cst_143 = arith.constant 1.000000e+00 : f32
    %535 = vector.broadcast %cst_143 : f32 to vector<8x128xf32>
    %536 = arith.addf %535, %534 : vector<8x128xf32>
    %537 = arith.divf %535, %536 : vector<8x128xf32>
    %538 = vector.extract_strided_slice %520 {offsets = [0, 256], sizes = [8, 128], strides = [1, 1]} : vector<8x384xf32> to vector<8x128xf32>
    %539 = vector.extract_strided_slice %521 {offsets = [0, 256], sizes = [8, 128], strides = [1, 1]} : vector<8x384xf32> to vector<8x128xf32>
    %540 = arith.addf %539, %13 : vector<8x128xf32>
    %541 = arith.mulf %529, %540 : vector<8x128xf32>
    %542 = arith.addf %538, %541 : vector<8x128xf32>
    %543 = math.tanh %542 : vector<8x128xf32>
    %cst_144 = arith.constant 1.000000e+00 : f32
    %544 = vector.broadcast %cst_144 : f32 to vector<8x128xf32>
    %545 = arith.subf %544, %537 : vector<8x128xf32>
    %546 = arith.mulf %545, %543 : vector<8x128xf32>
    %547 = arith.mulf %537, %454 : vector<8x128xf32>
    %548 = arith.addf %546, %547 : vector<8x128xf32>
    %549 = vector.broadcast %c5_i32 : i32 to vector<8x1xi32>
    %550 = arith.cmpi slt, %549, %17 : vector<8x1xi32>
    %551 = vector.shape_cast %550 : vector<8x1xi1> to vector<8x1xi1>
    %552 = vector.broadcast %551 : vector<8x1xi1> to vector<8x128xi1>
    %553 = arith.select %552, %548, %454 : vector<8x128xi1>, vector<8x128xf32>
    %554 = arith.index_cast %c5_i32 : i32 to index
    %c0_145 = arith.constant 0 : index
    %c0_146 = arith.constant 0 : index
    %555 = vector.load %arg8[%554, %c0_145, %c0_146] : memref<8x8x128xf32, #tpu.memory_space<vmem>>, vector<1x8x128xf32>
    %556 = vector.shape_cast %555 : vector<1x8x128xf32> to vector<8x128xf32>
    %cst_147 = arith.constant 0.000000e+00 : f32
    %557 = vector.shape_cast %550 : vector<8x1xi1> to vector<8x1xi1>
    %558 = vector.broadcast %557 : vector<8x1xi1> to vector<8x128xi1>
    %559 = vector.broadcast %cst_147 : f32 to vector<8x128xf32>
    %560 = arith.select %558, %548, %559 : vector<8x128xi1>, vector<8x128xf32>
    %561 = arith.addf %556, %560 : vector<8x128xf32>
    %562 = arith.index_cast %c5_i32 : i32 to index
    %c0_148 = arith.constant 0 : index
    %c0_149 = arith.constant 0 : index
    %563 = vector.load %arg8[%562, %c0_148, %c0_149] : memref<8x8x128xf32, #tpu.memory_space<vmem>>, vector<1x8x128xf32>
    %564 = vector.shape_cast %563 : vector<1x8x128xf32> to vector<8x128xf32>
    %565 = vector.shape_cast %561 : vector<8x128xf32> to vector<1x8x128xf32>
    tpu.vector_store %arg8[%562, %c0_148, %c0_149], %565 {strides = array<i32>} : memref<8x8x128xf32, #tpu.memory_space<vmem>>, vector<1x8x128xf32>,
    %566 = arith.index_cast %516 : i32 to index
    %c0_150 = arith.constant 0 : index
    %c0_151 = arith.constant 0 : index
    %567 = vector.load %arg10[%566, %c0_150, %c0_151] : memref<8x8x768xf32, #tpu.memory_space<vmem>>, vector<1x8x768xf32>
    %568 = vector.shape_cast %567 : vector<1x8x768xf32> to vector<8x768xf32>
    %569 = vector.extract_strided_slice %568 {offsets = [0, 384], sizes = [8, 384], strides = [1, 1]} : vector<8x768xf32> to vector<8x384xf32>
    %cst_152 = arith.constant dense<0.000000e+00> : vector<8x384xf32>
    %570 = tpu.matmul %503, %10, %cst_152 {dimension_numbers = #tpu.dot_dimension_numbers<[1], [0], [0], [1], [0, 0, 1, 1], [], []>} : vector<8x128xf32>, vector<128x384xf32>, vector<8x384xf32> -> vector<8x384xf32>
    %571 = vector.extract_strided_slice %569 {offsets = [0, 0], sizes = [8, 128], strides = [1, 1]} : vector<8x384xf32> to vector<8x128xf32>
    %572 = vector.extract_strided_slice %570 {offsets = [0, 0], sizes = [8, 128], strides = [1, 1]} : vector<8x384xf32> to vector<8x128xf32>
    %573 = arith.addf %571, %572 : vector<8x128xf32>
    %574 = arith.negf %573 : vector<8x128xf32>
    %575 = math.exp %574 : vector<8x128xf32>
    %cst_153 = arith.constant 1.000000e+00 : f32
    %576 = vector.broadcast %cst_153 : f32 to vector<8x128xf32>
    %577 = arith.addf %576, %575 : vector<8x128xf32>
    %578 = arith.divf %576, %577 : vector<8x128xf32>
    %579 = vector.extract_strided_slice %569 {offsets = [0, 128], sizes = [8, 128], strides = [1, 1]} : vector<8x384xf32> to vector<8x128xf32>
    %580 = vector.extract_strided_slice %570 {offsets = [0, 128], sizes = [8, 128], strides = [1, 1]} : vector<8x384xf32> to vector<8x128xf32>
    %581 = arith.addf %579, %580 : vector<8x128xf32>
    %582 = arith.negf %581 : vector<8x128xf32>
    %583 = math.exp %582 : vector<8x128xf32>
    %cst_154 = arith.constant 1.000000e+00 : f32
    %584 = vector.broadcast %cst_154 : f32 to vector<8x128xf32>
    %585 = arith.addf %584, %583 : vector<8x128xf32>
    %586 = arith.divf %584, %585 : vector<8x128xf32>
    %587 = vector.extract_strided_slice %569 {offsets = [0, 256], sizes = [8, 128], strides = [1, 1]} : vector<8x384xf32> to vector<8x128xf32>
    %588 = vector.extract_strided_slice %570 {offsets = [0, 256], sizes = [8, 128], strides = [1, 1]} : vector<8x384xf32> to vector<8x128xf32>
    %589 = arith.addf %588, %16 : vector<8x128xf32>
    %590 = arith.mulf %578, %589 : vector<8x128xf32>
    %591 = arith.addf %587, %590 : vector<8x128xf32>
    %592 = math.tanh %591 : vector<8x128xf32>
    %cst_155 = arith.constant 1.000000e+00 : f32
    %593 = vector.broadcast %cst_155 : f32 to vector<8x128xf32>
    %594 = arith.subf %593, %586 : vector<8x128xf32>
    %595 = arith.mulf %594, %592 : vector<8x128xf32>
    %596 = arith.mulf %586, %503 : vector<8x128xf32>
    %597 = arith.addf %595, %596 : vector<8x128xf32>
    %598 = vector.broadcast %516 : i32 to vector<8x1xi32>
    %599 = arith.cmpi slt, %598, %17 : vector<8x1xi32>
    %600 = vector.shape_cast %599 : vector<8x1xi1> to vector<8x1xi1>
    %601 = vector.broadcast %600 : vector<8x1xi1> to vector<8x128xi1>
    %602 = arith.select %601, %597, %503 : vector<8x128xi1>, vector<8x128xf32>
    %603 = arith.index_cast %516 : i32 to index
    %c0_156 = arith.constant 0 : index
    %c0_157 = arith.constant 0 : index
    %604 = vector.load %arg8[%603, %c0_156, %c0_157] : memref<8x8x128xf32, #tpu.memory_space<vmem>>, vector<1x8x128xf32>
    %605 = vector.shape_cast %604 : vector<1x8x128xf32> to vector<8x128xf32>
    %cst_158 = arith.constant 0.000000e+00 : f32
    %606 = vector.shape_cast %599 : vector<8x1xi1> to vector<8x1xi1>
    %607 = vector.broadcast %606 : vector<8x1xi1> to vector<8x128xi1>
    %608 = vector.broadcast %cst_158 : f32 to vector<8x128xf32>
    %609 = arith.select %607, %597, %608 : vector<8x128xi1>, vector<8x128xf32>
    %610 = arith.addf %605, %609 : vector<8x128xf32>
    %611 = arith.index_cast %516 : i32 to index
    %c0_159 = arith.constant 0 : index
    %c0_160 = arith.constant 0 : index
    %612 = vector.load %arg8[%611, %c0_159, %c0_160] : memref<8x8x128xf32, #tpu.memory_space<vmem>>, vector<1x8x128xf32>
    %613 = vector.shape_cast %612 : vector<1x8x128xf32> to vector<8x128xf32>
    %614 = vector.shape_cast %610 : vector<8x128xf32> to vector<1x8x128xf32>
    tpu.vector_store %arg8[%611, %c0_159, %c0_160], %614 {strides = array<i32>} : memref<8x8x128xf32, #tpu.memory_space<vmem>>, vector<1x8x128xf32>,
    %c6_i32 = arith.constant 6 : i32
    %c7_i32_161 = arith.constant 7 : i32
    %615 = arith.subi %c7_i32_161, %c6_i32 : i32
    %616 = arith.index_cast %c6_i32 : i32 to index
    %c0_162 = arith.constant 0 : index
    %c0_163 = arith.constant 0 : index
    %617 = vector.load %arg10[%616, %c0_162, %c0_163] : memref<8x8x768xf32, #tpu.memory_space<vmem>>, vector<1x8x768xf32>
    %618 = vector.shape_cast %617 : vector<1x8x768xf32> to vector<8x768xf32>
    %619 = vector.extract_strided_slice %618 {offsets = [0, 0], sizes = [8, 384], strides = [1, 1]} : vector<8x768xf32> to vector<8x384xf32>
    %cst_164 = arith.constant dense<0.000000e+00> : vector<8x384xf32>
    %620 = tpu.matmul %553, %9, %cst_164 {dimension_numbers = #tpu.dot_dimension_numbers<[1], [0], [0], [1], [0, 0, 1, 1], [], []>} : vector<8x128xf32>, vector<128x384xf32>, vector<8x384xf32> -> vector<8x384xf32>
    %621 = vector.extract_strided_slice %619 {offsets = [0, 0], sizes = [8, 128], strides = [1, 1]} : vector<8x384xf32> to vector<8x128xf32>
    %622 = vector.extract_strided_slice %620 {offsets = [0, 0], sizes = [8, 128], strides = [1, 1]} : vector<8x384xf32> to vector<8x128xf32>
    %623 = arith.addf %621, %622 : vector<8x128xf32>
    %624 = arith.negf %623 : vector<8x128xf32>
    %625 = math.exp %624 : vector<8x128xf32>
    %cst_165 = arith.constant 1.000000e+00 : f32
    %626 = vector.broadcast %cst_165 : f32 to vector<8x128xf32>
    %627 = arith.addf %626, %625 : vector<8x128xf32>
    %628 = arith.divf %626, %627 : vector<8x128xf32>
    %629 = vector.extract_strided_slice %619 {offsets = [0, 128], sizes = [8, 128], strides = [1, 1]} : vector<8x384xf32> to vector<8x128xf32>
    %630 = vector.extract_strided_slice %620 {offsets = [0, 128], sizes = [8, 128], strides = [1, 1]} : vector<8x384xf32> to vector<8x128xf32>
    %631 = arith.addf %629, %630 : vector<8x128xf32>
    %632 = arith.negf %631 : vector<8x128xf32>
    %633 = math.exp %632 : vector<8x128xf32>
    %cst_166 = arith.constant 1.000000e+00 : f32
    %634 = vector.broadcast %cst_166 : f32 to vector<8x128xf32>
    %635 = arith.addf %634, %633 : vector<8x128xf32>
    %636 = arith.divf %634, %635 : vector<8x128xf32>
    %637 = vector.extract_strided_slice %619 {offsets = [0, 256], sizes = [8, 128], strides = [1, 1]} : vector<8x384xf32> to vector<8x128xf32>
    %638 = vector.extract_strided_slice %620 {offsets = [0, 256], sizes = [8, 128], strides = [1, 1]} : vector<8x384xf32> to vector<8x128xf32>
    %639 = arith.addf %638, %13 : vector<8x128xf32>
    %640 = arith.mulf %628, %639 : vector<8x128xf32>
    %641 = arith.addf %637, %640 : vector<8x128xf32>
    %642 = math.tanh %641 : vector<8x128xf32>
    %cst_167 = arith.constant 1.000000e+00 : f32
    %643 = vector.broadcast %cst_167 : f32 to vector<8x128xf32>
    %644 = arith.subf %643, %636 : vector<8x128xf32>
    %645 = arith.mulf %644, %642 : vector<8x128xf32>
    %646 = arith.mulf %636, %553 : vector<8x128xf32>
    %647 = arith.addf %645, %646 : vector<8x128xf32>
    %648 = vector.broadcast %c6_i32 : i32 to vector<8x1xi32>
    %649 = arith.cmpi slt, %648, %17 : vector<8x1xi32>
    %650 = vector.shape_cast %649 : vector<8x1xi1> to vector<8x1xi1>
    %651 = vector.broadcast %650 : vector<8x1xi1> to vector<8x128xi1>
    %652 = arith.select %651, %647, %553 : vector<8x128xi1>, vector<8x128xf32>
    %653 = arith.index_cast %c6_i32 : i32 to index
    %c0_168 = arith.constant 0 : index
    %c0_169 = arith.constant 0 : index
    %654 = vector.load %arg8[%653, %c0_168, %c0_169] : memref<8x8x128xf32, #tpu.memory_space<vmem>>, vector<1x8x128xf32>
    %655 = vector.shape_cast %654 : vector<1x8x128xf32> to vector<8x128xf32>
    %cst_170 = arith.constant 0.000000e+00 : f32
    %656 = vector.shape_cast %649 : vector<8x1xi1> to vector<8x1xi1>
    %657 = vector.broadcast %656 : vector<8x1xi1> to vector<8x128xi1>
    %658 = vector.broadcast %cst_170 : f32 to vector<8x128xf32>
    %659 = arith.select %657, %647, %658 : vector<8x128xi1>, vector<8x128xf32>
    %660 = arith.addf %655, %659 : vector<8x128xf32>
    %661 = arith.index_cast %c6_i32 : i32 to index
    %c0_171 = arith.constant 0 : index
    %c0_172 = arith.constant 0 : index
    %662 = vector.load %arg8[%661, %c0_171, %c0_172] : memref<8x8x128xf32, #tpu.memory_space<vmem>>, vector<1x8x128xf32>
    %663 = vector.shape_cast %662 : vector<1x8x128xf32> to vector<8x128xf32>
    %664 = vector.shape_cast %660 : vector<8x128xf32> to vector<1x8x128xf32>
    tpu.vector_store %arg8[%661, %c0_171, %c0_172], %664 {strides = array<i32>} : memref<8x8x128xf32, #tpu.memory_space<vmem>>, vector<1x8x128xf32>,
    %665 = arith.index_cast %615 : i32 to index
    %c0_173 = arith.constant 0 : index
    %c0_174 = arith.constant 0 : index
    %666 = vector.load %arg10[%665, %c0_173, %c0_174] : memref<8x8x768xf32, #tpu.memory_space<vmem>>, vector<1x8x768xf32>
    %667 = vector.shape_cast %666 : vector<1x8x768xf32> to vector<8x768xf32>
    %668 = vector.extract_strided_slice %667 {offsets = [0, 384], sizes = [8, 384], strides = [1, 1]} : vector<8x768xf32> to vector<8x384xf32>
    %cst_175 = arith.constant dense<0.000000e+00> : vector<8x384xf32>
    %669 = tpu.matmul %602, %10, %cst_175 {dimension_numbers = #tpu.dot_dimension_numbers<[1], [0], [0], [1], [0, 0, 1, 1], [], []>} : vector<8x128xf32>, vector<128x384xf32>, vector<8x384xf32> -> vector<8x384xf32>
    %670 = vector.extract_strided_slice %668 {offsets = [0, 0], sizes = [8, 128], strides = [1, 1]} : vector<8x384xf32> to vector<8x128xf32>
    %671 = vector.extract_strided_slice %669 {offsets = [0, 0], sizes = [8, 128], strides = [1, 1]} : vector<8x384xf32> to vector<8x128xf32>
    %672 = arith.addf %670, %671 : vector<8x128xf32>
    %673 = arith.negf %672 : vector<8x128xf32>
    %674 = math.exp %673 : vector<8x128xf32>
    %cst_176 = arith.constant 1.000000e+00 : f32
    %675 = vector.broadcast %cst_176 : f32 to vector<8x128xf32>
    %676 = arith.addf %675, %674 : vector<8x128xf32>
    %677 = arith.divf %675, %676 : vector<8x128xf32>
    %678 = vector.extract_strided_slice %668 {offsets = [0, 128], sizes = [8, 128], strides = [1, 1]} : vector<8x384xf32> to vector<8x128xf32>
    %679 = vector.extract_strided_slice %669 {offsets = [0, 128], sizes = [8, 128], strides = [1, 1]} : vector<8x384xf32> to vector<8x128xf32>
    %680 = arith.addf %678, %679 : vector<8x128xf32>
    %681 = arith.negf %680 : vector<8x128xf32>
    %682 = math.exp %681 : vector<8x128xf32>
    %cst_177 = arith.constant 1.000000e+00 : f32
    %683 = vector.broadcast %cst_177 : f32 to vector<8x128xf32>
    %684 = arith.addf %683, %682 : vector<8x128xf32>
    %685 = arith.divf %683, %684 : vector<8x128xf32>
    %686 = vector.extract_strided_slice %668 {offsets = [0, 256], sizes = [8, 128], strides = [1, 1]} : vector<8x384xf32> to vector<8x128xf32>
    %687 = vector.extract_strided_slice %669 {offsets = [0, 256], sizes = [8, 128], strides = [1, 1]} : vector<8x384xf32> to vector<8x128xf32>
    %688 = arith.addf %687, %16 : vector<8x128xf32>
    %689 = arith.mulf %677, %688 : vector<8x128xf32>
    %690 = arith.addf %686, %689 : vector<8x128xf32>
    %691 = math.tanh %690 : vector<8x128xf32>
    %cst_178 = arith.constant 1.000000e+00 : f32
    %692 = vector.broadcast %cst_178 : f32 to vector<8x128xf32>
    %693 = arith.subf %692, %685 : vector<8x128xf32>
    %694 = arith.mulf %693, %691 : vector<8x128xf32>
    %695 = arith.mulf %685, %602 : vector<8x128xf32>
    %696 = arith.addf %694, %695 : vector<8x128xf32>
    %697 = vector.broadcast %615 : i32 to vector<8x1xi32>
    %698 = arith.cmpi slt, %697, %17 : vector<8x1xi32>
    %699 = vector.shape_cast %698 : vector<8x1xi1> to vector<8x1xi1>
    %700 = vector.broadcast %699 : vector<8x1xi1> to vector<8x128xi1>
    %701 = arith.select %700, %696, %602 : vector<8x128xi1>, vector<8x128xf32>
    %702 = arith.index_cast %615 : i32 to index
    %c0_179 = arith.constant 0 : index
    %c0_180 = arith.constant 0 : index
    %703 = vector.load %arg8[%702, %c0_179, %c0_180] : memref<8x8x128xf32, #tpu.memory_space<vmem>>, vector<1x8x128xf32>
    %704 = vector.shape_cast %703 : vector<1x8x128xf32> to vector<8x128xf32>
    %cst_181 = arith.constant 0.000000e+00 : f32
    %705 = vector.shape_cast %698 : vector<8x1xi1> to vector<8x1xi1>
    %706 = vector.broadcast %705 : vector<8x1xi1> to vector<8x128xi1>
    %707 = vector.broadcast %cst_181 : f32 to vector<8x128xf32>
    %708 = arith.select %706, %696, %707 : vector<8x128xi1>, vector<8x128xf32>
    %709 = arith.addf %704, %708 : vector<8x128xf32>
    %710 = arith.index_cast %615 : i32 to index
    %c0_182 = arith.constant 0 : index
    %c0_183 = arith.constant 0 : index
    %711 = vector.load %arg8[%710, %c0_182, %c0_183] : memref<8x8x128xf32, #tpu.memory_space<vmem>>, vector<1x8x128xf32>
    %712 = vector.shape_cast %711 : vector<1x8x128xf32> to vector<8x128xf32>
    %713 = vector.shape_cast %709 : vector<8x128xf32> to vector<1x8x128xf32>
    tpu.vector_store %arg8[%710, %c0_182, %c0_183], %713 {strides = array<i32>} : memref<8x8x128xf32, #tpu.memory_space<vmem>>, vector<1x8x128xf32>,
    %c7_i32_184 = arith.constant 7 : i32
    %c7_i32_185 = arith.constant 7 : i32
    %714 = arith.subi %c7_i32_185, %c7_i32_184 : i32
    %715 = arith.index_cast %c7_i32_184 : i32 to index
    %c0_186 = arith.constant 0 : index
    %c0_187 = arith.constant 0 : index
    %716 = vector.load %arg10[%715, %c0_186, %c0_187] : memref<8x8x768xf32, #tpu.memory_space<vmem>>, vector<1x8x768xf32>
    %717 = vector.shape_cast %716 : vector<1x8x768xf32> to vector<8x768xf32>
    %718 = vector.extract_strided_slice %717 {offsets = [0, 0], sizes = [8, 384], strides = [1, 1]} : vector<8x768xf32> to vector<8x384xf32>
    %cst_188 = arith.constant dense<0.000000e+00> : vector<8x384xf32>
    %719 = tpu.matmul %652, %9, %cst_188 {dimension_numbers = #tpu.dot_dimension_numbers<[1], [0], [0], [1], [0, 0, 1, 1], [], []>} : vector<8x128xf32>, vector<128x384xf32>, vector<8x384xf32> -> vector<8x384xf32>
    %720 = vector.extract_strided_slice %718 {offsets = [0, 0], sizes = [8, 128], strides = [1, 1]} : vector<8x384xf32> to vector<8x128xf32>
    %721 = vector.extract_strided_slice %719 {offsets = [0, 0], sizes = [8, 128], strides = [1, 1]} : vector<8x384xf32> to vector<8x128xf32>
    %722 = arith.addf %720, %721 : vector<8x128xf32>
    %723 = arith.negf %722 : vector<8x128xf32>
    %724 = math.exp %723 : vector<8x128xf32>
    %cst_189 = arith.constant 1.000000e+00 : f32
    %725 = vector.broadcast %cst_189 : f32 to vector<8x128xf32>
    %726 = arith.addf %725, %724 : vector<8x128xf32>
    %727 = arith.divf %725, %726 : vector<8x128xf32>
    %728 = vector.extract_strided_slice %718 {offsets = [0, 128], sizes = [8, 128], strides = [1, 1]} : vector<8x384xf32> to vector<8x128xf32>
    %729 = vector.extract_strided_slice %719 {offsets = [0, 128], sizes = [8, 128], strides = [1, 1]} : vector<8x384xf32> to vector<8x128xf32>
    %730 = arith.addf %728, %729 : vector<8x128xf32>
    %731 = arith.negf %730 : vector<8x128xf32>
    %732 = math.exp %731 : vector<8x128xf32>
    %cst_190 = arith.constant 1.000000e+00 : f32
    %733 = vector.broadcast %cst_190 : f32 to vector<8x128xf32>
    %734 = arith.addf %733, %732 : vector<8x128xf32>
    %735 = arith.divf %733, %734 : vector<8x128xf32>
    %736 = vector.extract_strided_slice %718 {offsets = [0, 256], sizes = [8, 128], strides = [1, 1]} : vector<8x384xf32> to vector<8x128xf32>
    %737 = vector.extract_strided_slice %719 {offsets = [0, 256], sizes = [8, 128], strides = [1, 1]} : vector<8x384xf32> to vector<8x128xf32>
    %738 = arith.addf %737, %13 : vector<8x128xf32>
    %739 = arith.mulf %727, %738 : vector<8x128xf32>
    %740 = arith.addf %736, %739 : vector<8x128xf32>
    %741 = math.tanh %740 : vector<8x128xf32>
    %cst_191 = arith.constant 1.000000e+00 : f32
    %742 = vector.broadcast %cst_191 : f32 to vector<8x128xf32>
    %743 = arith.subf %742, %735 : vector<8x128xf32>
    %744 = arith.mulf %743, %741 : vector<8x128xf32>
    %745 = arith.mulf %735, %652 : vector<8x128xf32>
    %746 = arith.addf %744, %745 : vector<8x128xf32>
    %747 = vector.broadcast %c7_i32_184 : i32 to vector<8x1xi32>
    %748 = arith.cmpi slt, %747, %17 : vector<8x1xi32>
    %749 = vector.shape_cast %748 : vector<8x1xi1> to vector<8x1xi1>
    %750 = vector.broadcast %749 : vector<8x1xi1> to vector<8x128xi1>
    %751 = arith.select %750, %746, %652 : vector<8x128xi1>, vector<8x128xf32>
    %752 = arith.index_cast %c7_i32_184 : i32 to index
    %c0_192 = arith.constant 0 : index
    %c0_193 = arith.constant 0 : index
    %753 = vector.load %arg8[%752, %c0_192, %c0_193] : memref<8x8x128xf32, #tpu.memory_space<vmem>>, vector<1x8x128xf32>
    %754 = vector.shape_cast %753 : vector<1x8x128xf32> to vector<8x128xf32>
    %cst_194 = arith.constant 0.000000e+00 : f32
    %755 = vector.shape_cast %748 : vector<8x1xi1> to vector<8x1xi1>
    %756 = vector.broadcast %755 : vector<8x1xi1> to vector<8x128xi1>
    %757 = vector.broadcast %cst_194 : f32 to vector<8x128xf32>
    %758 = arith.select %756, %746, %757 : vector<8x128xi1>, vector<8x128xf32>
    %759 = arith.addf %754, %758 : vector<8x128xf32>
    %760 = arith.index_cast %c7_i32_184 : i32 to index
    %c0_195 = arith.constant 0 : index
    %c0_196 = arith.constant 0 : index
    %761 = vector.load %arg8[%760, %c0_195, %c0_196] : memref<8x8x128xf32, #tpu.memory_space<vmem>>, vector<1x8x128xf32>
    %762 = vector.shape_cast %761 : vector<1x8x128xf32> to vector<8x128xf32>
    %763 = vector.shape_cast %759 : vector<8x128xf32> to vector<1x8x128xf32>
    tpu.vector_store %arg8[%760, %c0_195, %c0_196], %763 {strides = array<i32>} : memref<8x8x128xf32, #tpu.memory_space<vmem>>, vector<1x8x128xf32>,
    %764 = arith.index_cast %714 : i32 to index
    %c0_197 = arith.constant 0 : index
    %c0_198 = arith.constant 0 : index
    %765 = vector.load %arg10[%764, %c0_197, %c0_198] : memref<8x8x768xf32, #tpu.memory_space<vmem>>, vector<1x8x768xf32>
    %766 = vector.shape_cast %765 : vector<1x8x768xf32> to vector<8x768xf32>
    %767 = vector.extract_strided_slice %766 {offsets = [0, 384], sizes = [8, 384], strides = [1, 1]} : vector<8x768xf32> to vector<8x384xf32>
    %cst_199 = arith.constant dense<0.000000e+00> : vector<8x384xf32>
    %768 = tpu.matmul %701, %10, %cst_199 {dimension_numbers = #tpu.dot_dimension_numbers<[1], [0], [0], [1], [0, 0, 1, 1], [], []>} : vector<8x128xf32>, vector<128x384xf32>, vector<8x384xf32> -> vector<8x384xf32>
    %769 = vector.extract_strided_slice %767 {offsets = [0, 0], sizes = [8, 128], strides = [1, 1]} : vector<8x384xf32> to vector<8x128xf32>
    %770 = vector.extract_strided_slice %768 {offsets = [0, 0], sizes = [8, 128], strides = [1, 1]} : vector<8x384xf32> to vector<8x128xf32>
    %771 = arith.addf %769, %770 : vector<8x128xf32>
    %772 = arith.negf %771 : vector<8x128xf32>
    %773 = math.exp %772 : vector<8x128xf32>
    %cst_200 = arith.constant 1.000000e+00 : f32
    %774 = vector.broadcast %cst_200 : f32 to vector<8x128xf32>
    %775 = arith.addf %774, %773 : vector<8x128xf32>
    %776 = arith.divf %774, %775 : vector<8x128xf32>
    %777 = vector.extract_strided_slice %767 {offsets = [0, 128], sizes = [8, 128], strides = [1, 1]} : vector<8x384xf32> to vector<8x128xf32>
    %778 = vector.extract_strided_slice %768 {offsets = [0, 128], sizes = [8, 128], strides = [1, 1]} : vector<8x384xf32> to vector<8x128xf32>
    %779 = arith.addf %777, %778 : vector<8x128xf32>
    %780 = arith.negf %779 : vector<8x128xf32>
    %781 = math.exp %780 : vector<8x128xf32>
    %cst_201 = arith.constant 1.000000e+00 : f32
    %782 = vector.broadcast %cst_201 : f32 to vector<8x128xf32>
    %783 = arith.addf %782, %781 : vector<8x128xf32>
    %784 = arith.divf %782, %783 : vector<8x128xf32>
    %785 = vector.extract_strided_slice %767 {offsets = [0, 256], sizes = [8, 128], strides = [1, 1]} : vector<8x384xf32> to vector<8x128xf32>
    %786 = vector.extract_strided_slice %768 {offsets = [0, 256], sizes = [8, 128], strides = [1, 1]} : vector<8x384xf32> to vector<8x128xf32>
    %787 = arith.addf %786, %16 : vector<8x128xf32>
    %788 = arith.mulf %776, %787 : vector<8x128xf32>
    %789 = arith.addf %785, %788 : vector<8x128xf32>
    %790 = math.tanh %789 : vector<8x128xf32>
    %cst_202 = arith.constant 1.000000e+00 : f32
    %791 = vector.broadcast %cst_202 : f32 to vector<8x128xf32>
    %792 = arith.subf %791, %784 : vector<8x128xf32>
    %793 = arith.mulf %792, %790 : vector<8x128xf32>
    %794 = arith.mulf %784, %701 : vector<8x128xf32>
    %795 = arith.addf %793, %794 : vector<8x128xf32>
    %796 = vector.broadcast %714 : i32 to vector<8x1xi32>
    %797 = arith.cmpi slt, %796, %17 : vector<8x1xi32>
    %798 = vector.shape_cast %797 : vector<8x1xi1> to vector<8x1xi1>
    %799 = vector.broadcast %798 : vector<8x1xi1> to vector<8x128xi1>
    %800 = arith.select %799, %795, %701 : vector<8x128xi1>, vector<8x128xf32>
    %801 = arith.index_cast %714 : i32 to index
    %c0_203 = arith.constant 0 : index
    %c0_204 = arith.constant 0 : index
    %802 = vector.load %arg8[%801, %c0_203, %c0_204] : memref<8x8x128xf32, #tpu.memory_space<vmem>>, vector<1x8x128xf32>
    %803 = vector.shape_cast %802 : vector<1x8x128xf32> to vector<8x128xf32>
    %cst_205 = arith.constant 0.000000e+00 : f32
    %804 = vector.shape_cast %797 : vector<8x1xi1> to vector<8x1xi1>
    %805 = vector.broadcast %804 : vector<8x1xi1> to vector<8x128xi1>
    %806 = vector.broadcast %cst_205 : f32 to vector<8x128xf32>
    %807 = arith.select %805, %795, %806 : vector<8x128xi1>, vector<8x128xf32>
    %808 = arith.addf %803, %807 : vector<8x128xf32>
    %809 = arith.index_cast %714 : i32 to index
    %c0_206 = arith.constant 0 : index
    %c0_207 = arith.constant 0 : index
    %810 = vector.load %arg8[%809, %c0_206, %c0_207] : memref<8x8x128xf32, #tpu.memory_space<vmem>>, vector<1x8x128xf32>
    %811 = vector.shape_cast %810 : vector<1x8x128xf32> to vector<8x128xf32>
    %812 = vector.shape_cast %808 : vector<8x128xf32> to vector<1x8x128xf32>
    tpu.vector_store %arg8[%809, %c0_206, %c0_207], %812 {strides = array<i32>} : memref<8x8x128xf32, #tpu.memory_space<vmem>>, vector<1x8x128xf32>,
    %c8_i32 = arith.constant 8 : i32
    %c0_208 = arith.constant 0 : index
    %c0_209 = arith.constant 0 : index
    %c0_210 = arith.constant 0 : index
    %813 = vector.load %arg9[%c0_208, %c0_209, %c0_210] : memref<2x8x128xf32, #tpu.memory_space<vmem>>, vector<1x8x128xf32>
    %814 = vector.shape_cast %813 : vector<1x8x128xf32> to vector<8x128xf32>
    %815 = vector.shape_cast %751 : vector<8x128xf32> to vector<1x8x128xf32>
    tpu.vector_store %arg9[%c0_208, %c0_209, %c0_210], %815 {strides = array<i32>} : memref<2x8x128xf32, #tpu.memory_space<vmem>>, vector<1x8x128xf32>,
    %c1 = arith.constant 1 : index
    %c0_211 = arith.constant 0 : index
    %c0_212 = arith.constant 0 : index
    %816 = vector.load %arg9[%c1, %c0_211, %c0_212] : memref<2x8x128xf32, #tpu.memory_space<vmem>>, vector<1x8x128xf32>
    %817 = vector.shape_cast %816 : vector<1x8x128xf32> to vector<8x128xf32>
    %818 = vector.shape_cast %800 : vector<8x128xf32> to vector<1x8x128xf32>
    tpu.vector_store %arg9[%c1, %c0_211, %c0_212], %818 {strides = array<i32>} : memref<2x8x128xf32, #tpu.memory_space<vmem>>, vector<1x8x128xf32>,
    return
  }
}

</mosaic_0001>

<llo_original>
// kernel: encoder_forward.1
$region0: #{encoder_forward.1}
  #allocation0 [shape = 'u32[]', space=smem, size = 0x4, offset = 0x4, fixed_abs, tag = 'smem constant byte address 0x4 - core index']
  #allocation1 [shape = 'u32[144,128]{1,0:T(1,128)}', space=vmem, size = 0x12000, scoped, tag = 'internal scratch']
  #allocation2 [shape = 'f32[8,8,768]{2,1,0:T(8,128)}', space=vmem, size = 0x30000, scoped, tag = 'scratch operand']
  %s0 = inlined_call_operand.vmem [shape: f32[8,8,32], index: 0, kind: input, shape index: {}]
  %s1 = inlined_call_operand.vmem [shape: s32[8,1], index: 1, kind: input, shape index: {}]
  %s2 = inlined_call_operand.vmem [shape: f32[32,768], index: 2, kind: input, shape index: {}]
  %s3 = inlined_call_operand.vmem [shape: f32[128,384], index: 3, kind: input, shape index: {}]
  %s4 = inlined_call_operand.vmem [shape: f32[128,384], index: 4, kind: input, shape index: {}]
  %s5 = inlined_call_operand.vmem [shape: f32[1,768], index: 5, kind: input, shape index: {}]
  %s6 = inlined_call_operand.vmem [shape: f32[1,128], index: 6, kind: input, shape index: {}]
  %s7 = inlined_call_operand.vmem [shape: f32[1,128], index: 7, kind: input, shape index: {}]
  %s8 = inlined_call_operand.hbm [shape: f32[8,8,128], index: 8, kind: output, shape index: {0}]
  %s9 = inlined_call_operand.hbm [shape: f32[2,8,128], index: 9, kind: output, shape index: {1}]
  %10 = xla_tuple %s8, %s9
  %s11 = sld [smem:[#allocation0]]
  $region50: #{encoder_forward.1} parent=0
    _
  %s13 = ssub.s32 1, %s11
  %s14 = scalar_select 0, %s13, %s11
  $region1: #{encoder_forward.1} parent=0
    #allocation3 [shape = 'u8[32768]{0}', space=vmem, size = 0x8000, scoped, tag = 'output window, operand 0, single buffered']
    #allocation4 [shape = 's32[1]{0}', space=sflag, size = 0x4, scoped, tag = 'scoped memory for encoder_forward.1']
    #allocation5 [shape = 'u8[8192]{0}', space=vmem, size = 0x2000, scoped, tag = 'output window, operand 1, single buffered']
    #allocation6 [shape = 's32[1]{0}', space=sflag, size = 0x4, scoped, tag = 'scoped memory for encoder_forward.1']
    %15 = vsyncpa [#allocation4], 0
    %16 = vsyncpa [#allocation6], 0
    // Predicated region
    $region2: #{encoder_forward.1} parent=1 // pred_check
      _
    $region3: #{encoder_forward.1} parent=1 // pred_check_branch
      %18 = sbr.rel (0) target = $region5
    $region4: #{encoder_forward.1} parent=1 // pred_region
      _
    $region5: #{encoder_forward.1} parent=1 // pred_fallthru
      _
    // Predicated region
    $region6: #{encoder_forward.1} parent=1 // pred_check
      _
    $region7: #{encoder_forward.1} parent=1 // pred_check_branch
      %20 = sbr.rel (0) target = $region9
    $region8: #{encoder_forward.1} parent=1 // pred_region
      _
    $region9: #{encoder_forward.1} parent=1 // pred_fallthru
      _
    // Predicated region
    $region10: #{encoder_forward.1} parent=1 // pred_check
      _
    $region11: #{encoder_forward.1} parent=1 // pred_check_branch
      %22 = sbr.rel (0) target = $region13
    $region12: #{encoder_forward.1} parent=1 // pred_region
      _
    $region13: #{encoder_forward.1} parent=1 // pred_fallthru
      _
    // Predicated region
    $region14: #{encoder_forward.1} parent=1 // pred_check
      _
    $region15: #{encoder_forward.1} parent=1 // pred_check_branch
      %24 = sbr.rel (0) target = $region17
    $region16: #{encoder_forward.1} parent=1 // pred_region
      _
    $region17: #{encoder_forward.1} parent=1 // pred_fallthru
      _
    // Predicated region
    $region18: #{encoder_forward.1} parent=1 // pred_check
      _
    $region19: #{encoder_forward.1} parent=1 // pred_check_branch
      %26 = sbr.rel (0) target = $region21
    $region20: #{encoder_forward.1} parent=1 // pred_region
      _
    $region21: #{encoder_forward.1} parent=1 // pred_fallthru
      _
    // Predicated region
    $region22: #{encoder_forward.1} parent=1 // pred_check
      _
    $region23: #{encoder_forward.1} parent=1 // pred_check_branch
      %28 = sbr.rel (0) target = $region25
    $region24: #{encoder_forward.1} parent=1 // pred_region
      _
    $region25: #{encoder_forward.1} parent=1 // pred_fallthru
      _
    // Predicated region
    $region26: #{encoder_forward.1} parent=1 // pred_check
      _
    $region27: #{encoder_forward.1} parent=1 // pred_check_branch
      %30 = sbr.rel (0) target = $region29
    $region28: #{encoder_forward.1} parent=1 // pred_region
      _
    $region29: #{encoder_forward.1} parent=1 // pred_fallthru
      _
    // Predicated region
    $region30: #{encoder_forward.1} parent=1 // pred_check
      _
    $region31: #{encoder_forward.1} parent=1 // pred_check_branch
      %32 = sbr.rel (0) target = $region33
    $region32: #{encoder_forward.1} parent=1 // pred_region
      _
    $region33: #{encoder_forward.1} parent=1 // pred_fallthru
      _
    %v33 = vld [vmem:[%s0] sm:$0xff]
    %v34 = vld [vmem:[%s0 + $0x8] sm:$0xff]
    %v35 = vld [vmem:[%s0 + $0x10] sm:$0xff]
    %v36 = vld [vmem:[%s0 + $0x18] sm:$0xff]
    %v37 = vld [vmem:[%s0 + $0x20] sm:$0xff]
    %v38 = vld [vmem:[%s0 + $0x28] sm:$0xff]
    %v39 = vld [vmem:[%s0 + $0x30] sm:$0xff]
    %v40 = vld [vmem:[%s0 + $0x38] sm:$0xff]
    %v41 = vld [vmem:[%s2] sm:$0xff]
    %v42 = vld [vmem:[%s2 + $0x8] sm:$0xff]
    %v43 = vld [vmem:[%s2 + $0x10] sm:$0xff]
    %v44 = vld [vmem:[%s2 + $0x18] sm:$0xff]
    %v45 = vld [vmem:[%s2 + $0x20] sm:$0xff]
    %v46 = vld [vmem:[%s2 + $0x28] sm:$0xff]
    %v47 = vld [vmem:[%s2 + $0x30] sm:$0xff]
    %v48 = vld [vmem:[%s2 + $0x38] sm:$0xff]
    %v49 = vld [vmem:[%s2 + $0x40] sm:$0xff]
    %v50 = vld [vmem:[%s2 + $0x48] sm:$0xff]
    %v51 = vld [vmem:[%s2 + $0x50] sm:$0xff]
    %v52 = vld [vmem:[%s2 + $0x58] sm:$0xff]
    %v53 = vld [vmem:[%s2 + $0x60] sm:$0xff]
    %v54 = vld [vmem:[%s2 + $0x68] sm:$0xff]
    %v55 = vld [vmem:[%s2 + $0x70] sm:$0xff]
    %v56 = vld [vmem:[%s2 + $0x78] sm:$0xff]
    %v57 = vld [vmem:[%s2 + $0x80] sm:$0xff]
    %v58 = vld [vmem:[%s2 + $0x88] sm:$0xff]
    %v59 = vld [vmem:[%s2 + $0x90] sm:$0xff]
    %v60 = vld [vmem:[%s2 + $0x98] sm:$0xff]
    %v61 = vld [vmem:[%s2 + $0xa0] sm:$0xff]
    %v62 = vld [vmem:[%s2 + $0xa8] sm:$0xff]
    %v63 = vld [vmem:[%s2 + $0xb0] sm:$0xff]
    %v64 = vld [vmem:[%s2 + $0xb8] sm:$0xff]
    %v65 = vld [vmem:[%s5] sm:$0x3f]
    %v67 = vlaneseq
    %v68 = vshrl.u32 %v67, 7
    %v69 = vsub.s32 0, %v68
    %v70 = vrot.slane %v65, %v69
    %v71 = vlaneseq
    %v72 = vshrl.u32 %v71, 7
    %v73 = vsub.s32 1, %v72
    %v74 = vrot.slane %v65, %v73
    %v75 = vlaneseq
    %v76 = vshrl.u32 %v75, 7
    %v77 = vsub.s32 2, %v76
    %v78 = vrot.slane %v65, %v77
    %v79 = vlaneseq
    %v80 = vshrl.u32 %v79, 7
    %v81 = vsub.s32 3, %v80
    %v82 = vrot.slane %v65, %v81
    %v83 = vlaneseq
    %v84 = vshrl.u32 %v83, 7
    %v85 = vsub.s32 4, %v84
    %v86 = vrot.slane %v65, %v85
    %v87 = vlaneseq
    %v88 = vshrl.u32 %v87, 7
    %v89 = vsub.s32 5, %v88
    %v90 = vrot.slane %v65, %v89
    %vm97 = vcmask 261120
    %v99 = vsel %vm97, %v33, 0
    %v102 = vsel %vm97, %v34, 0
    %v105 = vsel %vm97, %v35, 0
    %v108 = vsel %vm97, %v36, 0
    %v111 = vsel %vm97, %v37, 0
    %v114 = vsel %vm97, %v38, 0
    %v117 = vsel %vm97, %v39, 0
    %v120 = vsel %vm97, %v40, 0
    %122 = vmatprep.subr.mxu0 %v42
    %123 = vmatpush1.msra.mxu0 %v41
    %124 = vmatprep.subr.mxu0 %v48
    %125 = vmatpush1.msra.mxu0 %v47
    %126 = vmatprep.subr.mxu0 %v54
    %127 = vmatpush1.msra.mxu0 %v53
    %128 = vmatprep.subr.mxu0 %v60
    %129 = vmatpush1.msra.mxu0 %v59
    %130 = vmatprep.subr.mxu0 0.0
    %131 = vmatpush1.msra.mxu0 0.0
    %132 = vmatprep.subr.mxu0 0.0
    %133 = vmatpush1.msra.mxu0 0.0
    %134 = vmatprep.subr.mxu0 0.0
    %135 = vmatpush1.msra.mxu0 0.0
    %136 = vmatprep.subr.mxu0 0.0
    %137 = vmatpush1.msra.mxu0 0.0
    %138 = vmatprep.subr.mxu0 0.0
    %139 = vmatpush1.msra.mxu0 0.0
    %140 = vmatprep.subr.mxu0 0.0
    %141 = vmatpush1.msra.mxu0 0.0
    %142 = vmatprep.subr.mxu0 0.0
    %143 = vmatpush1.msra.mxu0 0.0
    %144 = vmatprep.subr.mxu0 0.0
    %145 = vmatpush1.msra.mxu0 0.0
    %146 = vmatprep.subr.mxu0 0.0
    %147 = vmatpush1.msra.mxu0 0.0
    %148 = vmatprep.subr.mxu0 0.0
    %149 = vmatpush1.msra.mxu0 0.0
    %150 = vmatprep.subr.mxu0 0.0
    %151 = vmatpush1.msra.mxu0 0.0
    %152 = vmatprep.subr.mxu0 0.0
    %153 = vmatpush1.msra.mxu0 0.0
    %154 = vmatprep.subr.mxu0 0.0
    %155 = vmatpush1.msra.mxu0 0.0
    %156 = vmatprep.subr.mxu0 0.0
    %157 = vmatpush1.msra.mxu0 0.0
    %158 = vmatprep.subr.mxu0 0.0
    %159 = vmatpush1.msra.mxu0 0.0
    %160 = vmatprep.subr.mxu0 0.0
    %161 = vmatpush1.msra.mxu0 0.0
    %162 = vmatprep.subr.mxu0 0.0
    %163 = vmatpush1.msra.mxu0 0.0
    %164 = vmatprep.subr.mxu0 0.0
    %165 = vmatpush1.msra.mxu0 0.0
    %166 = vmatprep.subr.mxu0 0.0
    %167 = vmatpush1.msra.mxu0 0.0
    %168 = vmatprep.subr.mxu0 0.0
    %169 = vmatpush1.msra.mxu0 0.0
    %170 = vmatprep.subr.mxu0 0.0
    %171 = vmatpush1.msra.mxu0 0.0
    %172 = vmatprep.subr.mxu0 0.0
    %173 = vmatpush1.msra.mxu0 0.0
    %174 = vmatprep.subr.mxu0 0.0
    %175 = vmatpush1.msra.mxu0 0.0
    %176 = vmatprep.subr.mxu0 0.0
    %177 = vmatpush1.msra.mxu0 0.0
    %178 = vmatprep.subr.mxu0 0.0
    %179 = vmatpush1.msra.mxu0 0.0
    %180 = vmatprep.subr.mxu0 0.0
    %181 = vmatpush1.msra.mxu0 0.0
    %182 = vmatprep.subr.mxu0 0.0
    %183 = vmatpush1.msra.mxu0 0.0
    %184 = vmatprep.subr.mxu0 0.0
    %185 = vmatpush1.msra.mxu0 0.0
    %186 = vmatprep.mubr.f32.mxu0 0.0
    %187 = vmatmul.mubr.f32.gmra.mrb[0].mxu0 %v99
    %v188 = vpop.f32.mrb[0].mxu0
    %v189 = vadd.f32 %v70, %v188
    %v190 = vpop.f32.mrb[0].mxu0
    %v191 = vadd.f32 %v74, %v190
    %192 = vmatprep.mubr.f32.mxu0 0.0
    %193 = vmatmul.mubr.f32.gmra.mrb[0].mxu0 %v102
    %v194 = vpop.f32.mrb[0].mxu0
    %v195 = vadd.f32 %v70, %v194
    %v196 = vpop.f32.mrb[0].mxu0
    %v197 = vadd.f32 %v74, %v196
    %198 = vmatprep.mubr.f32.mxu0 0.0
    %199 = vmatmul.mubr.f32.gmra.mrb[0].mxu0 %v105
    %v200 = vpop.f32.mrb[0].mxu0
    %v201 = vadd.f32 %v70, %v200
    %v202 = vpop.f32.mrb[0].mxu0
    %v203 = vadd.f32 %v74, %v202
    %204 = vmatprep.mubr.f32.mxu0 0.0
    %205 = vmatmul.mubr.f32.gmra.mrb[0].mxu0 %v108
    %v206 = vpop.f32.mrb[0].mxu0
    %v207 = vadd.f32 %v70, %v206
    %v208 = vpop.f32.mrb[0].mxu0
    %v209 = vadd.f32 %v74, %v208
    %210 = vmatprep.mubr.f32.mxu0 0.0
    %211 = vmatmul.mubr.f32.gmra.mrb[0].mxu0 %v111
    %v212 = vpop.f32.mrb[0].mxu0
    %v213 = vadd.f32 %v70, %v212
    %v214 = vpop.f32.mrb[0].mxu0
    %v215 = vadd.f32 %v74, %v214
    %216 = vmatprep.mubr.f32.mxu0 0.0
    %217 = vmatmul.mubr.f32.gmra.mrb[0].mxu0 %v114
    %v218 = vpop.f32.mrb[0].mxu0
    %v219 = vadd.f32 %v70, %v218
    %v220 = vpop.f32.mrb[0].mxu0
    %v221 = vadd.f32 %v74, %v220
    %222 = vmatprep.mubr.f32.mxu0 0.0
    %223 = vmatmul.mubr.f32.gmra.mrb[0].mxu0 %v117
    %v224 = vpop.f32.mrb[0].mxu0
    %v225 = vadd.f32 %v70, %v224
    %v226 = vpop.f32.mrb[0].mxu0
    %v227 = vadd.f32 %v74, %v226
    %228 = vmatprep.mubr.f32.mxu0 0.0
    %229 = vmatmul.mubr.f32.gmra.mrb[0].mxu0 %v120
    %v230 = vpop.f32.mrb[0].mxu0
    %v231 = vadd.f32 %v70, %v230
    %v232 = vpop.f32.mrb[0].mxu0
    %v233 = vadd.f32 %v74, %v232
    %234 = vdwg.mxu0
    %235 = vmatprep.subr.mxu0 %v44
    %236 = vmatpush1.msra.mxu0 %v43
    %237 = vmatprep.subr.mxu0 %v50
    %238 = vmatpush1.msra.mxu0 %v49
    %239 = vmatprep.subr.mxu0 %v56
    %240 = vmatpush1.msra.mxu0 %v55
    %241 = vmatprep.subr.mxu0 %v62
    %242 = vmatpush1.msra.mxu0 %v61
    %243 = vmatprep.subr.mxu0 0.0
    %244 = vmatpush1.msra.mxu0 0.0
    %245 = vmatprep.subr.mxu0 0.0
    %246 = vmatpush1.msra.mxu0 0.0
    %247 = vmatprep.subr.mxu0 0.0
    %248 = vmatpush1.msra.mxu0 0.0
    %249 = vmatprep.subr.mxu0 0.0
    %250 = vmatpush1.msra.mxu0 0.0
    %251 = vmatprep.subr.mxu0 0.0
    %252 = vmatpush1.msra.mxu0 0.0
    %253 = vmatprep.subr.mxu0 0.0
    %254 = vmatpush1.msra.mxu0 0.0
    %255 = vmatprep.subr.mxu0 0.0
    %256 = vmatpush1.msra.mxu0 0.0
    %257 = vmatprep.subr.mxu0 0.0
    %258 = vmatpush1.msra.mxu0 0.0
    %259 = vmatprep.subr.mxu0 0.0
    %260 = vmatpush1.msra.mxu0 0.0
    %261 = vmatprep.subr.mxu0 0.0
    %262 = vmatpush1.msra.mxu0 0.0
    %263 = vmatprep.subr.mxu0 0.0
    %264 = vmatpush1.msra.mxu0 0.0
    %265 = vmatprep.subr.mxu0 0.0
    %266 = vmatpush1.msra.mxu0 0.0
    %267 = vmatprep.subr.mxu0 0.0
    %268 = vmatpush1.msra.mxu0 0.0
    %269 = vmatprep.subr.mxu0 0.0
    %270 = vmatpush1.msra.mxu0 0.0
    %271 = vmatprep.subr.mxu0 0.0
    %272 = vmatpush1.msra.mxu0 0.0
    %273 = vmatprep.subr.mxu0 0.0
    %274 = vmatpush1.msra.mxu0 0.0
    %275 = vmatprep.subr.mxu0 0.0
    %276 = vmatpush1.msra.mxu0 0.0
    %277 = vmatprep.subr.mxu0 0.0
    %278 = vmatpush1.msra.mxu0 0.0
    %279 = vmatprep.subr.mxu0 0.0
    %280 = vmatpush1.msra.mxu0 0.0
    %281 = vmatprep.subr.mxu0 0.0
    %282 = vmatpush1.msra.mxu0 0.0
    %283 = vmatprep.subr.mxu0 0.0
    %284 = vmatpush1.msra.mxu0 0.0
    %285 = vmatprep.subr.mxu0 0.0
    %286 = vmatpush1.msra.mxu0 0.0
    %287 = vmatprep.subr.mxu0 0.0
    %288 = vmatpush1.msra.mxu0 0.0
    %289 = vmatprep.subr.mxu0 0.0
    %290 = vmatpush1.msra.mxu0 0.0
    %291 = vmatprep.subr.mxu0 0.0
    %292 = vmatpush1.msra.mxu0 0.0
    %293 = vmatprep.subr.mxu0 0.0
    %294 = vmatpush1.msra.mxu0 0.0
    %295 = vmatprep.subr.mxu0 0.0
    %296 = vmatpush1.msra.mxu0 0.0
    %297 = vmatprep.subr.mxu0 0.0
    %298 = vmatpush1.msra.mxu0 0.0
    %299 = vmatprep.mubr.f32.mxu0 0.0
    %300 = vmatmul.mubr.f32.gmra.mrb[0].mxu0 %v99
    %v301 = vpop.f32.mrb[0].mxu0
    %v302 = vadd.f32 %v78, %v301
    %v303 = vpop.f32.mrb[0].mxu0
    %v304 = vadd.f32 %v82, %v303
    %305 = vmatprep.mubr.f32.mxu0 0.0
    %306 = vmatmul.mubr.f32.gmra.mrb[0].mxu0 %v102
    %v307 = vpop.f32.mrb[0].mxu0
    %v308 = vadd.f32 %v78, %v307
    %v309 = vpop.f32.mrb[0].mxu0
    %v310 = vadd.f32 %v82, %v309
    %311 = vmatprep.mubr.f32.mxu0 0.0
    %312 = vmatmul.mubr.f32.gmra.mrb[0].mxu0 %v105
    %v313 = vpop.f32.mrb[0].mxu0
    %v314 = vadd.f32 %v78, %v313
    %v315 = vpop.f32.mrb[0].mxu0
    %v316 = vadd.f32 %v82, %v315
    %317 = vmatprep.mubr.f32.mxu0 0.0
    %318 = vmatmul.mubr.f32.gmra.mrb[0].mxu0 %v108
    %v319 = vpop.f32.mrb[0].mxu0
    %v320 = vadd.f32 %v78, %v319
    %v321 = vpop.f32.mrb[0].mxu0
    %v322 = vadd.f32 %v82, %v321
    %323 = vmatprep.mubr.f32.mxu0 0.0
    %324 = vmatmul.mubr.f32.gmra.mrb[0].mxu0 %v111
    %v325 = vpop.f32.mrb[0].mxu0
    %v326 = vadd.f32 %v78, %v325
    %v327 = vpop.f32.mrb[0].mxu0
    %v328 = vadd.f32 %v82, %v327
    %329 = vmatprep.mubr.f32.mxu0 0.0
    %330 = vmatmul.mubr.f32.gmra.mrb[0].mxu0 %v114
    %v331 = vpop.f32.mrb[0].mxu0
    %v332 = vadd.f32 %v78, %v331
    %v333 = vpop.f32.mrb[0].mxu0
    %v334 = vadd.f32 %v82, %v333
    %335 = vmatprep.mubr.f32.mxu0 0.0
    %336 = vmatmul.mubr.f32.gmra.mrb[0].mxu0 %v117
    %v337 = vpop.f32.mrb[0].mxu0
    %v338 = vadd.f32 %v78, %v337
    %v339 = vpop.f32.mrb[0].mxu0
    %v340 = vadd.f32 %v82, %v339
    %341 = vmatprep.mubr.f32.mxu0 0.0
    %342 = vmatmul.mubr.f32.gmra.mrb[0].mxu0 %v120
    %v343 = vpop.f32.mrb[0].mxu0
    %v344 = vadd.f32 %v78, %v343
    %v345 = vpop.f32.mrb[0].mxu0
    %v346 = vadd.f32 %v82, %v345
    %347 = vdwg.mxu0
    %348 = vmatprep.subr.mxu0 %v46
    %349 = vmatpush1.msra.mxu0 %v45
    %350 = vmatprep.subr.mxu0 %v52
    %351 = vmatpush1.msra.mxu0 %v51
    %352 = vmatprep.subr.mxu0 %v58
    %353 = vmatpush1.msra.mxu0 %v57
    %354 = vmatprep.subr.mxu0 %v64
    %355 = vmatpush1.msra.mxu0 %v63
    %356 = vmatprep.subr.mxu0 0.0
    %357 = vmatpush1.msra.mxu0 0.0
    %358 = vmatprep.subr.mxu0 0.0
    %359 = vmatpush1.msra.mxu0 0.0
    %360 = vmatprep.subr.mxu0 0.0
    %361 = vmatpush1.msra.mxu0 0.0
    %362 = vmatprep.subr.mxu0 0.0
    %363 = vmatpush1.msra.mxu0 0.0
    %364 = vmatprep.subr.mxu0 0.0
    %365 = vmatpush1.msra.mxu0 0.0
    %366 = vmatprep.subr.mxu0 0.0
    %367 = vmatpush1.msra.mxu0 0.0
    %368 = vmatprep.subr.mxu0 0.0
    %369 = vmatpush1.msra.mxu0 0.0
    %370 = vmatprep.subr.mxu0 0.0
    %371 = vmatpush1.msra.mxu0 0.0
    %372 = vmatprep.subr.mxu0 0.0
    %373 = vmatpush1.msra.mxu0 0.0
    %374 = vmatprep.subr.mxu0 0.0
    %375 = vmatpush1.msra.mxu0 0.0
    %376 = vmatprep.subr.mxu0 0.0
    %377 = vmatpush1.msra.mxu0 0.0
    %378 = vmatprep.subr.mxu0 0.0
    %379 = vmatpush1.msra.mxu0 0.0
    %380 = vmatprep.subr.mxu0 0.0
    %381 = vmatpush1.msra.mxu0 0.0
    %382 = vmatprep.subr.mxu0 0.0
    %383 = vmatpush1.msra.mxu0 0.0
    %384 = vmatprep.subr.mxu0 0.0
    %385 = vmatpush1.msra.mxu0 0.0
    %386 = vmatprep.subr.mxu0 0.0
    %387 = vmatpush1.msra.mxu0 0.0
    %388 = vmatprep.subr.mxu0 0.0
    %389 = vmatpush1.msra.mxu0 0.0
    %390 = vmatprep.subr.mxu0 0.0
    %391 = vmatpush1.msra.mxu0 0.0
    %392 = vmatprep.subr.mxu0 0.0
    %393 = vmatpush1.msra.mxu0 0.0
    %394 = vmatprep.subr.mxu0 0.0
    %395 = vmatpush1.msra.mxu0 0.0
    %396 = vmatprep.subr.mxu0 0.0
    %397 = vmatpush1.msra.mxu0 0.0
    %398 = vmatprep.subr.mxu0 0.0
    %399 = vmatpush1.msra.mxu0 0.0
    %400 = vmatprep.subr.mxu0 0.0
    %401 = vmatpush1.msra.mxu0 0.0
    %402 = vmatprep.subr.mxu0 0.0
    %403 = vmatpush1.msra.mxu0 0.0
    %404 = vmatprep.subr.mxu0 0.0
    %405 = vmatpush1.msra.mxu0 0.0
    %406 = vmatprep.subr.mxu0 0.0
    %407 = vmatpush1.msra.mxu0 0.0
    %408 = vmatprep.subr.mxu0 0.0
    %409 = vmatpush1.msra.mxu0 0.0
    %410 = vmatprep.subr.mxu0 0.0
    %411 = vmatpush1.msra.mxu0 0.0
    %412 = vmatprep.mubr.f32.mxu0 0.0
    %413 = vmatmul.mubr.f32.gmra.mrb[0].mxu0 %v99
    %v414 = vpop.f32.mrb[0].mxu0
    %v415 = vadd.f32 %v86, %v414
    %v416 = vpop.f32.mrb[0].mxu0
    %v417 = vadd.f32 %v90, %v416
    %418 = vmatprep.mubr.f32.mxu0 0.0
    %419 = vmatmul.mubr.f32.gmra.mrb[0].mxu0 %v102
    %v420 = vpop.f32.mrb[0].mxu0
    %v421 = vadd.f32 %v86, %v420
    %v422 = vpop.f32.mrb[0].mxu0
    %v423 = vadd.f32 %v90, %v422
    %424 = vmatprep.mubr.f32.mxu0 0.0
    %425 = vmatmul.mubr.f32.gmra.mrb[0].mxu0 %v105
    %v426 = vpop.f32.mrb[0].mxu0
    %v427 = vadd.f32 %v86, %v426
    %v428 = vpop.f32.mrb[0].mxu0
    %v429 = vadd.f32 %v90, %v428
    %430 = vmatprep.mubr.f32.mxu0 0.0
    %431 = vmatmul.mubr.f32.gmra.mrb[0].mxu0 %v108
    %v432 = vpop.f32.mrb[0].mxu0
    %v433 = vadd.f32 %v86, %v432
    %v434 = vpop.f32.mrb[0].mxu0
    %v435 = vadd.f32 %v90, %v434
    %436 = vmatprep.mubr.f32.mxu0 0.0
    %437 = vmatmul.mubr.f32.gmra.mrb[0].mxu0 %v111
    %v438 = vpop.f32.mrb[0].mxu0
    %v439 = vadd.f32 %v86, %v438
    %v440 = vpop.f32.mrb[0].mxu0
    %v441 = vadd.f32 %v90, %v440
    %442 = vmatprep.mubr.f32.mxu0 0.0
    %443 = vmatmul.mubr.f32.gmra.mrb[0].mxu0 %v114
    %v444 = vpop.f32.mrb[0].mxu0
    %v445 = vadd.f32 %v86, %v444
    %v446 = vpop.f32.mrb[0].mxu0
    %v447 = vadd.f32 %v90, %v446
    %448 = vmatprep.mubr.f32.mxu0 0.0
    %449 = vmatmul.mubr.f32.gmra.mrb[0].mxu0 %v117
    %v450 = vpop.f32.mrb[0].mxu0
    %v451 = vadd.f32 %v86, %v450
    %v452 = vpop.f32.mrb[0].mxu0
    %v453 = vadd.f32 %v90, %v452
    %454 = vmatprep.mubr.f32.mxu0 0.0
    %455 = vmatmul.mubr.f32.gmra.mrb[0].mxu0 %v120
    %v456 = vpop.f32.mrb[0].mxu0
    %v457 = vadd.f32 %v86, %v456
    %v458 = vpop.f32.mrb[0].mxu0
    %v459 = vadd.f32 %v90, %v458
    %460 = vdwg.mxu0
    %461 = vst [vmem:[#allocation2] sm:$0xff] %v189
    %462 = vst [vmem:[#allocation2 + $0x8] sm:$0xff] %v191
    %463 = vst [vmem:[#allocation2 + $0x10] sm:$0xff] %v302
    %464 = vst [vmem:[#allocation2 + $0x18] sm:$0xff] %v304
    %465 = vst [vmem:[#allocation2 + $0x20] sm:$0xff] %v415
    %466 = vst [vmem:[#allocation2 + $0x28] sm:$0xff] %v417
    %467 = vst [vmem:[#allocation2 + $0x30] sm:$0xff] %v195
    %468 = vst [vmem:[#allocation2 + $0x38] sm:$0xff] %v197
    %469 = vst [vmem:[#allocation2 + $0x40] sm:$0xff] %v308
    %470 = vst [vmem:[#allocation2 + $0x48] sm:$0xff] %v310
    %471 = vst [vmem:[#allocation2 + $0x50] sm:$0xff] %v421
    %472 = vst [vmem:[#allocation2 + $0x58] sm:$0xff] %v423
    %473 = vst [vmem:[#allocation2 + $0x60] sm:$0xff] %v201
    %474 = vst [vmem:[#allocation2 + $0x68] sm:$0xff] %v203
    %475 = vst [vmem:[#allocation2 + $0x70] sm:$0xff] %v314
    %476 = vst [vmem:[#allocation2 + $0x78] sm:$0xff] %v316
    %477 = vst [vmem:[#allocation2 + $0x80] sm:$0xff] %v427
    %478 = vst [vmem:[#allocation2 + $0x88] sm:$0xff] %v429
    %479 = vst [vmem:[#allocation2 + $0x90] sm:$0xff] %v207
    %480 = vst [vmem:[#allocation2 + $0x98] sm:$0xff] %v209
    %481 = vst [vmem:[#allocation2 + $0xa0] sm:$0xff] %v320
    %482 = vst [vmem:[#allocation2 + $0xa8] sm:$0xff] %v322
    %483 = vst [vmem:[#allocation2 + $0xb0] sm:$0xff] %v433
    %484 = vst [vmem:[#allocation2 + $0xb8] sm:$0xff] %v435
    %485 = vst [vmem:[#allocation2 + $0xc0] sm:$0xff] %v213
    %486 = vst [vmem:[#allocation2 + $0xc8] sm:$0xff] %v215
    %487 = vst [vmem:[#allocation2 + $0xd0] sm:$0xff] %v326
    %488 = vst [vmem:[#allocation2 + $0xd8] sm:$0xff] %v328
    %489 = vst [vmem:[#allocation2 + $0xe0] sm:$0xff] %v439
    %490 = vst [vmem:[#allocation2 + $0xe8] sm:$0xff] %v441
    %491 = vst [vmem:[#allocation2 + $0xf0] sm:$0xff] %v219
    %492 = vst [vmem:[#allocation2 + $0xf8] sm:$0xff] %v221
    %493 = vst [vmem:[#allocation2 + $0x100] sm:$0xff] %v332
    %494 = vst [vmem:[#allocation2 + $0x108] sm:$0xff] %v334
    %495 = vst [vmem:[#allocation2 + $0x110] sm:$0xff] %v445
    %496 = vst [vmem:[#allocation2 + $0x118] sm:$0xff] %v447
    %497 = vst [vmem:[#allocation2 + $0x120] sm:$0xff] %v225
    %498 = vst [vmem:[#allocation2 + $0x128] sm:$0xff] %v227
    %499 = vst [vmem:[#allocation2 + $0x130] sm:$0xff] %v338
    %500 = vst [vmem:[#allocation2 + $0x138] sm:$0xff] %v340
    %501 = vst [vmem:[#allocation2 + $0x140] sm:$0xff] %v451
    %502 = vst [vmem:[#allocation2 + $0x148] sm:$0xff] %v453
    %503 = vst [vmem:[#allocation2 + $0x150] sm:$0xff] %v231
    %504 = vst [vmem:[#allocation2 + $0x158] sm:$0xff] %v233
    %505 = vst [vmem:[#allocation2 + $0x160] sm:$0xff] %v344
    %506 = vst [vmem:[#allocation2 + $0x168] sm:$0xff] %v346
    %507 = vst [vmem:[#allocation2 + $0x170] sm:$0xff] %v457
    %508 = vst [vmem:[#allocation2 + $0x178] sm:$0xff] %v459
    %v509 = vld [vmem:[%s3] sm:$0xff]
    %v510 = vld [vmem:[%s3 + $0x8] sm:$0xff]
    %v511 = vld [vmem:[%s3 + $0x10] sm:$0xff]
    %v512 = vld [vmem:[%s3 + $0x18] sm:$0xff]
    %v513 = vld [vmem:[%s3 + $0x20] sm:$0xff]
    %v514 = vld [vmem:[%s3 + $0x28] sm:$0xff]
    %v515 = vld [vmem:[%s3 + $0x30] sm:$0xff]
    %v516 = vld [vmem:[%s3 + $0x38] sm:$0xff]
    %v517 = vld [vmem:[%s3 + $0x40] sm:$0xff]
    %v518 = vld [vmem:[%s3 + $0x48] sm:$0xff]
    %v519 = vld [vmem:[%s3 + $0x50] sm:$0xff]
    %v520 = vld [vmem:[%s3 + $0x58] sm:$0xff]
    %v521 = vld [vmem:[%s3 + $0x60] sm:$0xff]
    %v522 = vld [vmem:[%s3 + $0x68] sm:$0xff]
    %v523 = vld [vmem:[%s3 + $0x70] sm:$0xff]
    %v524 = vld [vmem:[%s3 + $0x78] sm:$0xff]
    %v525 = vld [vmem:[%s3 + $0x80] sm:$0xff]
    %v526 = vld [vmem:[%s3 + $0x88] sm:$0xff]
    %v527 = vld [vmem:[%s3 + $0x90] sm:$0xff]
    %v528 = vld [vmem:[%s3 + $0x98] sm:$0xff]
    %v529 = vld [vmem:[%s3 + $0xa0] sm:$0xff]
    %v530 = vld [vmem:[%s3 + $0xa8] sm:$0xff]
    %v531 = vld [vmem:[%s3 + $0xb0] sm:$0xff]
    %v532 = vld [vmem:[%s3 + $0xb8] sm:$0xff]
    %v533 = vld [vmem:[%s3 + $0xc0] sm:$0xff]
    %v534 = vld [vmem:[%s3 + $0xc8] sm:$0xff]
    %v535 = vld [vmem:[%s3 + $0xd0] sm:$0xff]
    %v536 = vld [vmem:[%s3 + $0xd8] sm:$0xff]
    %v537 = vld [vmem:[%s3 + $0xe0] sm:$0xff]
    %v538 = vld [vmem:[%s3 + $0xe8] sm:$0xff]
    %v539 = vld [vmem:[%s3 + $0xf0] sm:$0xff]
    %v540 = vld [vmem:[%s3 + $0xf8] sm:$0xff]
    %v541 = vld [vmem:[%s3 + $0x100] sm:$0xff]
    %v542 = vld [vmem:[%s3 + $0x108] sm:$0xff]
    %v543 = vld [vmem:[%s3 + $0x110] sm:$0xff]
    %v544 = vld [vmem:[%s3 + $0x118] sm:$0xff]
    %v545 = vld [vmem:[%s3 + $0x120] sm:$0xff]
    %v546 = vld [vmem:[%s3 + $0x128] sm:$0xff]
    %v547 = vld [vmem:[%s3 + $0x130] sm:$0xff]
    %v548 = vld [vmem:[%s3 + $0x138] sm:$0xff]
    %v549 = vld [vmem:[%s3 + $0x140] sm:$0xff]
    %v550 = vld [vmem:[%s3 + $0x148] sm:$0xff]
    %v551 = vld [vmem:[%s3 + $0x150] sm:$0xff]
    %v552 = vld [vmem:[%s3 + $0x158] sm:$0xff]
    %v553 = vld [vmem:[%s3 + $0x160] sm:$0xff]
    %v554 = vld [vmem:[%s3 + $0x168] sm:$0xff]
    %v555 = vld [vmem:[%s3 + $0x170] sm:$0xff]
    %v556 = vld [vmem:[%s3 + $0x178] sm:$0xff]
    %v557 = vld [vmem:[%s4] sm:$0xff]
    %v558 = vld [vmem:[%s4 + $0x8] sm:$0xff]
    %v559 = vld [vmem:[%s4 + $0x10] sm:$0xff]
    %v560 = vld [vmem:[%s4 + $0x18] sm:$0xff]
    %v561 = vld [vmem:[%s4 + $0x20] sm:$0xff]
    %v562 = vld [vmem:[%s4 + $0x28] sm:$0xff]
    %v563 = vld [vmem:[%s4 + $0x30] sm:$0xff]
    %v564 = vld [vmem:[%s4 + $0x38] sm:$0xff]
    %v565 = vld [vmem:[%s4 + $0x40] sm:$0xff]
    %v566 = vld [vmem:[%s4 + $0x48] sm:$0xff]
    %v567 = vld [vmem:[%s4 + $0x50] sm:$0xff]
    %v568 = vld [vmem:[%s4 + $0x58] sm:$0xff]
    %v569 = vld [vmem:[%s4 + $0x60] sm:$0xff]
    %v570 = vld [vmem:[%s4 + $0x68] sm:$0xff]
    %v571 = vld [vmem:[%s4 + $0x70] sm:$0xff]
    %v572 = vld [vmem:[%s4 + $0x78] sm:$0xff]
    %v573 = vld [vmem:[%s4 + $0x80] sm:$0xff]
    %v574 = vld [vmem:[%s4 + $0x88] sm:$0xff]
    %v575 = vld [vmem:[%s4 + $0x90] sm:$0xff]
    %v576 = vld [vmem:[%s4 + $0x98] sm:$0xff]
    %v577 = vld [vmem:[%s4 + $0xa0] sm:$0xff]
    %v578 = vld [vmem:[%s4 + $0xa8] sm:$0xff]
    %v579 = vld [vmem:[%s4 + $0xb0] sm:$0xff]
    %v580 = vld [vmem:[%s4 + $0xb8] sm:$0xff]
    %v581 = vld [vmem:[%s4 + $0xc0] sm:$0xff]
    %v582 = vld [vmem:[%s4 + $0xc8] sm:$0xff]
    %v583 = vld [vmem:[%s4 + $0xd0] sm:$0xff]
    %v584 = vld [vmem:[%s4 + $0xd8] sm:$0xff]
    %v585 = vld [vmem:[%s4 + $0xe0] sm:$0xff]
    %v586 = vld [vmem:[%s4 + $0xe8] sm:$0xff]
    %v587 = vld [vmem:[%s4 + $0xf0] sm:$0xff]
    %v588 = vld [vmem:[%s4 + $0xf8] sm:$0xff]
    %v589 = vld [vmem:[%s4 + $0x100] sm:$0xff]
    %v590 = vld [vmem:[%s4 + $0x108] sm:$0xff]
    %v591 = vld [vmem:[%s4 + $0x110] sm:$0xff]
    %v592 = vld [vmem:[%s4 + $0x118] sm:$0xff]
    %v593 = vld [vmem:[%s4 + $0x120] sm:$0xff]
    %v594 = vld [vmem:[%s4 + $0x128] sm:$0xff]
    %v595 = vld [vmem:[%s4 + $0x130] sm:$0xff]
    %v596 = vld [vmem:[%s4 + $0x138] sm:$0xff]
    %v597 = vld [vmem:[%s4 + $0x140] sm:$0xff]
    %v598 = vld [vmem:[%s4 + $0x148] sm:$0xff]
    %v599 = vld [vmem:[%s4 + $0x150] sm:$0xff]
    %v600 = vld [vmem:[%s4 + $0x158] sm:$0xff]
    %v601 = vld [vmem:[%s4 + $0x160] sm:$0xff]
    %v602 = vld [vmem:[%s4 + $0x168] sm:$0xff]
    %v603 = vld [vmem:[%s4 + $0x170] sm:$0xff]
    %v604 = vld [vmem:[%s4 + $0x178] sm:$0xff]
    %v605 = vld [vmem:[%s6] sm:$0x1]
    %v607 = vlaneseq
    %v608 = vshrl.u32 %v607, 7
    %v609 = vsub.s32 0, %v608
    %v610 = vrot.slane %v605, %v609
    %v612 = vld [vmem:[%s7] sm:$0x1]
    %v614 = vlaneseq
    %v615 = vshrl.u32 %v614, 7
    %v616 = vsub.s32 0, %v615
    %v617 = vrot.slane %v612, %v616
    %v619 = vld [vmem:[%s1] sm:$0xff]
    %620 = vst [vmem:[#allocation3] sm:$0xff] 0.0
    %621 = vst [vmem:[#allocation3 + $0x8] sm:$0xff] 0.0
    %622 = vst [vmem:[#allocation3 + $0x10] sm:$0xff] 0.0
    %623 = vst [vmem:[#allocation3 + $0x18] sm:$0xff] 0.0
    %624 = vst [vmem:[#allocation3 + $0x20] sm:$0xff] 0.0
    %625 = vst [vmem:[#allocation3 + $0x28] sm:$0xff] 0.0
    %626 = vst [vmem:[#allocation3 + $0x30] sm:$0xff] 0.0
    %627 = vst [vmem:[#allocation3 + $0x38] sm:$0xff] 0.0
    %v628 = vld [vmem:[#allocation2] sm:$0xff]
    %v629 = vld [vmem:[#allocation2 + $0x8] sm:$0xff]
    %v630 = vld [vmem:[#allocation2 + $0x10] sm:$0xff]
    %631 = vmatprep.subr.mxu0 %v510
    %632 = vmatpush1.msra.mxu0 %v509
    %633 = vmatprep.subr.mxu0 %v513
    %634 = vmatpush1.msra.mxu0 %v512
    %635 = vmatprep.subr.mxu0 %v516
    %636 = vmatpush1.msra.mxu0 %v515
    %637 = vmatprep.subr.mxu0 %v519
    %638 = vmatpush1.msra.mxu0 %v518
    %639 = vmatprep.subr.mxu0 %v522
    %640 = vmatpush1.msra.mxu0 %v521
    %641 = vmatprep.subr.mxu0 %v525
    %642 = vmatpush1.msra.mxu0 %v524
    %643 = vmatprep.subr.mxu0 %v528
    %644 = vmatpush1.msra.mxu0 %v527
    %645 = vmatprep.subr.mxu0 %v531
    %646 = vmatpush1.msra.mxu0 %v530
    %647 = vmatprep.subr.mxu0 %v534
    %648 = vmatpush1.msra.mxu0 %v533
    %649 = vmatprep.subr.mxu0 %v537
    %650 = vmatpush1.msra.mxu0 %v536
    %651 = vmatprep.subr.mxu0 %v540
    %652 = vmatpush1.msra.mxu0 %v539
    %653 = vmatprep.subr.mxu0 %v543
    %654 = vmatpush1.msra.mxu0 %v542
    %655 = vmatprep.subr.mxu0 %v546
    %656 = vmatpush1.msra.mxu0 %v545
    %657 = vmatprep.subr.mxu0 %v549
    %658 = vmatpush1.msra.mxu0 %v548
    %659 = vmatprep.subr.mxu0 %v552
    %660 = vmatpush1.msra.mxu0 %v551
    %661 = vmatprep.subr.mxu0 %v555
    %662 = vmatpush1.msra.mxu0 %v554
    %663 = vmatprep.subr.mxu0 0.0
    %664 = vmatpush1.msra.mxu0 0.0
    %665 = vmatprep.subr.mxu0 0.0
    %666 = vmatpush1.msra.mxu0 0.0
    %667 = vmatprep.subr.mxu0 0.0
    %668 = vmatpush1.msra.mxu0 0.0
    %669 = vmatprep.subr.mxu0 0.0
    %670 = vmatpush1.msra.mxu0 0.0
    %671 = vmatprep.subr.mxu0 0.0
    %672 = vmatpush1.msra.mxu0 0.0
    %673 = vmatprep.subr.mxu0 0.0
    %674 = vmatpush1.msra.mxu0 0.0
    %675 = vmatprep.subr.mxu0 0.0
    %676 = vmatpush1.msra.mxu0 0.0
    %677 = vmatprep.subr.mxu0 0.0
    %678 = vmatpush1.msra.mxu0 0.0
    %679 = vmatprep.subr.mxu0 0.0
    %680 = vmatpush1.msra.mxu0 0.0
    %681 = vmatprep.subr.mxu0 0.0
    %682 = vmatpush1.msra.mxu0 0.0
    %683 = vmatprep.subr.mxu0 0.0
    %684 = vmatpush1.msra.mxu0 0.0
    %685 = vmatprep.subr.mxu0 0.0
    %686 = vmatpush1.msra.mxu0 0.0
    %687 = vmatprep.subr.mxu0 0.0
    %688 = vmatpush1.msra.mxu0 0.0
    %689 = vmatprep.subr.mxu0 0.0
    %690 = vmatpush1.msra.mxu0 0.0
    %691 = vmatprep.subr.mxu0 0.0
    %692 = vmatpush1.msra.mxu0 0.0
    %693 = vmatprep.subr.mxu0 0.0
    %694 = vmatpush1.msra.mxu0 0.0
    %695 = vmatprep.mubr.f32.mxu0 0.0
    %696 = vmatmul.mubr.f32.gmra.mrb[0].mxu0 0.0
    %v697 = vpop.f32.mrb[0].mxu0
    %v698 = vadd.f32 0.0, %v697
    %v699 = vpop.f32.mrb[0].mxu0
    %v700 = vadd.f32 0.0, %v699
    %701 = vdwg.mxu0
    %702 = vmatprep.subr.mxu0 0.0
    %703 = vmatpush1.msra.mxu0 %v511
    %704 = vmatprep.subr.mxu0 0.0
    %705 = vmatpush1.msra.mxu0 %v514
    %706 = vmatprep.subr.mxu0 0.0
    %707 = vmatpush1.msra.mxu0 %v517
    %708 = vmatprep.subr.mxu0 0.0
    %709 = vmatpush1.msra.mxu0 %v520
    %710 = vmatprep.subr.mxu0 0.0
    %711 = vmatpush1.msra.mxu0 %v523
    %712 = vmatprep.subr.mxu0 0.0
    %713 = vmatpush1.msra.mxu0 %v526
    %714 = vmatprep.subr.mxu0 0.0
    %715 = vmatpush1.msra.mxu0 %v529
    %716 = vmatprep.subr.mxu0 0.0
    %717 = vmatpush1.msra.mxu0 %v532
    %718 = vmatprep.subr.mxu0 0.0
    %719 = vmatpush1.msra.mxu0 %v535
    %720 = vmatprep.subr.mxu0 0.0
    %721 = vmatpush1.msra.mxu0 %v538
    %722 = vmatprep.subr.mxu0 0.0
    %723 = vmatpush1.msra.mxu0 %v541
    %724 = vmatprep.subr.mxu0 0.0
    %725 = vmatpush1.msra.mxu0 %v544
    %726 = vmatprep.subr.mxu0 0.0
    %727 = vmatpush1.msra.mxu0 %v547
    %728 = vmatprep.subr.mxu0 0.0
    %729 = vmatpush1.msra.mxu0 %v550
    %730 = vmatprep.subr.mxu0 0.0
    %731 = vmatpush1.msra.mxu0 %v553
    %732 = vmatprep.subr.mxu0 0.0
    %733 = vmatpush1.msra.mxu0 %v556
    %734 = vmatprep.subr.mxu0 0.0
    %735 = vmatpush1.msra.mxu0 0.0
    %736 = vmatprep.subr.mxu0 0.0
    %737 = vmatpush1.msra.mxu0 0.0
    %738 = vmatprep.subr.mxu0 0.0
    %739 = vmatpush1.msra.mxu0 0.0
    %740 = vmatprep.subr.mxu0 0.0
    %741 = vmatpush1.msra.mxu0 0.0
    %742 = vmatprep.subr.mxu0 0.0
    %743 = vmatpush1.msra.mxu0 0.0
    %744 = vmatprep.subr.mxu0 0.0
    %745 = vmatpush1.msra.mxu0 0.0
    %746 = vmatprep.subr.mxu0 0.0
    %747 = vmatpush1.msra.mxu0 0.0
    %748 = vmatprep.subr.mxu0 0.0
    %749 = vmatpush1.msra.mxu0 0.0
    %750 = vmatprep.subr.mxu0 0.0
    %751 = vmatpush1.msra.mxu0 0.0
    %752 = vmatprep.subr.mxu0 0.0
    %753 = vmatpush1.msra.mxu0 0.0
    %754 = vmatprep.subr.mxu0 0.0
    %755 = vmatpush1.msra.mxu0 0.0
    %756 = vmatprep.subr.mxu0 0.0
    %757 = vmatpush1.msra.mxu0 0.0
    %758 = vmatprep.subr.mxu0 0.0
    %759 = vmatpush1.msra.mxu0 0.0
    %760 = vmatprep.subr.mxu0 0.0
    %761 = vmatpush1.msra.mxu0 0.0
    %762 = vmatprep.subr.mxu0 0.0
    %763 = vmatpush1.msra.mxu0 0.0
    %764 = vmatprep.subr.mxu0 0.0
    %765 = vmatpush1.msra.mxu0 0.0
    %766 = vmatprep.mubr.f32.mxu0 0.0
    %767 = vmatmul.mubr.f32.gmra.mrb[0].mxu0 0.0
    %v768 = vpop.f32.mrb[0].mxu0
    %v769 = vadd.f32 0.0, %v768
    %v770 = vpop.f32.mrb[0].mxu0
    %771 = vdwg.mxu0
    %v772 = vadd.f32 %v628, %v698
    %v773 = vxor.u32 %v772, 2147483648
    %v774 = vmul.f32 %v773, 1.442695
    %v775 = vpow.pop %v774
    %v776 = vadd.f32 %v775, 1.0
    %v777 = vrcp.pop %v776
    %v778 = vmul.f32 1.0, %v777
    %v779 = vadd.f32 %v629, %v700
    %v780 = vxor.u32 %v779, 2147483648
    %v781 = vmul.f32 %v780, 1.442695
    %v782 = vpow.pop %v781
    %v783 = vadd.f32 %v782, 1.0
    %v784 = vrcp.pop %v783
    %v785 = vmul.f32 1.0, %v784
    %v786 = vadd.f32 %v769, %v610
    %v787 = vmul.f32 %v778, %v786
    %v788 = vadd.f32 %v630, %v787
    %v789 = vtanh.pop %v788
    %v790 = vsub.f32 1.0, %v785
    %v791 = vmul.f32 %v790, %v789
    %v792 = vmul.f32 %v785, 0.0
    %v793 = vadd.f32 %v791, %v792
    %vm794 = vcmp.gt.s32.totalorder %v619, 0
    %v795 = vsel %vm794, 1, 0
    %796 = vset.pattern.permute.xlu0 0
    %797 = vperm.xlu0 %796, %v795
    %v798 = vpop.permute.xlu0 %797
    %vm799 = vcmp.eq.s32.totalorder %v798, 1
    %v800 = vsel %vm799, %v793, 0.0
    %v801 = vld [vmem:[#allocation3] sm:$0xff]
    %v802 = vadd.f32 %v801, %v800
    %803 = vst [vmem:[#allocation3] sm:$0xff] %v802
    %s804 = scalar_lea.vmem [#allocation2], 336
    %v805 = vld [vmem:[%s804 + $0x18] sm:$0xff]
    %v806 = vld [vmem:[%s804 + $0x20] sm:$0xff]
    %v807 = vld [vmem:[%s804 + $0x28] sm:$0xff]
    %808 = vmatprep.subr.mxu0 %v558
    %809 = vmatpush1.msra.mxu0 %v557
    %810 = vmatprep.subr.mxu0 %v561
    %811 = vmatpush1.msra.mxu0 %v560
    %812 = vmatprep.subr.mxu0 %v564
    %813 = vmatpush1.msra.mxu0 %v563
    %814 = vmatprep.subr.mxu0 %v567
    %815 = vmatpush1.msra.mxu0 %v566
    %816 = vmatprep.subr.mxu0 %v570
    %817 = vmatpush1.msra.mxu0 %v569
    %818 = vmatprep.subr.mxu0 %v573
    %819 = vmatpush1.msra.mxu0 %v572
    %820 = vmatprep.subr.mxu0 %v576
    %821 = vmatpush1.msra.mxu0 %v575
    %822 = vmatprep.subr.mxu0 %v579
    %823 = vmatpush1.msra.mxu0 %v578
    %824 = vmatprep.subr.mxu0 %v582
    %825 = vmatpush1.msra.mxu0 %v581
    %826 = vmatprep.subr.mxu0 %v585
    %827 = vmatpush1.msra.mxu0 %v584
    %828 = vmatprep.subr.mxu0 %v588
    %829 = vmatpush1.msra.mxu0 %v587
    %830 = vmatprep.subr.mxu0 %v591
    %831 = vmatpush1.msra.mxu0 %v590
    %832 = vmatprep.subr.mxu0 %v594
    %833 = vmatpush1.msra.mxu0 %v593
    %834 = vmatprep.subr.mxu0 %v597
    %835 = vmatpush1.msra.mxu0 %v596
    %836 = vmatprep.subr.mxu0 %v600
    %837 = vmatpush1.msra.mxu0 %v599
    %838 = vmatprep.subr.mxu0 %v603
    %839 = vmatpush1.msra.mxu0 %v602
    %840 = vmatprep.subr.mxu0 0.0
    %841 = vmatpush1.msra.mxu0 0.0
    %842 = vmatprep.subr.mxu0 0.0
    %843 = vmatpush1.msra.mxu0 0.0
    %844 = vmatprep.subr.mxu0 0.0
    %845 = vmatpush1.msra.mxu0 0.0
    %846 = vmatprep.subr.mxu0 0.0
    %847 = vmatpush1.msra.mxu0 0.0
    %848 = vmatprep.subr.mxu0 0.0
    %849 = vmatpush1.msra.mxu0 0.0
    %850 = vmatprep.subr.mxu0 0.0
    %851 = vmatpush1.msra.mxu0 0.0
    %852 = vmatprep.subr.mxu0 0.0
    %853 = vmatpush1.msra.mxu0 0.0
    %854 = vmatprep.subr.mxu0 0.0
    %855 = vmatpush1.msra.mxu0 0.0
    %856 = vmatprep.subr.mxu0 0.0
    %857 = vmatpush1.msra.mxu0 0.0
    %858 = vmatprep.subr.mxu0 0.0
    %859 = vmatpush1.msra.mxu0 0.0
    %860 = vmatprep.subr.mxu0 0.0
    %861 = vmatpush1.msra.mxu0 0.0
    %862 = vmatprep.subr.mxu0 0.0
    %863 = vmatpush1.msra.mxu0 0.0
    %864 = vmatprep.subr.mxu0 0.0
    %865 = vmatpush1.msra.mxu0 0.0
    %866 = vmatprep.subr.mxu0 0.0
    %867 = vmatpush1.msra.mxu0 0.0
    %868 = vmatprep.subr.mxu0 0.0
    %869 = vmatpush1.msra.mxu0 0.0
    %870 = vmatprep.subr.mxu0 0.0
    %871 = vmatpush1.msra.mxu0 0.0
    %872 = vmatprep.mubr.f32.mxu0 0.0
    %873 = vmatmul.mubr.f32.gmra.mrb[0].mxu0 0.0
    %v874 = vpop.f32.mrb[0].mxu0
    %v875 = vadd.f32 0.0, %v874
    %v876 = vpop.f32.mrb[0].mxu0
    %v877 = vadd.f32 0.0, %v876
    %878 = vdwg.mxu0
    %879 = vmatprep.subr.mxu0 0.0
    %880 = vmatpush1.msra.mxu0 %v559
    %881 = vmatprep.subr.mxu0 0.0
    %882 = vmatpush1.msra.mxu0 %v562
    %883 = vmatprep.subr.mxu0 0.0
    %884 = vmatpush1.msra.mxu0 %v565
    %885 = vmatprep.subr.mxu0 0.0
    %886 = vmatpush1.msra.mxu0 %v568
    %887 = vmatprep.subr.mxu0 0.0
    %888 = vmatpush1.msra.mxu0 %v571
    %889 = vmatprep.subr.mxu0 0.0
    %890 = vmatpush1.msra.mxu0 %v574
    %891 = vmatprep.subr.mxu0 0.0
    %892 = vmatpush1.msra.mxu0 %v577
    %893 = vmatprep.subr.mxu0 0.0
    %894 = vmatpush1.msra.mxu0 %v580
    %895 = vmatprep.subr.mxu0 0.0
    %896 = vmatpush1.msra.mxu0 %v583
    %897 = vmatprep.subr.mxu0 0.0
    %898 = vmatpush1.msra.mxu0 %v586
    %899 = vmatprep.subr.mxu0 0.0
    %900 = vmatpush1.msra.mxu0 %v589
    %901 = vmatprep.subr.mxu0 0.0
    %902 = vmatpush1.msra.mxu0 %v592
    %903 = vmatprep.subr.mxu0 0.0
    %904 = vmatpush1.msra.mxu0 %v595
    %905 = vmatprep.subr.mxu0 0.0
    %906 = vmatpush1.msra.mxu0 %v598
    %907 = vmatprep.subr.mxu0 0.0
    %908 = vmatpush1.msra.mxu0 %v601
    %909 = vmatprep.subr.mxu0 0.0
    %910 = vmatpush1.msra.mxu0 %v604
    %911 = vmatprep.subr.mxu0 0.0
    %912 = vmatpush1.msra.mxu0 0.0
    %913 = vmatprep.subr.mxu0 0.0
    %914 = vmatpush1.msra.mxu0 0.0
    %915 = vmatprep.subr.mxu0 0.0
    %916 = vmatpush1.msra.mxu0 0.0
    %917 = vmatprep.subr.mxu0 0.0
    %918 = vmatpush1.msra.mxu0 0.0
    %919 = vmatprep.subr.mxu0 0.0
    %920 = vmatpush1.msra.mxu0 0.0
    %921 = vmatprep.subr.mxu0 0.0
    %922 = vmatpush1.msra.mxu0 0.0
    %923 = vmatprep.subr.mxu0 0.0
    %924 = vmatpush1.msra.mxu0 0.0
    %925 = vmatprep.subr.mxu0 0.0
    %926 = vmatpush1.msra.mxu0 0.0
    %927 = vmatprep.subr.mxu0 0.0
    %928 = vmatpush1.msra.mxu0 0.0
    %929 = vmatprep.subr.mxu0 0.0
    %930 = vmatpush1.msra.mxu0 0.0
    %931 = vmatprep.subr.mxu0 0.0
    %932 = vmatpush1.msra.mxu0 0.0
    %933 = vmatprep.subr.mxu0 0.0
    %934 = vmatpush1.msra.mxu0 0.0
    %935 = vmatprep.subr.mxu0 0.0
    %936 = vmatpush1.msra.mxu0 0.0
    %937 = vmatprep.subr.mxu0 0.0
    %938 = vmatpush1.msra.mxu0 0.0
    %939 = vmatprep.subr.mxu0 0.0
    %940 = vmatpush1.msra.mxu0 0.0
    %941 = vmatprep.subr.mxu0 0.0
    %942 = vmatpush1.msra.mxu0 0.0
    %943 = vmatprep.mubr.f32.mxu0 0.0
    %944 = vmatmul.mubr.f32.gmra.mrb[0].mxu0 0.0
    %v945 = vpop.f32.mrb[0].mxu0
    %v946 = vadd.f32 0.0, %v945
    %v947 = vpop.f32.mrb[0].mxu0
    %948 = vdwg.mxu0
    %v949 = vadd.f32 %v805, %v875
    %v950 = vxor.u32 %v949, 2147483648
    %v951 = vmul.f32 %v950, 1.442695
    %v952 = vpow.pop %v951
    %v953 = vadd.f32 %v952, 1.0
    %v954 = vrcp.pop %v953
    %v955 = vmul.f32 1.0, %v954
    %v956 = vadd.f32 %v806, %v877
    %v957 = vxor.u32 %v956, 2147483648
    %v958 = vmul.f32 %v957, 1.442695
    %v959 = vpow.pop %v958
    %v960 = vadd.f32 %v959, 1.0
    %v961 = vrcp.pop %v960
    %v962 = vmul.f32 1.0, %v961
    %v963 = vadd.f32 %v946, %v617
    %v964 = vmul.f32 %v955, %v963
    %v965 = vadd.f32 %v807, %v964
    %v966 = vtanh.pop %v965
    %v967 = vsub.f32 1.0, %v962
    %v968 = vmul.f32 %v967, %v966
    %v969 = vmul.f32 %v962, 0.0
    %v970 = vadd.f32 %v968, %v969
    %vm971 = vcmp.gt.s32.totalorder %v619, 7
    %v972 = vsel %vm971, 1, 0
    %973 = vset.pattern.permute.xlu0 0
    %974 = vperm.xlu0 %973, %v972
    %v975 = vpop.permute.xlu0 %974
    %vm976 = vcmp.eq.s32.totalorder %v975, 1
    %v977 = vsel %vm976, %v970, 0.0
    %s978 = scalar_lea.vmem [#allocation3], 56
    %v979 = vld [vmem:[%s978] sm:$0xff]
    %v980 = vadd.f32 %v979, %v977
    %981 = vst [vmem:[%s978] sm:$0xff] %v980
    %s982 = scalar_lea.vmem [#allocation2], 48
    %v983 = vld [vmem:[%s982] sm:$0xff]
    %v984 = vld [vmem:[%s982 + $0x8] sm:$0xff]
    %v985 = vld [vmem:[%s982 + $0x10] sm:$0xff]
    %986 = vmatprep.subr.mxu0 %v510
    %987 = vmatpush1.msra.mxu0 %v509
    %988 = vmatprep.subr.mxu0 %v513
    %989 = vmatpush1.msra.mxu0 %v512
    %990 = vmatprep.subr.mxu0 %v516
    %991 = vmatpush1.msra.mxu0 %v515
    %992 = vmatprep.subr.mxu0 %v519
    %993 = vmatpush1.msra.mxu0 %v518
    %994 = vmatprep.subr.mxu0 %v522
    %995 = vmatpush1.msra.mxu0 %v521
    %996 = vmatprep.subr.mxu0 %v525
    %997 = vmatpush1.msra.mxu0 %v524
    %998 = vmatprep.subr.mxu0 %v528
    %999 = vmatpush1.msra.mxu0 %v527
    %1000 = vmatprep.subr.mxu0 %v531
    %1001 = vmatpush1.msra.mxu0 %v530
    %1002 = vmatprep.subr.mxu0 %v534
    %1003 = vmatpush1.msra.mxu0 %v533
    %1004 = vmatprep.subr.mxu0 %v537
    %1005 = vmatpush1.msra.mxu0 %v536
    %1006 = vmatprep.subr.mxu0 %v540
    %1007 = vmatpush1.msra.mxu0 %v539
    %1008 = vmatprep.subr.mxu0 %v543
    %1009 = vmatpush1.msra.mxu0 %v542
    %1010 = vmatprep.subr.mxu0 %v546
    %1011 = vmatpush1.msra.mxu0 %v545
    %1012 = vmatprep.subr.mxu0 %v549
    %1013 = vmatpush1.msra.mxu0 %v548
    %1014 = vmatprep.subr.mxu0 %v552
    %1015 = vmatpush1.msra.mxu0 %v551
    %1016 = vmatprep.subr.mxu0 %v555
    %1017 = vmatpush1.msra.mxu0 %v554
    %1018 = vmatprep.subr.mxu0 0.0
    %1019 = vmatpush1.msra.mxu0 0.0
    %1020 = vmatprep.subr.mxu0 0.0
    %1021 = vmatpush1.msra.mxu0 0.0
    %1022 = vmatprep.subr.mxu0 0.0
    %1023 = vmatpush1.msra.mxu0 0.0
    %1024 = vmatprep.subr.mxu0 0.0
    %1025 = vmatpush1.msra.mxu0 0.0
    %1026 = vmatprep.subr.mxu0 0.0
    %1027 = vmatpush1.msra.mxu0 0.0
    %1028 = vmatprep.subr.mxu0 0.0
    %1029 = vmatpush1.msra.mxu0 0.0
    %1030 = vmatprep.subr.mxu0 0.0
    %1031 = vmatpush1.msra.mxu0 0.0
    %1032 = vmatprep.subr.mxu0 0.0
    %1033 = vmatpush1.msra.mxu0 0.0
    %1034 = vmatprep.subr.mxu0 0.0
    %1035 = vmatpush1.msra.mxu0 0.0
    %1036 = vmatprep.subr.mxu0 0.0
    %1037 = vmatpush1.msra.mxu0 0.0
    %1038 = vmatprep.subr.mxu0 0.0
    %1039 = vmatpush1.msra.mxu0 0.0
    %1040 = vmatprep.subr.mxu0 0.0
    %1041 = vmatpush1.msra.mxu0 0.0
    %1042 = vmatprep.subr.mxu0 0.0
    %1043 = vmatpush1.msra.mxu0 0.0
    %1044 = vmatprep.subr.mxu0 0.0
    %1045 = vmatpush1.msra.mxu0 0.0
    %1046 = vmatprep.subr.mxu0 0.0
    %1047 = vmatpush1.msra.mxu0 0.0
    %1048 = vmatprep.subr.mxu0 0.0
    %1049 = vmatpush1.msra.mxu0 0.0
    %1050 = vmatprep.mubr.f32.mxu0 0.0
    %1051 = vmatmul.mubr.f32.gmra.mrb[0].mxu0 %v800
    %v1052 = vpop.f32.mrb[0].mxu0
    %v1053 = vadd.f32 0.0, %v1052
    %v1054 = vpop.f32.mrb[0].mxu0
    %v1055 = vadd.f32 0.0, %v1054
    %1056 = vdwg.mxu0
    %1057 = vmatprep.subr.mxu0 0.0
    %1058 = vmatpush1.msra.mxu0 %v511
    %1059 = vmatprep.subr.mxu0 0.0
    %1060 = vmatpush1.msra.mxu0 %v514
    %1061 = vmatprep.subr.mxu0 0.0
    %1062 = vmatpush1.msra.mxu0 %v517
    %1063 = vmatprep.subr.mxu0 0.0
    %1064 = vmatpush1.msra.mxu0 %v520
    %1065 = vmatprep.subr.mxu0 0.0
    %1066 = vmatpush1.msra.mxu0 %v523
    %1067 = vmatprep.subr.mxu0 0.0
    %1068 = vmatpush1.msra.mxu0 %v526
    %1069 = vmatprep.subr.mxu0 0.0
    %1070 = vmatpush1.msra.mxu0 %v529
    %1071 = vmatprep.subr.mxu0 0.0
    %1072 = vmatpush1.msra.mxu0 %v532
    %1073 = vmatprep.subr.mxu0 0.0
    %1074 = vmatpush1.msra.mxu0 %v535
    %1075 = vmatprep.subr.mxu0 0.0
    %1076 = vmatpush1.msra.mxu0 %v538
    %1077 = vmatprep.subr.mxu0 0.0
    %1078 = vmatpush1.msra.mxu0 %v541
    %1079 = vmatprep.subr.mxu0 0.0
    %1080 = vmatpush1.msra.mxu0 %v544
    %1081 = vmatprep.subr.mxu0 0.0
    %1082 = vmatpush1.msra.mxu0 %v547
    %1083 = vmatprep.subr.mxu0 0.0
    %1084 = vmatpush1.msra.mxu0 %v550
    %1085 = vmatprep.subr.mxu0 0.0
    %1086 = vmatpush1.msra.mxu0 %v553
    %1087 = vmatprep.subr.mxu0 0.0
    %1088 = vmatpush1.msra.mxu0 %v556
    %1089 = vmatprep.subr.mxu0 0.0
    %1090 = vmatpush1.msra.mxu0 0.0
    %1091 = vmatprep.subr.mxu0 0.0
    %1092 = vmatpush1.msra.mxu0 0.0
    %1093 = vmatprep.subr.mxu0 0.0
    %1094 = vmatpush1.msra.mxu0 0.0
    %1095 = vmatprep.subr.mxu0 0.0
    %1096 = vmatpush1.msra.mxu0 0.0
    %1097 = vmatprep.subr.mxu0 0.0
    %1098 = vmatpush1.msra.mxu0 0.0
    %1099 = vmatprep.subr.mxu0 0.0
    %1100 = vmatpush1.msra.mxu0 0.0
    %1101 = vmatprep.subr.mxu0 0.0
    %1102 = vmatpush1.msra.mxu0 0.0
    %1103 = vmatprep.subr.mxu0 0.0
    %1104 = vmatpush1.msra.mxu0 0.0
    %1105 = vmatprep.subr.mxu0 0.0
    %1106 = vmatpush1.msra.mxu0 0.0
    %1107 = vmatprep.subr.mxu0 0.0
    %1108 = vmatpush1.msra.mxu0 0.0
    %1109 = vmatprep.subr.mxu0 0.0
    %1110 = vmatpush1.msra.mxu0 0.0
    %1111 = vmatprep.subr.mxu0 0.0
    %1112 = vmatpush1.msra.mxu0 0.0
    %1113 = vmatprep.subr.mxu0 0.0
    %1114 = vmatpush1.msra.mxu0 0.0
    %1115 = vmatprep.subr.mxu0 0.0
    %1116 = vmatpush1.msra.mxu0 0.0
    %1117 = vmatprep.subr.mxu0 0.0
    %1118 = vmatpush1.msra.mxu0 0.0
    %1119 = vmatprep.subr.mxu0 0.0
    %1120 = vmatpush1.msra.mxu0 0.0
    %1121 = vmatprep.mubr.f32.mxu0 0.0
    %1122 = vmatmul.mubr.f32.gmra.mrb[0].mxu0 %v800
    %v1123 = vpop.f32.mrb[0].mxu0
    %v1124 = vadd.f32 0.0, %v1123
    %v1125 = vpop.f32.mrb[0].mxu0
    %1126 = vdwg.mxu0
    %v1127 = vadd.f32 %v983, %v1053
    %v1128 = vxor.u32 %v1127, 2147483648
    %v1129 = vmul.f32 %v1128, 1.442695
    %v1130 = vpow.pop %v1129
    %v1131 = vadd.f32 %v1130, 1.0
    %v1132 = vrcp.pop %v1131
    %v1133 = vmul.f32 1.0, %v1132
    %v1134 = vadd.f32 %v984, %v1055
    %v1135 = vxor.u32 %v1134, 2147483648
    %v1136 = vmul.f32 %v1135, 1.442695
    %v1137 = vpow.pop %v1136
    %v1138 = vadd.f32 %v1137, 1.0
    %v1139 = vrcp.pop %v1138
    %v1140 = vmul.f32 1.0, %v1139
    %v1141 = vadd.f32 %v1124, %v610
    %v1142 = vmul.f32 %v1133, %v1141
    %v1143 = vadd.f32 %v985, %v1142
    %v1144 = vtanh.pop %v1143
    %v1145 = vsub.f32 1.0, %v1140
    %v1146 = vmul.f32 %v1145, %v1144
    %v1147 = vmul.f32 %v1140, %v800
    %v1148 = vadd.f32 %v1146, %v1147
    %vm1149 = vcmp.gt.s32.totalorder %v619, 1
    %v1150 = vsel %vm1149, 1, 0
    %1151 = vset.pattern.permute.xlu0 0
    %1152 = vperm.xlu0 %1151, %v1150
    %v1153 = vpop.permute.xlu0 %1152
    %vm1154 = vcmp.eq.s32.totalorder %v1153, 1
    %v1155 = vsel %vm1154, %v1148, %v800
    %s1156 = scalar_lea.vmem [#allocation3], 8
    %v1157 = vld [vmem:[%s1156] sm:$0xff]
    %v1158 = vsel %vm1154, %v1148, 0.0
    %v1159 = vadd.f32 %v1157, %v1158
    %1160 = vst [vmem:[%s1156] sm:$0xff] %v1159
    %s1161 = scalar_lea.vmem [#allocation2], 288
    %v1162 = vld [vmem:[%s1161 + $0x18] sm:$0xff]
    %v1163 = vld [vmem:[%s1161 + $0x20] sm:$0xff]
    %v1164 = vld [vmem:[%s1161 + $0x28] sm:$0xff]
    %1165 = vmatprep.subr.mxu0 %v558
    %1166 = vmatpush1.msra.mxu0 %v557
    %1167 = vmatprep.subr.mxu0 %v561
    %1168 = vmatpush1.msra.mxu0 %v560
    %1169 = vmatprep.subr.mxu0 %v564
    %1170 = vmatpush1.msra.mxu0 %v563
    %1171 = vmatprep.subr.mxu0 %v567
    %1172 = vmatpush1.msra.mxu0 %v566
    %1173 = vmatprep.subr.mxu0 %v570
    %1174 = vmatpush1.msra.mxu0 %v569
    %1175 = vmatprep.subr.mxu0 %v573
    %1176 = vmatpush1.msra.mxu0 %v572
    %1177 = vmatprep.subr.mxu0 %v576
    %1178 = vmatpush1.msra.mxu0 %v575
    %1179 = vmatprep.subr.mxu0 %v579
    %1180 = vmatpush1.msra.mxu0 %v578
    %1181 = vmatprep.subr.mxu0 %v582
    %1182 = vmatpush1.msra.mxu0 %v581
    %1183 = vmatprep.subr.mxu0 %v585
    %1184 = vmatpush1.msra.mxu0 %v584
    %1185 = vmatprep.subr.mxu0 %v588
    %1186 = vmatpush1.msra.mxu0 %v587
    %1187 = vmatprep.subr.mxu0 %v591
    %1188 = vmatpush1.msra.mxu0 %v590
    %1189 = vmatprep.subr.mxu0 %v594
    %1190 = vmatpush1.msra.mxu0 %v593
    %1191 = vmatprep.subr.mxu0 %v597
    %1192 = vmatpush1.msra.mxu0 %v596
    %1193 = vmatprep.subr.mxu0 %v600
    %1194 = vmatpush1.msra.mxu0 %v599
    %1195 = vmatprep.subr.mxu0 %v603
    %1196 = vmatpush1.msra.mxu0 %v602
    %1197 = vmatprep.subr.mxu0 0.0
    %1198 = vmatpush1.msra.mxu0 0.0
    %1199 = vmatprep.subr.mxu0 0.0
    %1200 = vmatpush1.msra.mxu0 0.0
    %1201 = vmatprep.subr.mxu0 0.0
    %1202 = vmatpush1.msra.mxu0 0.0
    %1203 = vmatprep.subr.mxu0 0.0
    %1204 = vmatpush1.msra.mxu0 0.0
    %1205 = vmatprep.subr.mxu0 0.0
    %1206 = vmatpush1.msra.mxu0 0.0
    %1207 = vmatprep.subr.mxu0 0.0
    %1208 = vmatpush1.msra.mxu0 0.0
    %1209 = vmatprep.subr.mxu0 0.0
    %1210 = vmatpush1.msra.mxu0 0.0
    %1211 = vmatprep.subr.mxu0 0.0
    %1212 = vmatpush1.msra.mxu0 0.0
    %1213 = vmatprep.subr.mxu0 0.0
    %1214 = vmatpush1.msra.mxu0 0.0
    %1215 = vmatprep.subr.mxu0 0.0
    %1216 = vmatpush1.msra.mxu0 0.0
    %1217 = vmatprep.subr.mxu0 0.0
    %1218 = vmatpush1.msra.mxu0 0.0
    %1219 = vmatprep.subr.mxu0 0.0
    %1220 = vmatpush1.msra.mxu0 0.0
    %1221 = vmatprep.subr.mxu0 0.0
    %1222 = vmatpush1.msra.mxu0 0.0
    %1223 = vmatprep.subr.mxu0 0.0
    %1224 = vmatpush1.msra.mxu0 0.0
    %1225 = vmatprep.subr.mxu0 0.0
    %1226 = vmatpush1.msra.mxu0 0.0
    %1227 = vmatprep.subr.mxu0 0.0
    %1228 = vmatpush1.msra.mxu0 0.0
    %1229 = vmatprep.mubr.f32.mxu0 0.0
    %1230 = vmatmul.mubr.f32.gmra.mrb[0].mxu0 %v977
    %v1231 = vpop.f32.mrb[0].mxu0
    %v1232 = vadd.f32 0.0, %v1231
    %v1233 = vpop.f32.mrb[0].mxu0
    %v1234 = vadd.f32 0.0, %v1233
    %1235 = vdwg.mxu0
    %1236 = vmatprep.subr.mxu0 0.0
    %1237 = vmatpush1.msra.mxu0 %v559
    %1238 = vmatprep.subr.mxu0 0.0
    %1239 = vmatpush1.msra.mxu0 %v562
    %1240 = vmatprep.subr.mxu0 0.0
    %1241 = vmatpush1.msra.mxu0 %v565
    %1242 = vmatprep.subr.mxu0 0.0
    %1243 = vmatpush1.msra.mxu0 %v568
    %1244 = vmatprep.subr.mxu0 0.0
    %1245 = vmatpush1.msra.mxu0 %v571
    %1246 = vmatprep.subr.mxu0 0.0
    %1247 = vmatpush1.msra.mxu0 %v574
    %1248 = vmatprep.subr.mxu0 0.0
    %1249 = vmatpush1.msra.mxu0 %v577
    %1250 = vmatprep.subr.mxu0 0.0
    %1251 = vmatpush1.msra.mxu0 %v580
    %1252 = vmatprep.subr.mxu0 0.0
    %1253 = vmatpush1.msra.mxu0 %v583
    %1254 = vmatprep.subr.mxu0 0.0
    %1255 = vmatpush1.msra.mxu0 %v586
    %1256 = vmatprep.subr.mxu0 0.0
    %1257 = vmatpush1.msra.mxu0 %v589
    %1258 = vmatprep.subr.mxu0 0.0
    %1259 = vmatpush1.msra.mxu0 %v592
    %1260 = vmatprep.subr.mxu0 0.0
    %1261 = vmatpush1.msra.mxu0 %v595
    %1262 = vmatprep.subr.mxu0 0.0
    %1263 = vmatpush1.msra.mxu0 %v598
    %1264 = vmatprep.subr.mxu0 0.0
    %1265 = vmatpush1.msra.mxu0 %v601
    %1266 = vmatprep.subr.mxu0 0.0
    %1267 = vmatpush1.msra.mxu0 %v604
    %1268 = vmatprep.subr.mxu0 0.0
    %1269 = vmatpush1.msra.mxu0 0.0
    %1270 = vmatprep.subr.mxu0 0.0
    %1271 = vmatpush1.msra.mxu0 0.0
    %1272 = vmatprep.subr.mxu0 0.0
    %1273 = vmatpush1.msra.mxu0 0.0
    %1274 = vmatprep.subr.mxu0 0.0
    %1275 = vmatpush1.msra.mxu0 0.0
    %1276 = vmatprep.subr.mxu0 0.0
    %1277 = vmatpush1.msra.mxu0 0.0
    %1278 = vmatprep.subr.mxu0 0.0
    %1279 = vmatpush1.msra.mxu0 0.0
    %1280 = vmatprep.subr.mxu0 0.0
    %1281 = vmatpush1.msra.mxu0 0.0
    %1282 = vmatprep.subr.mxu0 0.0
    %1283 = vmatpush1.msra.mxu0 0.0
    %1284 = vmatprep.subr.mxu0 0.0
    %1285 = vmatpush1.msra.mxu0 0.0
    %1286 = vmatprep.subr.mxu0 0.0
    %1287 = vmatpush1.msra.mxu0 0.0
    %1288 = vmatprep.subr.mxu0 0.0
    %1289 = vmatpush1.msra.mxu0 0.0
    %1290 = vmatprep.subr.mxu0 0.0
    %1291 = vmatpush1.msra.mxu0 0.0
    %1292 = vmatprep.subr.mxu0 0.0
    %1293 = vmatpush1.msra.mxu0 0.0
    %1294 = vmatprep.subr.mxu0 0.0
    %1295 = vmatpush1.msra.mxu0 0.0
    %1296 = vmatprep.subr.mxu0 0.0
    %1297 = vmatpush1.msra.mxu0 0.0
    %1298 = vmatprep.subr.mxu0 0.0
    %1299 = vmatpush1.msra.mxu0 0.0
    %1300 = vmatprep.mubr.f32.mxu0 0.0
    %1301 = vmatmul.mubr.f32.gmra.mrb[0].mxu0 %v977
    %v1302 = vpop.f32.mrb[0].mxu0
    %v1303 = vadd.f32 0.0, %v1302
    %v1304 = vpop.f32.mrb[0].mxu0
    %1305 = vdwg.mxu0
    %v1306 = vadd.f32 %v1162, %v1232
    %v1307 = vxor.u32 %v1306, 2147483648
    %v1308 = vmul.f32 %v1307, 1.442695
    %v1309 = vpow.pop %v1308
    %v1310 = vadd.f32 %v1309, 1.0
    %v1311 = vrcp.pop %v1310
    %v1312 = vmul.f32 1.0, %v1311
    %v1313 = vadd.f32 %v1163, %v1234
    %v1314 = vxor.u32 %v1313, 2147483648
    %v1315 = vmul.f32 %v1314, 1.442695
    %v1316 = vpow.pop %v1315
    %v1317 = vadd.f32 %v1316, 1.0
    %v1318 = vrcp.pop %v1317
    %v1319 = vmul.f32 1.0, %v1318
    %v1320 = vadd.f32 %v1303, %v617
    %v1321 = vmul.f32 %v1312, %v1320
    %v1322 = vadd.f32 %v1164, %v1321
    %v1323 = vtanh.pop %v1322
    %v1324 = vsub.f32 1.0, %v1319
    %v1325 = vmul.f32 %v1324, %v1323
    %v1326 = vmul.f32 %v1319, %v977
    %v1327 = vadd.f32 %v1325, %v1326
    %vm1328 = vcmp.gt.s32.totalorder %v619, 6
    %v1329 = vsel %vm1328, 1, 0
    %1330 = vset.pattern.permute.xlu0 0
    %1331 = vperm.xlu0 %1330, %v1329
    %v1332 = vpop.permute.xlu0 %1331
    %vm1333 = vcmp.eq.s32.totalorder %v1332, 1
    %v1334 = vsel %vm1333, %v1327, %v977
    %s1335 = scalar_lea.vmem [#allocation3], 48
    %v1336 = vld [vmem:[%s1335] sm:$0xff]
    %v1337 = vsel %vm1333, %v1327, 0.0
    %v1338 = vadd.f32 %v1336, %v1337
    %1339 = vst [vmem:[%s1335] sm:$0xff] %v1338
    %s1340 = scalar_lea.vmem [#allocation2], 96
    %v1341 = vld [vmem:[%s1340] sm:$0xff]
    %v1342 = vld [vmem:[%s1340 + $0x8] sm:$0xff]
    %v1343 = vld [vmem:[%s1340 + $0x10] sm:$0xff]
    %1344 = vmatprep.subr.mxu0 %v510
    %1345 = vmatpush1.msra.mxu0 %v509
    %1346 = vmatprep.subr.mxu0 %v513
    %1347 = vmatpush1.msra.mxu0 %v512
    %1348 = vmatprep.subr.mxu0 %v516
    %1349 = vmatpush1.msra.mxu0 %v515
    %1350 = vmatprep.subr.mxu0 %v519
    %1351 = vmatpush1.msra.mxu0 %v518
    %1352 = vmatprep.subr.mxu0 %v522
    %1353 = vmatpush1.msra.mxu0 %v521
    %1354 = vmatprep.subr.mxu0 %v525
    %1355 = vmatpush1.msra.mxu0 %v524
    %1356 = vmatprep.subr.mxu0 %v528
    %1357 = vmatpush1.msra.mxu0 %v527
    %1358 = vmatprep.subr.mxu0 %v531
    %1359 = vmatpush1.msra.mxu0 %v530
    %1360 = vmatprep.subr.mxu0 %v534
    %1361 = vmatpush1.msra.mxu0 %v533
    %1362 = vmatprep.subr.mxu0 %v537
    %1363 = vmatpush1.msra.mxu0 %v536
    %1364 = vmatprep.subr.mxu0 %v540
    %1365 = vmatpush1.msra.mxu0 %v539
    %1366 = vmatprep.subr.mxu0 %v543
    %1367 = vmatpush1.msra.mxu0 %v542
    %1368 = vmatprep.subr.mxu0 %v546
    %1369 = vmatpush1.msra.mxu0 %v545
    %1370 = vmatprep.subr.mxu0 %v549
    %1371 = vmatpush1.msra.mxu0 %v548
    %1372 = vmatprep.subr.mxu0 %v552
    %1373 = vmatpush1.msra.mxu0 %v551
    %1374 = vmatprep.subr.mxu0 %v555
    %1375 = vmatpush1.msra.mxu0 %v554
    %1376 = vmatprep.subr.mxu0 0.0
    %1377 = vmatpush1.msra.mxu0 0.0
    %1378 = vmatprep.subr.mxu0 0.0
    %1379 = vmatpush1.msra.mxu0 0.0
    %1380 = vmatprep.subr.mxu0 0.0
    %1381 = vmatpush1.msra.mxu0 0.0
    %1382 = vmatprep.subr.mxu0 0.0
    %1383 = vmatpush1.msra.mxu0 0.0
    %1384 = vmatprep.subr.mxu0 0.0
    %1385 = vmatpush1.msra.mxu0 0.0
    %1386 = vmatprep.subr.mxu0 0.0
    %1387 = vmatpush1.msra.mxu0 0.0
    %1388 = vmatprep.subr.mxu0 0.0
    %1389 = vmatpush1.msra.mxu0 0.0
    %1390 = vmatprep.subr.mxu0 0.0
    %1391 = vmatpush1.msra.mxu0 0.0
    %1392 = vmatprep.subr.mxu0 0.0
    %1393 = vmatpush1.msra.mxu0 0.0
    %1394 = vmatprep.subr.mxu0 0.0
    %1395 = vmatpush1.msra.mxu0 0.0
    %1396 = vmatprep.subr.mxu0 0.0
    %1397 = vmatpush1.msra.mxu0 0.0
    %1398 = vmatprep.subr.mxu0 0.0
    %1399 = vmatpush1.msra.mxu0 0.0
    %1400 = vmatprep.subr.mxu0 0.0
    %1401 = vmatpush1.msra.mxu0 0.0
    %1402 = vmatprep.subr.mxu0 0.0
    %1403 = vmatpush1.msra.mxu0 0.0
    %1404 = vmatprep.subr.mxu0 0.0
    %1405 = vmatpush1.msra.mxu0 0.0
    %1406 = vmatprep.subr.mxu0 0.0
    %1407 = vmatpush1.msra.mxu0 0.0
    %1408 = vmatprep.mubr.f32.mxu0 0.0
    %1409 = vmatmul.mubr.f32.gmra.mrb[0].mxu0 %v1155
    %v1410 = vpop.f32.mrb[0].mxu0
    %v1411 = vadd.f32 0.0, %v1410
    %v1412 = vpop.f32.mrb[0].mxu0
    %v1413 = vadd.f32 0.0, %v1412
    %1414 = vdwg.mxu0
    %1415 = vmatprep.subr.mxu0 0.0
    %1416 = vmatpush1.msra.mxu0 %v511
    %1417 = vmatprep.subr.mxu0 0.0
    %1418 = vmatpush1.msra.mxu0 %v514
    %1419 = vmatprep.subr.mxu0 0.0
    %1420 = vmatpush1.msra.mxu0 %v517
    %1421 = vmatprep.subr.mxu0 0.0
    %1422 = vmatpush1.msra.mxu0 %v520
    %1423 = vmatprep.subr.mxu0 0.0
    %1424 = vmatpush1.msra.mxu0 %v523
    %1425 = vmatprep.subr.mxu0 0.0
    %1426 = vmatpush1.msra.mxu0 %v526
    %1427 = vmatprep.subr.mxu0 0.0
    %1428 = vmatpush1.msra.mxu0 %v529
    %1429 = vmatprep.subr.mxu0 0.0
    %1430 = vmatpush1.msra.mxu0 %v532
    %1431 = vmatprep.subr.mxu0 0.0
    %1432 = vmatpush1.msra.mxu0 %v535
    %1433 = vmatprep.subr.mxu0 0.0
    %1434 = vmatpush1.msra.mxu0 %v538
    %1435 = vmatprep.subr.mxu0 0.0
    %1436 = vmatpush1.msra.mxu0 %v541
    %1437 = vmatprep.subr.mxu0 0.0
    %1438 = vmatpush1.msra.mxu0 %v544
    %1439 = vmatprep.subr.mxu0 0.0
    %1440 = vmatpush1.msra.mxu0 %v547
    %1441 = vmatprep.subr.mxu0 0.0
    %1442 = vmatpush1.msra.mxu0 %v550
    %1443 = vmatprep.subr.mxu0 0.0
    %1444 = vmatpush1.msra.mxu0 %v553
    %1445 = vmatprep.subr.mxu0 0.0
    %1446 = vmatpush1.msra.mxu0 %v556
    %1447 = vmatprep.subr.mxu0 0.0
    %1448 = vmatpush1.msra.mxu0 0.0
    %1449 = vmatprep.subr.mxu0 0.0
    %1450 = vmatpush1.msra.mxu0 0.0
    %1451 = vmatprep.subr.mxu0 0.0
    %1452 = vmatpush1.msra.mxu0 0.0
    %1453 = vmatprep.subr.mxu0 0.0
    %1454 = vmatpush1.msra.mxu0 0.0
    %1455 = vmatprep.subr.mxu0 0.0
    %1456 = vmatpush1.msra.mxu0 0.0
    %1457 = vmatprep.subr.mxu0 0.0
    %1458 = vmatpush1.msra.mxu0 0.0
    %1459 = vmatprep.subr.mxu0 0.0
    %1460 = vmatpush1.msra.mxu0 0.0
    %1461 = vmatprep.subr.mxu0 0.0
    %1462 = vmatpush1.msra.mxu0 0.0
    %1463 = vmatprep.subr.mxu0 0.0
    %1464 = vmatpush1.msra.mxu0 0.0
    %1465 = vmatprep.subr.mxu0 0.0
    %1466 = vmatpush1.msra.mxu0 0.0
    %1467 = vmatprep.subr.mxu0 0.0
    %1468 = vmatpush1.msra.mxu0 0.0
    %1469 = vmatprep.subr.mxu0 0.0
    %1470 = vmatpush1.msra.mxu0 0.0
    %1471 = vmatprep.subr.mxu0 0.0
    %1472 = vmatpush1.msra.mxu0 0.0
    %1473 = vmatprep.subr.mxu0 0.0
    %1474 = vmatpush1.msra.mxu0 0.0
    %1475 = vmatprep.subr.mxu0 0.0
    %1476 = vmatpush1.msra.mxu0 0.0
    %1477 = vmatprep.subr.mxu0 0.0
    %1478 = vmatpush1.msra.mxu0 0.0
    %1479 = vmatprep.mubr.f32.mxu0 0.0
    %1480 = vmatmul.mubr.f32.gmra.mrb[0].mxu0 %v1155
    %v1481 = vpop.f32.mrb[0].mxu0
    %v1482 = vadd.f32 0.0, %v1481
    %v1483 = vpop.f32.mrb[0].mxu0
    %1484 = vdwg.mxu0
    %v1485 = vadd.f32 %v1341, %v1411
    %v1486 = vxor.u32 %v1485, 2147483648
    %v1487 = vmul.f32 %v1486, 1.442695
    %v1488 = vpow.pop %v1487
    %v1489 = vadd.f32 %v1488, 1.0
    %v1490 = vrcp.pop %v1489
    %v1491 = vmul.f32 1.0, %v1490
    %v1492 = vadd.f32 %v1342, %v1413
    %v1493 = vxor.u32 %v1492, 2147483648
    %v1494 = vmul.f32 %v1493, 1.442695
    %v1495 = vpow.pop %v1494
    %v1496 = vadd.f32 %v1495, 1.0
    %v1497 = vrcp.pop %v1496
    %v1498 = vmul.f32 1.0, %v1497
    %v1499 = vadd.f32 %v1482, %v610
    %v1500 = vmul.f32 %v1491, %v1499
    %v1501 = vadd.f32 %v1343, %v1500
    %v1502 = vtanh.pop %v1501
    %v1503 = vsub.f32 1.0, %v1498
    %v1504 = vmul.f32 %v1503, %v1502
    %v1505 = vmul.f32 %v1498, %v1155
    %v1506 = vadd.f32 %v1504, %v1505
    %vm1507 = vcmp.gt.s32.totalorder %v619, 2
    %v1508 = vsel %vm1507, 1, 0
    %1509 = vset.pattern.permute.xlu0 0
    %1510 = vperm.xlu0 %1509, %v1508
    %v1511 = vpop.permute.xlu0 %1510
    %vm1512 = vcmp.eq.s32.totalorder %v1511, 1
    %v1513 = vsel %vm1512, %v1506, %v1155
    %s1514 = scalar_lea.vmem [#allocation3], 16
    %v1515 = vld [vmem:[%s1514] sm:$0xff]
    %v1516 = vsel %vm1512, %v1506, 0.0
    %v1517 = vadd.f32 %v1515, %v1516
    %1518 = vst [vmem:[%s1514] sm:$0xff] %v1517
    %s1519 = scalar_lea.vmem [#allocation2], 240
    %v1520 = vld [vmem:[%s1519 + $0x18] sm:$0xff]
    %v1521 = vld [vmem:[%s1519 + $0x20] sm:$0xff]
    %v1522 = vld [vmem:[%s1519 + $0x28] sm:$0xff]
    %1523 = vmatprep.subr.mxu0 %v558
    %1524 = vmatpush1.msra.mxu0 %v557
    %1525 = vmatprep.subr.mxu0 %v561
    %1526 = vmatpush1.msra.mxu0 %v560
    %1527 = vmatprep.subr.mxu0 %v564
    %1528 = vmatpush1.msra.mxu0 %v563
    %1529 = vmatprep.subr.mxu0 %v567
    %1530 = vmatpush1.msra.mxu0 %v566
    %1531 = vmatprep.subr.mxu0 %v570
    %1532 = vmatpush1.msra.mxu0 %v569
    %1533 = vmatprep.subr.mxu0 %v573
    %1534 = vmatpush1.msra.mxu0 %v572
    %1535 = vmatprep.subr.mxu0 %v576
    %1536 = vmatpush1.msra.mxu0 %v575
    %1537 = vmatprep.subr.mxu0 %v579
    %1538 = vmatpush1.msra.mxu0 %v578
    %1539 = vmatprep.subr.mxu0 %v582
    %1540 = vmatpush1.msra.mxu0 %v581
    %1541 = vmatprep.subr.mxu0 %v585
    %1542 = vmatpush1.msra.mxu0 %v584
    %1543 = vmatprep.subr.mxu0 %v588
    %1544 = vmatpush1.msra.mxu0 %v587
    %1545 = vmatprep.subr.mxu0 %v591
    %1546 = vmatpush1.msra.mxu0 %v590
    %1547 = vmatprep.subr.mxu0 %v594
    %1548 = vmatpush1.msra.mxu0 %v593
    %1549 = vmatprep.subr.mxu0 %v597
    %1550 = vmatpush1.msra.mxu0 %v596
    %1551 = vmatprep.subr.mxu0 %v600
    %1552 = vmatpush1.msra.mxu0 %v599
    %1553 = vmatprep.subr.mxu0 %v603
    %1554 = vmatpush1.msra.mxu0 %v602
    %1555 = vmatprep.subr.mxu0 0.0
    %1556 = vmatpush1.msra.mxu0 0.0
    %1557 = vmatprep.subr.mxu0 0.0
    %1558 = vmatpush1.msra.mxu0 0.0
    %1559 = vmatprep.subr.mxu0 0.0
    %1560 = vmatpush1.msra.mxu0 0.0
    %1561 = vmatprep.subr.mxu0 0.0
    %1562 = vmatpush1.msra.mxu0 0.0
    %1563 = vmatprep.subr.mxu0 0.0
    %1564 = vmatpush1.msra.mxu0 0.0
    %1565 = vmatprep.subr.mxu0 0.0
    %1566 = vmatpush1.msra.mxu0 0.0
    %1567 = vmatprep.subr.mxu0 0.0
    %1568 = vmatpush1.msra.mxu0 0.0
    %1569 = vmatprep.subr.mxu0 0.0
    %1570 = vmatpush1.msra.mxu0 0.0
    %1571 = vmatprep.subr.mxu0 0.0
    %1572 = vmatpush1.msra.mxu0 0.0
    %1573 = vmatprep.subr.mxu0 0.0
    %1574 = vmatpush1.msra.mxu0 0.0
    %1575 = vmatprep.subr.mxu0 0.0
    %1576 = vmatpush1.msra.mxu0 0.0
    %1577 = vmatprep.subr.mxu0 0.0
    %1578 = vmatpush1.msra.mxu0 0.0
    %1579 = vmatprep.subr.mxu0 0.0
    %1580 = vmatpush1.msra.mxu0 0.0
    %1581 = vmatprep.subr.mxu0 0.0
    %1582 = vmatpush1.msra.mxu0 0.0
    %1583 = vmatprep.subr.mxu0 0.0
    %1584 = vmatpush1.msra.mxu0 0.0
    %1585 = vmatprep.subr.mxu0 0.0
    %1586 = vmatpush1.msra.mxu0 0.0
    %1587 = vmatprep.mubr.f32.mxu0 0.0
    %1588 = vmatmul.mubr.f32.gmra.mrb[0].mxu0 %v1334
    %v1589 = vpop.f32.mrb[0].mxu0
    %v1590 = vadd.f32 0.0, %v1589
    %v1591 = vpop.f32.mrb[0].mxu0
    %v1592 = vadd.f32 0.0, %v1591
    %1593 = vdwg.mxu0
    %1594 = vmatprep.subr.mxu0 0.0
    %1595 = vmatpush1.msra.mxu0 %v559
    %1596 = vmatprep.subr.mxu0 0.0
    %1597 = vmatpush1.msra.mxu0 %v562
    %1598 = vmatprep.subr.mxu0 0.0
    %1599 = vmatpush1.msra.mxu0 %v565
    %1600 = vmatprep.subr.mxu0 0.0
    %1601 = vmatpush1.msra.mxu0 %v568
    %1602 = vmatprep.subr.mxu0 0.0
    %1603 = vmatpush1.msra.mxu0 %v571
    %1604 = vmatprep.subr.mxu0 0.0
    %1605 = vmatpush1.msra.mxu0 %v574
    %1606 = vmatprep.subr.mxu0 0.0
    %1607 = vmatpush1.msra.mxu0 %v577
    %1608 = vmatprep.subr.mxu0 0.0
    %1609 = vmatpush1.msra.mxu0 %v580
    %1610 = vmatprep.subr.mxu0 0.0
    %1611 = vmatpush1.msra.mxu0 %v583
    %1612 = vmatprep.subr.mxu0 0.0
    %1613 = vmatpush1.msra.mxu0 %v586
    %1614 = vmatprep.subr.mxu0 0.0
    %1615 = vmatpush1.msra.mxu0 %v589
    %1616 = vmatprep.subr.mxu0 0.0
    %1617 = vmatpush1.msra.mxu0 %v592
    %1618 = vmatprep.subr.mxu0 0.0
    %1619 = vmatpush1.msra.mxu0 %v595
    %1620 = vmatprep.subr.mxu0 0.0
    %1621 = vmatpush1.msra.mxu0 %v598
    %1622 = vmatprep.subr.mxu0 0.0
    %1623 = vmatpush1.msra.mxu0 %v601
    %1624 = vmatprep.subr.mxu0 0.0
    %1625 = vmatpush1.msra.mxu0 %v604
    %1626 = vmatprep.subr.mxu0 0.0
    %1627 = vmatpush1.msra.mxu0 0.0
    %1628 = vmatprep.subr.mxu0 0.0
    %1629 = vmatpush1.msra.mxu0 0.0
    %1630 = vmatprep.subr.mxu0 0.0
    %1631 = vmatpush1.msra.mxu0 0.0
    %1632 = vmatprep.subr.mxu0 0.0
    %1633 = vmatpush1.msra.mxu0 0.0
    %1634 = vmatprep.subr.mxu0 0.0
    %1635 = vmatpush1.msra.mxu0 0.0
    %1636 = vmatprep.subr.mxu0 0.0
    %1637 = vmatpush1.msra.mxu0 0.0
    %1638 = vmatprep.subr.mxu0 0.0
    %1639 = vmatpush1.msra.mxu0 0.0
    %1640 = vmatprep.subr.mxu0 0.0
    %1641 = vmatpush1.msra.mxu0 0.0
    %1642 = vmatprep.subr.mxu0 0.0
    %1643 = vmatpush1.msra.mxu0 0.0
    %1644 = vmatprep.subr.mxu0 0.0
    %1645 = vmatpush1.msra.mxu0 0.0
    %1646 = vmatprep.subr.mxu0 0.0
    %1647 = vmatpush1.msra.mxu0 0.0
    %1648 = vmatprep.subr.mxu0 0.0
    %1649 = vmatpush1.msra.mxu0 0.0
    %1650 = vmatprep.subr.mxu0 0.0
    %1651 = vmatpush1.msra.mxu0 0.0
    %1652 = vmatprep.subr.mxu0 0.0
    %1653 = vmatpush1.msra.mxu0 0.0
    %1654 = vmatprep.subr.mxu0 0.0
    %1655 = vmatpush1.msra.mxu0 0.0
    %1656 = vmatprep.subr.mxu0 0.0
    %1657 = vmatpush1.msra.mxu0 0.0
    %1658 = vmatprep.mubr.f32.mxu0 0.0
    %1659 = vmatmul.mubr.f32.gmra.mrb[0].mxu0 %v1334
    %v1660 = vpop.f32.mrb[0].mxu0
    %v1661 = vadd.f32 0.0, %v1660
    %v1662 = vpop.f32.mrb[0].mxu0
    %1663 = vdwg.mxu0
    %v1664 = vadd.f32 %v1520, %v1590
    %v1665 = vxor.u32 %v1664, 2147483648
    %v1666 = vmul.f32 %v1665, 1.442695
    %v1667 = vpow.pop %v1666
    %v1668 = vadd.f32 %v1667, 1.0
    %v1669 = vrcp.pop %v1668
    %v1670 = vmul.f32 1.0, %v1669
    %v1671 = vadd.f32 %v1521, %v1592
    %v1672 = vxor.u32 %v1671, 2147483648
    %v1673 = vmul.f32 %v1672, 1.442695
    %v1674 = vpow.pop %v1673
    %v1675 = vadd.f32 %v1674, 1.0
    %v1676 = vrcp.pop %v1675
    %v1677 = vmul.f32 1.0, %v1676
    %v1678 = vadd.f32 %v1661, %v617
    %v1679 = vmul.f32 %v1670, %v1678
    %v1680 = vadd.f32 %v1522, %v1679
    %v1681 = vtanh.pop %v1680
    %v1682 = vsub.f32 1.0, %v1677
    %v1683 = vmul.f32 %v1682, %v1681
    %v1684 = vmul.f32 %v1677, %v1334
    %v1685 = vadd.f32 %v1683, %v1684
    %vm1686 = vcmp.gt.s32.totalorder %v619, 5
    %v1687 = vsel %vm1686, 1, 0
    %1688 = vset.pattern.permute.xlu0 0
    %1689 = vperm.xlu0 %1688, %v1687
    %v1690 = vpop.permute.xlu0 %1689
    %vm1691 = vcmp.eq.s32.totalorder %v1690, 1
    %v1692 = vsel %vm1691, %v1685, %v1334
    %s1693 = scalar_lea.vmem [#allocation3], 40
    %v1694 = vld [vmem:[%s1693] sm:$0xff]
    %v1695 = vsel %vm1691, %v1685, 0.0
    %v1696 = vadd.f32 %v1694, %v1695
    %1697 = vst [vmem:[%s1693] sm:$0xff] %v1696
    %s1698 = scalar_lea.vmem [#allocation2], 144
    %v1699 = vld [vmem:[%s1698] sm:$0xff]
    %v1700 = vld [vmem:[%s1698 + $0x8] sm:$0xff]
    %v1701 = vld [vmem:[%s1698 + $0x10] sm:$0xff]
    %1702 = vmatprep.subr.mxu0 %v510
    %1703 = vmatpush1.msra.mxu0 %v509
    %1704 = vmatprep.subr.mxu0 %v513
    %1705 = vmatpush1.msra.mxu0 %v512
    %1706 = vmatprep.subr.mxu0 %v516
    %1707 = vmatpush1.msra.mxu0 %v515
    %1708 = vmatprep.subr.mxu0 %v519
    %1709 = vmatpush1.msra.mxu0 %v518
    %1710 = vmatprep.subr.mxu0 %v522
    %1711 = vmatpush1.msra.mxu0 %v521
    %1712 = vmatprep.subr.mxu0 %v525
    %1713 = vmatpush1.msra.mxu0 %v524
    %1714 = vmatprep.subr.mxu0 %v528
    %1715 = vmatpush1.msra.mxu0 %v527
    %1716 = vmatprep.subr.mxu0 %v531
    %1717 = vmatpush1.msra.mxu0 %v530
    %1718 = vmatprep.subr.mxu0 %v534
    %1719 = vmatpush1.msra.mxu0 %v533
    %1720 = vmatprep.subr.mxu0 %v537
    %1721 = vmatpush1.msra.mxu0 %v536
    %1722 = vmatprep.subr.mxu0 %v540
    %1723 = vmatpush1.msra.mxu0 %v539
    %1724 = vmatprep.subr.mxu0 %v543
    %1725 = vmatpush1.msra.mxu0 %v542
    %1726 = vmatprep.subr.mxu0 %v546
    %1727 = vmatpush1.msra.mxu0 %v545
    %1728 = vmatprep.subr.mxu0 %v549
    %1729 = vmatpush1.msra.mxu0 %v548
    %1730 = vmatprep.subr.mxu0 %v552
    %1731 = vmatpush1.msra.mxu0 %v551
    %1732 = vmatprep.subr.mxu0 %v555
    %1733 = vmatpush1.msra.mxu0 %v554
    %1734 = vmatprep.subr.mxu0 0.0
    %1735 = vmatpush1.msra.mxu0 0.0
    %1736 = vmatprep.subr.mxu0 0.0
    %1737 = vmatpush1.msra.mxu0 0.0
    %1738 = vmatprep.subr.mxu0 0.0
    %1739 = vmatpush1.msra.mxu0 0.0
    %1740 = vmatprep.subr.mxu0 0.0
    %1741 = vmatpush1.msra.mxu0 0.0
    %1742 = vmatprep.subr.mxu0 0.0
    %1743 = vmatpush1.msra.mxu0 0.0
    %1744 = vmatprep.subr.mxu0 0.0
    %1745 = vmatpush1.msra.mxu0 0.0
    %1746 = vmatprep.subr.mxu0 0.0
    %1747 = vmatpush1.msra.mxu0 0.0
    %1748 = vmatprep.subr.mxu0 0.0
    %1749 = vmatpush1.msra.mxu0 0.0
    %1750 = vmatprep.subr.mxu0 0.0
    %1751 = vmatpush1.msra.mxu0 0.0
    %1752 = vmatprep.subr.mxu0 0.0
    %1753 = vmatpush1.msra.mxu0 0.0
    %1754 = vmatprep.subr.mxu0 0.0
    %1755 = vmatpush1.msra.mxu0 0.0
    %1756 = vmatprep.subr.mxu0 0.0
    %1757 = vmatpush1.msra.mxu0 0.0
    %1758 = vmatprep.subr.mxu0 0.0
    %1759 = vmatpush1.msra.mxu0 0.0
    %1760 = vmatprep.subr.mxu0 0.0
    %1761 = vmatpush1.msra.mxu0 0.0
    %1762 = vmatprep.subr.mxu0 0.0
    %1763 = vmatpush1.msra.mxu0 0.0
    %1764 = vmatprep.subr.mxu0 0.0
    %1765 = vmatpush1.msra.mxu0 0.0
    %1766 = vmatprep.mubr.f32.mxu0 0.0
    %1767 = vmatmul.mubr.f32.gmra.mrb[0].mxu0 %v1513
    %v1768 = vpop.f32.mrb[0].mxu0
    %v1769 = vadd.f32 0.0, %v1768
    %v1770 = vpop.f32.mrb[0].mxu0
    %v1771 = vadd.f32 0.0, %v1770
    %1772 = vdwg.mxu0
    %1773 = vmatprep.subr.mxu0 0.0
    %1774 = vmatpush1.msra.mxu0 %v511
    %1775 = vmatprep.subr.mxu0 0.0
    %1776 = vmatpush1.msra.mxu0 %v514
    %1777 = vmatprep.subr.mxu0 0.0
    %1778 = vmatpush1.msra.mxu0 %v517
    %1779 = vmatprep.subr.mxu0 0.0
    %1780 = vmatpush1.msra.mxu0 %v520
    %1781 = vmatprep.subr.mxu0 0.0
    %1782 = vmatpush1.msra.mxu0 %v523
    %1783 = vmatprep.subr.mxu0 0.0
    %1784 = vmatpush1.msra.mxu0 %v526
    %1785 = vmatprep.subr.mxu0 0.0
    %1786 = vmatpush1.msra.mxu0 %v529
    %1787 = vmatprep.subr.mxu0 0.0
    %1788 = vmatpush1.msra.mxu0 %v532
    %1789 = vmatprep.subr.mxu0 0.0
    %1790 = vmatpush1.msra.mxu0 %v535
    %1791 = vmatprep.subr.mxu0 0.0
    %1792 = vmatpush1.msra.mxu0 %v538
    %1793 = vmatprep.subr.mxu0 0.0
    %1794 = vmatpush1.msra.mxu0 %v541
    %1795 = vmatprep.subr.mxu0 0.0
    %1796 = vmatpush1.msra.mxu0 %v544
    %1797 = vmatprep.subr.mxu0 0.0
    %1798 = vmatpush1.msra.mxu0 %v547
    %1799 = vmatprep.subr.mxu0 0.0
    %1800 = vmatpush1.msra.mxu0 %v550
    %1801 = vmatprep.subr.mxu0 0.0
    %1802 = vmatpush1.msra.mxu0 %v553
    %1803 = vmatprep.subr.mxu0 0.0
    %1804 = vmatpush1.msra.mxu0 %v556
    %1805 = vmatprep.subr.mxu0 0.0
    %1806 = vmatpush1.msra.mxu0 0.0
    %1807 = vmatprep.subr.mxu0 0.0
    %1808 = vmatpush1.msra.mxu0 0.0
    %1809 = vmatprep.subr.mxu0 0.0
    %1810 = vmatpush1.msra.mxu0 0.0
    %1811 = vmatprep.subr.mxu0 0.0
    %1812 = vmatpush1.msra.mxu0 0.0
    %1813 = vmatprep.subr.mxu0 0.0
    %1814 = vmatpush1.msra.mxu0 0.0
    %1815 = vmatprep.subr.mxu0 0.0
    %1816 = vmatpush1.msra.mxu0 0.0
    %1817 = vmatprep.subr.mxu0 0.0
    %1818 = vmatpush1.msra.mxu0 0.0
    %1819 = vmatprep.subr.mxu0 0.0
    %1820 = vmatpush1.msra.mxu0 0.0
    %1821 = vmatprep.subr.mxu0 0.0
    %1822 = vmatpush1.msra.mxu0 0.0
    %1823 = vmatprep.subr.mxu0 0.0
    %1824 = vmatpush1.msra.mxu0 0.0
    %1825 = vmatprep.subr.mxu0 0.0
    %1826 = vmatpush1.msra.mxu0 0.0
    %1827 = vmatprep.subr.mxu0 0.0
    %1828 = vmatpush1.msra.mxu0 0.0
    %1829 = vmatprep.subr.mxu0 0.0
    %1830 = vmatpush1.msra.mxu0 0.0
    %1831 = vmatprep.subr.mxu0 0.0
    %1832 = vmatpush1.msra.mxu0 0.0
    %1833 = vmatprep.subr.mxu0 0.0
    %1834 = vmatpush1.msra.mxu0 0.0
    %1835 = vmatprep.subr.mxu0 0.0
    %1836 = vmatpush1.msra.mxu0 0.0
    %1837 = vmatprep.mubr.f32.mxu0 0.0
    %1838 = vmatmul.mubr.f32.gmra.mrb[0].mxu0 %v1513
    %v1839 = vpop.f32.mrb[0].mxu0
    %v1840 = vadd.f32 0.0, %v1839
    %v1841 = vpop.f32.mrb[0].mxu0
    %1842 = vdwg.mxu0
    %v1843 = vadd.f32 %v1699, %v1769
    %v1844 = vxor.u32 %v1843, 2147483648
    %v1845 = vmul.f32 %v1844, 1.442695
    %v1846 = vpow.pop %v1845
    %v1847 = vadd.f32 %v1846, 1.0
    %v1848 = vrcp.pop %v1847
    %v1849 = vmul.f32 1.0, %v1848
    %v1850 = vadd.f32 %v1700, %v1771
    %v1851 = vxor.u32 %v1850, 2147483648
    %v1852 = vmul.f32 %v1851, 1.442695
    %v1853 = vpow.pop %v1852
    %v1854 = vadd.f32 %v1853, 1.0
    %v1855 = vrcp.pop %v1854
    %v1856 = vmul.f32 1.0, %v1855
    %v1857 = vadd.f32 %v1840, %v610
    %v1858 = vmul.f32 %v1849, %v1857
    %v1859 = vadd.f32 %v1701, %v1858
    %v1860 = vtanh.pop %v1859
    %v1861 = vsub.f32 1.0, %v1856
    %v1862 = vmul.f32 %v1861, %v1860
    %v1863 = vmul.f32 %v1856, %v1513
    %v1864 = vadd.f32 %v1862, %v1863
    %vm1865 = vcmp.gt.s32.totalorder %v619, 3
    %v1866 = vsel %vm1865, 1, 0
    %1867 = vset.pattern.permute.xlu0 0
    %1868 = vperm.xlu0 %1867, %v1866
    %v1869 = vpop.permute.xlu0 %1868
    %vm1870 = vcmp.eq.s32.totalorder %v1869, 1
    %v1871 = vsel %vm1870, %v1864, %v1513
    %s1872 = scalar_lea.vmem [#allocation3], 24
    %v1873 = vld [vmem:[%s1872] sm:$0xff]
    %v1874 = vsel %vm1870, %v1864, 0.0
    %v1875 = vadd.f32 %v1873, %v1874
    %1876 = vst [vmem:[%s1872] sm:$0xff] %v1875
    %s1877 = scalar_lea.vmem [#allocation2], 192
    %v1878 = vld [vmem:[%s1877 + $0x18] sm:$0xff]
    %v1879 = vld [vmem:[%s1877 + $0x20] sm:$0xff]
    %v1880 = vld [vmem:[%s1877 + $0x28] sm:$0xff]
    %1881 = vmatprep.subr.mxu0 %v558
    %1882 = vmatpush1.msra.mxu0 %v557
    %1883 = vmatprep.subr.mxu0 %v561
    %1884 = vmatpush1.msra.mxu0 %v560
    %1885 = vmatprep.subr.mxu0 %v564
    %1886 = vmatpush1.msra.mxu0 %v563
    %1887 = vmatprep.subr.mxu0 %v567
    %1888 = vmatpush1.msra.mxu0 %v566
    %1889 = vmatprep.subr.mxu0 %v570
    %1890 = vmatpush1.msra.mxu0 %v569
    %1891 = vmatprep.subr.mxu0 %v573
    %1892 = vmatpush1.msra.mxu0 %v572
    %1893 = vmatprep.subr.mxu0 %v576
    %1894 = vmatpush1.msra.mxu0 %v575
    %1895 = vmatprep.subr.mxu0 %v579
    %1896 = vmatpush1.msra.mxu0 %v578
    %1897 = vmatprep.subr.mxu0 %v582
    %1898 = vmatpush1.msra.mxu0 %v581
    %1899 = vmatprep.subr.mxu0 %v585
    %1900 = vmatpush1.msra.mxu0 %v584
    %1901 = vmatprep.subr.mxu0 %v588
    %1902 = vmatpush1.msra.mxu0 %v587
    %1903 = vmatprep.subr.mxu0 %v591
    %1904 = vmatpush1.msra.mxu0 %v590
    %1905 = vmatprep.subr.mxu0 %v594
    %1906 = vmatpush1.msra.mxu0 %v593
    %1907 = vmatprep.subr.mxu0 %v597
    %1908 = vmatpush1.msra.mxu0 %v596
    %1909 = vmatprep.subr.mxu0 %v600
    %1910 = vmatpush1.msra.mxu0 %v599
    %1911 = vmatprep.subr.mxu0 %v603
    %1912 = vmatpush1.msra.mxu0 %v602
    %1913 = vmatprep.subr.mxu0 0.0
    %1914 = vmatpush1.msra.mxu0 0.0
    %1915 = vmatprep.subr.mxu0 0.0
    %1916 = vmatpush1.msra.mxu0 0.0
    %1917 = vmatprep.subr.mxu0 0.0
    %1918 = vmatpush1.msra.mxu0 0.0
    %1919 = vmatprep.subr.mxu0 0.0
    %1920 = vmatpush1.msra.mxu0 0.0
    %1921 = vmatprep.subr.mxu0 0.0
    %1922 = vmatpush1.msra.mxu0 0.0
    %1923 = vmatprep.subr.mxu0 0.0
    %1924 = vmatpush1.msra.mxu0 0.0
    %1925 = vmatprep.subr.mxu0 0.0
    %1926 = vmatpush1.msra.mxu0 0.0
    %1927 = vmatprep.subr.mxu0 0.0
    %1928 = vmatpush1.msra.mxu0 0.0
    %1929 = vmatprep.subr.mxu0 0.0
    %1930 = vmatpush1.msra.mxu0 0.0
    %1931 = vmatprep.subr.mxu0 0.0
    %1932 = vmatpush1.msra.mxu0 0.0
    %1933 = vmatprep.subr.mxu0 0.0
    %1934 = vmatpush1.msra.mxu0 0.0
    %1935 = vmatprep.subr.mxu0 0.0
    %1936 = vmatpush1.msra.mxu0 0.0
    %1937 = vmatprep.subr.mxu0 0.0
    %1938 = vmatpush1.msra.mxu0 0.0
    %1939 = vmatprep.subr.mxu0 0.0
    %1940 = vmatpush1.msra.mxu0 0.0
    %1941 = vmatprep.subr.mxu0 0.0
    %1942 = vmatpush1.msra.mxu0 0.0
    %1943 = vmatprep.subr.mxu0 0.0
    %1944 = vmatpush1.msra.mxu0 0.0
    %1945 = vmatprep.mubr.f32.mxu0 0.0
    %1946 = vmatmul.mubr.f32.gmra.mrb[0].mxu0 %v1692
    %v1947 = vpop.f32.mrb[0].mxu0
    %v1948 = vadd.f32 0.0, %v1947
    %v1949 = vpop.f32.mrb[0].mxu0
    %v1950 = vadd.f32 0.0, %v1949
    %1951 = vdwg.mxu0
    %1952 = vmatprep.subr.mxu0 0.0
    %1953 = vmatpush1.msra.mxu0 %v559
    %1954 = vmatprep.subr.mxu0 0.0
    %1955 = vmatpush1.msra.mxu0 %v562
    %1956 = vmatprep.subr.mxu0 0.0
    %1957 = vmatpush1.msra.mxu0 %v565
    %1958 = vmatprep.subr.mxu0 0.0
    %1959 = vmatpush1.msra.mxu0 %v568
    %1960 = vmatprep.subr.mxu0 0.0
    %1961 = vmatpush1.msra.mxu0 %v571
    %1962 = vmatprep.subr.mxu0 0.0
    %1963 = vmatpush1.msra.mxu0 %v574
    %1964 = vmatprep.subr.mxu0 0.0
    %1965 = vmatpush1.msra.mxu0 %v577
    %1966 = vmatprep.subr.mxu0 0.0
    %1967 = vmatpush1.msra.mxu0 %v580
    %1968 = vmatprep.subr.mxu0 0.0
    %1969 = vmatpush1.msra.mxu0 %v583
    %1970 = vmatprep.subr.mxu0 0.0
    %1971 = vmatpush1.msra.mxu0 %v586
    %1972 = vmatprep.subr.mxu0 0.0
    %1973 = vmatpush1.msra.mxu0 %v589
    %1974 = vmatprep.subr.mxu0 0.0
    %1975 = vmatpush1.msra.mxu0 %v592
    %1976 = vmatprep.subr.mxu0 0.0
    %1977 = vmatpush1.msra.mxu0 %v595
    %1978 = vmatprep.subr.mxu0 0.0
    %1979 = vmatpush1.msra.mxu0 %v598
    %1980 = vmatprep.subr.mxu0 0.0
    %1981 = vmatpush1.msra.mxu0 %v601
    %1982 = vmatprep.subr.mxu0 0.0
    %1983 = vmatpush1.msra.mxu0 %v604
    %1984 = vmatprep.subr.mxu0 0.0
    %1985 = vmatpush1.msra.mxu0 0.0
    %1986 = vmatprep.subr.mxu0 0.0
    %1987 = vmatpush1.msra.mxu0 0.0
    %1988 = vmatprep.subr.mxu0 0.0
    %1989 = vmatpush1.msra.mxu0 0.0
    %1990 = vmatprep.subr.mxu0 0.0
    %1991 = vmatpush1.msra.mxu0 0.0
    %1992 = vmatprep.subr.mxu0 0.0
    %1993 = vmatpush1.msra.mxu0 0.0
    %1994 = vmatprep.subr.mxu0 0.0
    %1995 = vmatpush1.msra.mxu0 0.0
    %1996 = vmatprep.subr.mxu0 0.0
    %1997 = vmatpush1.msra.mxu0 0.0
    %1998 = vmatprep.subr.mxu0 0.0
    %1999 = vmatpush1.msra.mxu0 0.0
    %2000 = vmatprep.subr.mxu0 0.0
    %2001 = vmatpush1.msra.mxu0 0.0
    %2002 = vmatprep.subr.mxu0 0.0
    %2003 = vmatpush1.msra.mxu0 0.0
    %2004 = vmatprep.subr.mxu0 0.0
    %2005 = vmatpush1.msra.mxu0 0.0
    %2006 = vmatprep.subr.mxu0 0.0
    %2007 = vmatpush1.msra.mxu0 0.0
    %2008 = vmatprep.subr.mxu0 0.0
    %2009 = vmatpush1.msra.mxu0 0.0
    %2010 = vmatprep.subr.mxu0 0.0
    %2011 = vmatpush1.msra.mxu0 0.0
    %2012 = vmatprep.subr.mxu0 0.0
    %2013 = vmatpush1.msra.mxu0 0.0
    %2014 = vmatprep.subr.mxu0 0.0
    %2015 = vmatpush1.msra.mxu0 0.0
    %2016 = vmatprep.mubr.f32.mxu0 0.0
    %2017 = vmatmul.mubr.f32.gmra.mrb[0].mxu0 %v1692
    %v2018 = vpop.f32.mrb[0].mxu0
    %v2019 = vadd.f32 0.0, %v2018
    %v2020 = vpop.f32.mrb[0].mxu0
    %2021 = vdwg.mxu0
    %v2022 = vadd.f32 %v1878, %v1948
    %v2023 = vxor.u32 %v2022, 2147483648
    %v2024 = vmul.f32 %v2023, 1.442695
    %v2025 = vpow.pop %v2024
    %v2026 = vadd.f32 %v2025, 1.0
    %v2027 = vrcp.pop %v2026
    %v2028 = vmul.f32 1.0, %v2027
    %v2029 = vadd.f32 %v1879, %v1950
    %v2030 = vxor.u32 %v2029, 2147483648
    %v2031 = vmul.f32 %v2030, 1.442695
    %v2032 = vpow.pop %v2031
    %v2033 = vadd.f32 %v2032, 1.0
    %v2034 = vrcp.pop %v2033
    %v2035 = vmul.f32 1.0, %v2034
    %v2036 = vadd.f32 %v2019, %v617
    %v2037 = vmul.f32 %v2028, %v2036
    %v2038 = vadd.f32 %v1880, %v2037
    %v2039 = vtanh.pop %v2038
    %v2040 = vsub.f32 1.0, %v2035
    %v2041 = vmul.f32 %v2040, %v2039
    %v2042 = vmul.f32 %v2035, %v1692
    %v2043 = vadd.f32 %v2041, %v2042
    %vm2044 = vcmp.gt.s32.totalorder %v619, 4
    %v2045 = vsel %vm2044, 1, 0
    %2046 = vset.pattern.permute.xlu0 0
    %2047 = vperm.xlu0 %2046, %v2045
    %v2048 = vpop.permute.xlu0 %2047
    %vm2049 = vcmp.eq.s32.totalorder %v2048, 1
    %v2050 = vsel %vm2049, %v2043, %v1692
    %s2051 = scalar_lea.vmem [#allocation3], 32
    %v2052 = vld [vmem:[%s2051] sm:$0xff]
    %v2053 = vsel %vm2049, %v2043, 0.0
    %v2054 = vadd.f32 %v2052, %v2053
    %2055 = vst [vmem:[%s2051] sm:$0xff] %v2054
    %v2056 = vld [vmem:[%s1877] sm:$0xff]
    %v2057 = vld [vmem:[%s1877 + $0x8] sm:$0xff]
    %v2058 = vld [vmem:[%s1877 + $0x10] sm:$0xff]
    %2059 = vmatprep.subr.mxu0 %v510
    %2060 = vmatpush1.msra.mxu0 %v509
    %2061 = vmatprep.subr.mxu0 %v513
    %2062 = vmatpush1.msra.mxu0 %v512
    %2063 = vmatprep.subr.mxu0 %v516
    %2064 = vmatpush1.msra.mxu0 %v515
    %2065 = vmatprep.subr.mxu0 %v519
    %2066 = vmatpush1.msra.mxu0 %v518
    %2067 = vmatprep.subr.mxu0 %v522
    %2068 = vmatpush1.msra.mxu0 %v521
    %2069 = vmatprep.subr.mxu0 %v525
    %2070 = vmatpush1.msra.mxu0 %v524
    %2071 = vmatprep.subr.mxu0 %v528
    %2072 = vmatpush1.msra.mxu0 %v527
    %2073 = vmatprep.subr.mxu0 %v531
    %2074 = vmatpush1.msra.mxu0 %v530
    %2075 = vmatprep.subr.mxu0 %v534
    %2076 = vmatpush1.msra.mxu0 %v533
    %2077 = vmatprep.subr.mxu0 %v537
    %2078 = vmatpush1.msra.mxu0 %v536
    %2079 = vmatprep.subr.mxu0 %v540
    %2080 = vmatpush1.msra.mxu0 %v539
    %2081 = vmatprep.subr.mxu0 %v543
    %2082 = vmatpush1.msra.mxu0 %v542
    %2083 = vmatprep.subr.mxu0 %v546
    %2084 = vmatpush1.msra.mxu0 %v545
    %2085 = vmatprep.subr.mxu0 %v549
    %2086 = vmatpush1.msra.mxu0 %v548
    %2087 = vmatprep.subr.mxu0 %v552
    %2088 = vmatpush1.msra.mxu0 %v551
    %2089 = vmatprep.subr.mxu0 %v555
    %2090 = vmatpush1.msra.mxu0 %v554
    %2091 = vmatprep.subr.mxu0 0.0
    %2092 = vmatpush1.msra.mxu0 0.0
    %2093 = vmatprep.subr.mxu0 0.0
    %2094 = vmatpush1.msra.mxu0 0.0
    %2095 = vmatprep.subr.mxu0 0.0
    %2096 = vmatpush1.msra.mxu0 0.0
    %2097 = vmatprep.subr.mxu0 0.0
    %2098 = vmatpush1.msra.mxu0 0.0
    %2099 = vmatprep.subr.mxu0 0.0
    %2100 = vmatpush1.msra.mxu0 0.0
    %2101 = vmatprep.subr.mxu0 0.0
    %2102 = vmatpush1.msra.mxu0 0.0
    %2103 = vmatprep.subr.mxu0 0.0
    %2104 = vmatpush1.msra.mxu0 0.0
    %2105 = vmatprep.subr.mxu0 0.0
    %2106 = vmatpush1.msra.mxu0 0.0
    %2107 = vmatprep.subr.mxu0 0.0
    %2108 = vmatpush1.msra.mxu0 0.0
    %2109 = vmatprep.subr.mxu0 0.0
    %2110 = vmatpush1.msra.mxu0 0.0
    %2111 = vmatprep.subr.mxu0 0.0
    %2112 = vmatpush1.msra.mxu0 0.0
    %2113 = vmatprep.subr.mxu0 0.0
    %2114 = vmatpush1.msra.mxu0 0.0
    %2115 = vmatprep.subr.mxu0 0.0
    %2116 = vmatpush1.msra.mxu0 0.0
    %2117 = vmatprep.subr.mxu0 0.0
    %2118 = vmatpush1.msra.mxu0 0.0
    %2119 = vmatprep.subr.mxu0 0.0
    %2120 = vmatpush1.msra.mxu0 0.0
    %2121 = vmatprep.subr.mxu0 0.0
    %2122 = vmatpush1.msra.mxu0 0.0
    %2123 = vmatprep.mubr.f32.mxu0 0.0
    %2124 = vmatmul.mubr.f32.gmra.mrb[0].mxu0 %v1871
    %v2125 = vpop.f32.mrb[0].mxu0
    %v2126 = vadd.f32 0.0, %v2125
    %v2127 = vpop.f32.mrb[0].mxu0
    %v2128 = vadd.f32 0.0, %v2127
    %2129 = vdwg.mxu0
    %2130 = vmatprep.subr.mxu0 0.0
    %2131 = vmatpush1.msra.mxu0 %v511
    %2132 = vmatprep.subr.mxu0 0.0
    %2133 = vmatpush1.msra.mxu0 %v514
    %2134 = vmatprep.subr.mxu0 0.0
    %2135 = vmatpush1.msra.mxu0 %v517
    %2136 = vmatprep.subr.mxu0 0.0
    %2137 = vmatpush1.msra.mxu0 %v520
    %2138 = vmatprep.subr.mxu0 0.0
    %2139 = vmatpush1.msra.mxu0 %v523
    %2140 = vmatprep.subr.mxu0 0.0
    %2141 = vmatpush1.msra.mxu0 %v526
    %2142 = vmatprep.subr.mxu0 0.0
    %2143 = vmatpush1.msra.mxu0 %v529
    %2144 = vmatprep.subr.mxu0 0.0
    %2145 = vmatpush1.msra.mxu0 %v532
    %2146 = vmatprep.subr.mxu0 0.0
    %2147 = vmatpush1.msra.mxu0 %v535
    %2148 = vmatprep.subr.mxu0 0.0
    %2149 = vmatpush1.msra.mxu0 %v538
    %2150 = vmatprep.subr.mxu0 0.0
    %2151 = vmatpush1.msra.mxu0 %v541
    %2152 = vmatprep.subr.mxu0 0.0
    %2153 = vmatpush1.msra.mxu0 %v544
    %2154 = vmatprep.subr.mxu0 0.0
    %2155 = vmatpush1.msra.mxu0 %v547
    %2156 = vmatprep.subr.mxu0 0.0
    %2157 = vmatpush1.msra.mxu0 %v550
    %2158 = vmatprep.subr.mxu0 0.0
    %2159 = vmatpush1.msra.mxu0 %v553
    %2160 = vmatprep.subr.mxu0 0.0
    %2161 = vmatpush1.msra.mxu0 %v556
    %2162 = vmatprep.subr.mxu0 0.0
    %2163 = vmatpush1.msra.mxu0 0.0
    %2164 = vmatprep.subr.mxu0 0.0
    %2165 = vmatpush1.msra.mxu0 0.0
    %2166 = vmatprep.subr.mxu0 0.0
    %2167 = vmatpush1.msra.mxu0 0.0
    %2168 = vmatprep.subr.mxu0 0.0
    %2169 = vmatpush1.msra.mxu0 0.0
    %2170 = vmatprep.subr.mxu0 0.0
    %2171 = vmatpush1.msra.mxu0 0.0
    %2172 = vmatprep.subr.mxu0 0.0
    %2173 = vmatpush1.msra.mxu0 0.0
    %2174 = vmatprep.subr.mxu0 0.0
    %2175 = vmatpush1.msra.mxu0 0.0
    %2176 = vmatprep.subr.mxu0 0.0
    %2177 = vmatpush1.msra.mxu0 0.0
    %2178 = vmatprep.subr.mxu0 0.0
    %2179 = vmatpush1.msra.mxu0 0.0
    %2180 = vmatprep.subr.mxu0 0.0
    %2181 = vmatpush1.msra.mxu0 0.0
    %2182 = vmatprep.subr.mxu0 0.0
    %2183 = vmatpush1.msra.mxu0 0.0
    %2184 = vmatprep.subr.mxu0 0.0
    %2185 = vmatpush1.msra.mxu0 0.0
    %2186 = vmatprep.subr.mxu0 0.0
    %2187 = vmatpush1.msra.mxu0 0.0
    %2188 = vmatprep.subr.mxu0 0.0
    %2189 = vmatpush1.msra.mxu0 0.0
    %2190 = vmatprep.subr.mxu0 0.0
    %2191 = vmatpush1.msra.mxu0 0.0
    %2192 = vmatprep.subr.mxu0 0.0
    %2193 = vmatpush1.msra.mxu0 0.0
    %2194 = vmatprep.mubr.f32.mxu0 0.0
    %2195 = vmatmul.mubr.f32.gmra.mrb[0].mxu0 %v1871
    %v2196 = vpop.f32.mrb[0].mxu0
    %v2197 = vadd.f32 0.0, %v2196
    %v2198 = vpop.f32.mrb[0].mxu0
    %2199 = vdwg.mxu0
    %v2200 = vadd.f32 %v2056, %v2126
    %v2201 = vxor.u32 %v2200, 2147483648
    %v2202 = vmul.f32 %v2201, 1.442695
    %v2203 = vpow.pop %v2202
    %v2204 = vadd.f32 %v2203, 1.0
    %v2205 = vrcp.pop %v2204
    %v2206 = vmul.f32 1.0, %v2205
    %v2207 = vadd.f32 %v2057, %v2128
    %v2208 = vxor.u32 %v2207, 2147483648
    %v2209 = vmul.f32 %v2208, 1.442695
    %v2210 = vpow.pop %v2209
    %v2211 = vadd.f32 %v2210, 1.0
    %v2212 = vrcp.pop %v2211
    %v2213 = vmul.f32 1.0, %v2212
    %v2214 = vadd.f32 %v2197, %v610
    %v2215 = vmul.f32 %v2206, %v2214
    %v2216 = vadd.f32 %v2058, %v2215
    %v2217 = vtanh.pop %v2216
    %v2218 = vsub.f32 1.0, %v2213
    %v2219 = vmul.f32 %v2218, %v2217
    %v2220 = vmul.f32 %v2213, %v1871
    %v2221 = vadd.f32 %v2219, %v2220
    %v2222 = vsel %vm2049, %v2221, %v1871
    %v2223 = vld [vmem:[%s2051] sm:$0xff]
    %v2224 = vsel %vm2049, %v2221, 0.0
    %v2225 = vadd.f32 %v2223, %v2224
    %2226 = vst [vmem:[%s2051] sm:$0xff] %v2225
    %v2227 = vld [vmem:[%s1698 + $0x18] sm:$0xff]
    %v2228 = vld [vmem:[%s1698 + $0x20] sm:$0xff]
    %v2229 = vld [vmem:[%s1698 + $0x28] sm:$0xff]
    %2230 = vmatprep.subr.mxu0 %v558
    %2231 = vmatpush1.msra.mxu0 %v557
    %2232 = vmatprep.subr.mxu0 %v561
    %2233 = vmatpush1.msra.mxu0 %v560
    %2234 = vmatprep.subr.mxu0 %v564
    %2235 = vmatpush1.msra.mxu0 %v563
    %2236 = vmatprep.subr.mxu0 %v567
    %2237 = vmatpush1.msra.mxu0 %v566
    %2238 = vmatprep.subr.mxu0 %v570
    %2239 = vmatpush1.msra.mxu0 %v569
    %2240 = vmatprep.subr.mxu0 %v573
    %2241 = vmatpush1.msra.mxu0 %v572
    %2242 = vmatprep.subr.mxu0 %v576
    %2243 = vmatpush1.msra.mxu0 %v575
    %2244 = vmatprep.subr.mxu0 %v579
    %2245 = vmatpush1.msra.mxu0 %v578
    %2246 = vmatprep.subr.mxu0 %v582
    %2247 = vmatpush1.msra.mxu0 %v581
    %2248 = vmatprep.subr.mxu0 %v585
    %2249 = vmatpush1.msra.mxu0 %v584
    %2250 = vmatprep.subr.mxu0 %v588
    %2251 = vmatpush1.msra.mxu0 %v587
    %2252 = vmatprep.subr.mxu0 %v591
    %2253 = vmatpush1.msra.mxu0 %v590
    %2254 = vmatprep.subr.mxu0 %v594
    %2255 = vmatpush1.msra.mxu0 %v593
    %2256 = vmatprep.subr.mxu0 %v597
    %2257 = vmatpush1.msra.mxu0 %v596
    %2258 = vmatprep.subr.mxu0 %v600
    %2259 = vmatpush1.msra.mxu0 %v599
    %2260 = vmatprep.subr.mxu0 %v603
    %2261 = vmatpush1.msra.mxu0 %v602
    %2262 = vmatprep.subr.mxu0 0.0
    %2263 = vmatpush1.msra.mxu0 0.0
    %2264 = vmatprep.subr.mxu0 0.0
    %2265 = vmatpush1.msra.mxu0 0.0
    %2266 = vmatprep.subr.mxu0 0.0
    %2267 = vmatpush1.msra.mxu0 0.0
    %2268 = vmatprep.subr.mxu0 0.0
    %2269 = vmatpush1.msra.mxu0 0.0
    %2270 = vmatprep.subr.mxu0 0.0
    %2271 = vmatpush1.msra.mxu0 0.0
    %2272 = vmatprep.subr.mxu0 0.0
    %2273 = vmatpush1.msra.mxu0 0.0
    %2274 = vmatprep.subr.mxu0 0.0
    %2275 = vmatpush1.msra.mxu0 0.0
    %2276 = vmatprep.subr.mxu0 0.0
    %2277 = vmatpush1.msra.mxu0 0.0
    %2278 = vmatprep.subr.mxu0 0.0
    %2279 = vmatpush1.msra.mxu0 0.0
    %2280 = vmatprep.subr.mxu0 0.0
    %2281 = vmatpush1.msra.mxu0 0.0
    %2282 = vmatprep.subr.mxu0 0.0
    %2283 = vmatpush1.msra.mxu0 0.0
    %2284 = vmatprep.subr.mxu0 0.0
    %2285 = vmatpush1.msra.mxu0 0.0
    %2286 = vmatprep.subr.mxu0 0.0
    %2287 = vmatpush1.msra.mxu0 0.0
    %2288 = vmatprep.subr.mxu0 0.0
    %2289 = vmatpush1.msra.mxu0 0.0
    %2290 = vmatprep.subr.mxu0 0.0
    %2291 = vmatpush1.msra.mxu0 0.0
    %2292 = vmatprep.subr.mxu0 0.0
    %2293 = vmatpush1.msra.mxu0 0.0
    %2294 = vmatprep.mubr.f32.mxu0 0.0
    %2295 = vmatmul.mubr.f32.gmra.mrb[0].mxu0 %v2050
    %v2296 = vpop.f32.mrb[0].mxu0
    %v2297 = vadd.f32 0.0, %v2296
    %v2298 = vpop.f32.mrb[0].mxu0
    %v2299 = vadd.f32 0.0, %v2298
    %2300 = vdwg.mxu0
    %2301 = vmatprep.subr.mxu0 0.0
    %2302 = vmatpush1.msra.mxu0 %v559
    %2303 = vmatprep.subr.mxu0 0.0
    %2304 = vmatpush1.msra.mxu0 %v562
    %2305 = vmatprep.subr.mxu0 0.0
    %2306 = vmatpush1.msra.mxu0 %v565
    %2307 = vmatprep.subr.mxu0 0.0
    %2308 = vmatpush1.msra.mxu0 %v568
    %2309 = vmatprep.subr.mxu0 0.0
    %2310 = vmatpush1.msra.mxu0 %v571
    %2311 = vmatprep.subr.mxu0 0.0
    %2312 = vmatpush1.msra.mxu0 %v574
    %2313 = vmatprep.subr.mxu0 0.0
    %2314 = vmatpush1.msra.mxu0 %v577
    %2315 = vmatprep.subr.mxu0 0.0
    %2316 = vmatpush1.msra.mxu0 %v580
    %2317 = vmatprep.subr.mxu0 0.0
    %2318 = vmatpush1.msra.mxu0 %v583
    %2319 = vmatprep.subr.mxu0 0.0
    %2320 = vmatpush1.msra.mxu0 %v586
    %2321 = vmatprep.subr.mxu0 0.0
    %2322 = vmatpush1.msra.mxu0 %v589
    %2323 = vmatprep.subr.mxu0 0.0
    %2324 = vmatpush1.msra.mxu0 %v592
    %2325 = vmatprep.subr.mxu0 0.0
    %2326 = vmatpush1.msra.mxu0 %v595
    %2327 = vmatprep.subr.mxu0 0.0
    %2328 = vmatpush1.msra.mxu0 %v598
    %2329 = vmatprep.subr.mxu0 0.0
    %2330 = vmatpush1.msra.mxu0 %v601
    %2331 = vmatprep.subr.mxu0 0.0
    %2332 = vmatpush1.msra.mxu0 %v604
    %2333 = vmatprep.subr.mxu0 0.0
    %2334 = vmatpush1.msra.mxu0 0.0
    %2335 = vmatprep.subr.mxu0 0.0
    %2336 = vmatpush1.msra.mxu0 0.0
    %2337 = vmatprep.subr.mxu0 0.0
    %2338 = vmatpush1.msra.mxu0 0.0
    %2339 = vmatprep.subr.mxu0 0.0
    %2340 = vmatpush1.msra.mxu0 0.0
    %2341 = vmatprep.subr.mxu0 0.0
    %2342 = vmatpush1.msra.mxu0 0.0
    %2343 = vmatprep.subr.mxu0 0.0
    %2344 = vmatpush1.msra.mxu0 0.0
    %2345 = vmatprep.subr.mxu0 0.0
    %2346 = vmatpush1.msra.mxu0 0.0
    %2347 = vmatprep.subr.mxu0 0.0
    %2348 = vmatpush1.msra.mxu0 0.0
    %2349 = vmatprep.subr.mxu0 0.0
    %2350 = vmatpush1.msra.mxu0 0.0
    %2351 = vmatprep.subr.mxu0 0.0
    %2352 = vmatpush1.msra.mxu0 0.0
    %2353 = vmatprep.subr.mxu0 0.0
    %2354 = vmatpush1.msra.mxu0 0.0
    %2355 = vmatprep.subr.mxu0 0.0
    %2356 = vmatpush1.msra.mxu0 0.0
    %2357 = vmatprep.subr.mxu0 0.0
    %2358 = vmatpush1.msra.mxu0 0.0
    %2359 = vmatprep.subr.mxu0 0.0
    %2360 = vmatpush1.msra.mxu0 0.0
    %2361 = vmatprep.subr.mxu0 0.0
    %2362 = vmatpush1.msra.mxu0 0.0
    %2363 = vmatprep.subr.mxu0 0.0
    %2364 = vmatpush1.msra.mxu0 0.0
    %2365 = vmatprep.mubr.f32.mxu0 0.0
    %2366 = vmatmul.mubr.f32.gmra.mrb[0].mxu0 %v2050
    %v2367 = vpop.f32.mrb[0].mxu0
    %v2368 = vadd.f32 0.0, %v2367
    %v2369 = vpop.f32.mrb[0].mxu0
    %2370 = vdwg.mxu0
    %v2371 = vadd.f32 %v2227, %v2297
    %v2372 = vxor.u32 %v2371, 2147483648
    %v2373 = vmul.f32 %v2372, 1.442695
    %v2374 = vpow.pop %v2373
    %v2375 = vadd.f32 %v2374, 1.0
    %v2376 = vrcp.pop %v2375
    %v2377 = vmul.f32 1.0, %v2376
    %v2378 = vadd.f32 %v2228, %v2299
    %v2379 = vxor.u32 %v2378, 2147483648
    %v2380 = vmul.f32 %v2379, 1.442695
    %v2381 = vpow.pop %v2380
    %v2382 = vadd.f32 %v2381, 1.0
    %v2383 = vrcp.pop %v2382
    %v2384 = vmul.f32 1.0, %v2383
    %v2385 = vadd.f32 %v2368, %v617
    %v2386 = vmul.f32 %v2377, %v2385
    %v2387 = vadd.f32 %v2229, %v2386
    %v2388 = vtanh.pop %v2387
    %v2389 = vsub.f32 1.0, %v2384
    %v2390 = vmul.f32 %v2389, %v2388
    %v2391 = vmul.f32 %v2384, %v2050
    %v2392 = vadd.f32 %v2390, %v2391
    %v2393 = vsel %vm1870, %v2392, %v2050
    %v2394 = vld [vmem:[%s1872] sm:$0xff]
    %v2395 = vsel %vm1870, %v2392, 0.0
    %v2396 = vadd.f32 %v2394, %v2395
    %2397 = vst [vmem:[%s1872] sm:$0xff] %v2396
    %v2398 = vld [vmem:[%s1519] sm:$0xff]
    %v2399 = vld [vmem:[%s1519 + $0x8] sm:$0xff]
    %v2400 = vld [vmem:[%s1519 + $0x10] sm:$0xff]
    %2401 = vmatprep.subr.mxu0 %v510
    %2402 = vmatpush1.msra.mxu0 %v509
    %2403 = vmatprep.subr.mxu0 %v513
    %2404 = vmatpush1.msra.mxu0 %v512
    %2405 = vmatprep.subr.mxu0 %v516
    %2406 = vmatpush1.msra.mxu0 %v515
    %2407 = vmatprep.subr.mxu0 %v519
    %2408 = vmatpush1.msra.mxu0 %v518
    %2409 = vmatprep.subr.mxu0 %v522
    %2410 = vmatpush1.msra.mxu0 %v521
    %2411 = vmatprep.subr.mxu0 %v525
    %2412 = vmatpush1.msra.mxu0 %v524
    %2413 = vmatprep.subr.mxu0 %v528
    %2414 = vmatpush1.msra.mxu0 %v527
    %2415 = vmatprep.subr.mxu0 %v531
    %2416 = vmatpush1.msra.mxu0 %v530
    %2417 = vmatprep.subr.mxu0 %v534
    %2418 = vmatpush1.msra.mxu0 %v533
    %2419 = vmatprep.subr.mxu0 %v537
    %2420 = vmatpush1.msra.mxu0 %v536
    %2421 = vmatprep.subr.mxu0 %v540
    %2422 = vmatpush1.msra.mxu0 %v539
    %2423 = vmatprep.subr.mxu0 %v543
    %2424 = vmatpush1.msra.mxu0 %v542
    %2425 = vmatprep.subr.mxu0 %v546
    %2426 = vmatpush1.msra.mxu0 %v545
    %2427 = vmatprep.subr.mxu0 %v549
    %2428 = vmatpush1.msra.mxu0 %v548
    %2429 = vmatprep.subr.mxu0 %v552
    %2430 = vmatpush1.msra.mxu0 %v551
    %2431 = vmatprep.subr.mxu0 %v555
    %2432 = vmatpush1.msra.mxu0 %v554
    %2433 = vmatprep.subr.mxu0 0.0
    %2434 = vmatpush1.msra.mxu0 0.0
    %2435 = vmatprep.subr.mxu0 0.0
    %2436 = vmatpush1.msra.mxu0 0.0
    %2437 = vmatprep.subr.mxu0 0.0
    %2438 = vmatpush1.msra.mxu0 0.0
    %2439 = vmatprep.subr.mxu0 0.0
    %2440 = vmatpush1.msra.mxu0 0.0
    %2441 = vmatprep.subr.mxu0 0.0
    %2442 = vmatpush1.msra.mxu0 0.0
    %2443 = vmatprep.subr.mxu0 0.0
    %2444 = vmatpush1.msra.mxu0 0.0
    %2445 = vmatprep.subr.mxu0 0.0
    %2446 = vmatpush1.msra.mxu0 0.0
    %2447 = vmatprep.subr.mxu0 0.0
    %2448 = vmatpush1.msra.mxu0 0.0
    %2449 = vmatprep.subr.mxu0 0.0
    %2450 = vmatpush1.msra.mxu0 0.0
    %2451 = vmatprep.subr.mxu0 0.0
    %2452 = vmatpush1.msra.mxu0 0.0
    %2453 = vmatprep.subr.mxu0 0.0
    %2454 = vmatpush1.msra.mxu0 0.0
    %2455 = vmatprep.subr.mxu0 0.0
    %2456 = vmatpush1.msra.mxu0 0.0
    %2457 = vmatprep.subr.mxu0 0.0
    %2458 = vmatpush1.msra.mxu0 0.0
    %2459 = vmatprep.subr.mxu0 0.0
    %2460 = vmatpush1.msra.mxu0 0.0
    %2461 = vmatprep.subr.mxu0 0.0
    %2462 = vmatpush1.msra.mxu0 0.0
    %2463 = vmatprep.subr.mxu0 0.0
    %2464 = vmatpush1.msra.mxu0 0.0
    %2465 = vmatprep.mubr.f32.mxu0 0.0
    %2466 = vmatmul.mubr.f32.gmra.mrb[0].mxu0 %v2222
    %v2467 = vpop.f32.mrb[0].mxu0
    %v2468 = vadd.f32 0.0, %v2467
    %v2469 = vpop.f32.mrb[0].mxu0
    %v2470 = vadd.f32 0.0, %v2469
    %2471 = vdwg.mxu0
    %2472 = vmatprep.subr.mxu0 0.0
    %2473 = vmatpush1.msra.mxu0 %v511
    %2474 = vmatprep.subr.mxu0 0.0
    %2475 = vmatpush1.msra.mxu0 %v514
    %2476 = vmatprep.subr.mxu0 0.0
    %2477 = vmatpush1.msra.mxu0 %v517
    %2478 = vmatprep.subr.mxu0 0.0
    %2479 = vmatpush1.msra.mxu0 %v520
    %2480 = vmatprep.subr.mxu0 0.0
    %2481 = vmatpush1.msra.mxu0 %v523
    %2482 = vmatprep.subr.mxu0 0.0
    %2483 = vmatpush1.msra.mxu0 %v526
    %2484 = vmatprep.subr.mxu0 0.0
    %2485 = vmatpush1.msra.mxu0 %v529
    %2486 = vmatprep.subr.mxu0 0.0
    %2487 = vmatpush1.msra.mxu0 %v532
    %2488 = vmatprep.subr.mxu0 0.0
    %2489 = vmatpush1.msra.mxu0 %v535
    %2490 = vmatprep.subr.mxu0 0.0
    %2491 = vmatpush1.msra.mxu0 %v538
    %2492 = vmatprep.subr.mxu0 0.0
    %2493 = vmatpush1.msra.mxu0 %v541
    %2494 = vmatprep.subr.mxu0 0.0
    %2495 = vmatpush1.msra.mxu0 %v544
    %2496 = vmatprep.subr.mxu0 0.0
    %2497 = vmatpush1.msra.mxu0 %v547
    %2498 = vmatprep.subr.mxu0 0.0
    %2499 = vmatpush1.msra.mxu0 %v550
    %2500 = vmatprep.subr.mxu0 0.0
    %2501 = vmatpush1.msra.mxu0 %v553
    %2502 = vmatprep.subr.mxu0 0.0
    %2503 = vmatpush1.msra.mxu0 %v556
    %2504 = vmatprep.subr.mxu0 0.0
    %2505 = vmatpush1.msra.mxu0 0.0
    %2506 = vmatprep.subr.mxu0 0.0
    %2507 = vmatpush1.msra.mxu0 0.0
    %2508 = vmatprep.subr.mxu0 0.0
    %2509 = vmatpush1.msra.mxu0 0.0
    %2510 = vmatprep.subr.mxu0 0.0
    %2511 = vmatpush1.msra.mxu0 0.0
    %2512 = vmatprep.subr.mxu0 0.0
    %2513 = vmatpush1.msra.mxu0 0.0
    %2514 = vmatprep.subr.mxu0 0.0
    %2515 = vmatpush1.msra.mxu0 0.0
    %2516 = vmatprep.subr.mxu0 0.0
    %2517 = vmatpush1.msra.mxu0 0.0
    %2518 = vmatprep.subr.mxu0 0.0
    %2519 = vmatpush1.msra.mxu0 0.0
    %2520 = vmatprep.subr.mxu0 0.0
    %2521 = vmatpush1.msra.mxu0 0.0
    %2522 = vmatprep.subr.mxu0 0.0
    %2523 = vmatpush1.msra.mxu0 0.0
    %2524 = vmatprep.subr.mxu0 0.0
    %2525 = vmatpush1.msra.mxu0 0.0
    %2526 = vmatprep.subr.mxu0 0.0
    %2527 = vmatpush1.msra.mxu0 0.0
    %2528 = vmatprep.subr.mxu0 0.0
    %2529 = vmatpush1.msra.mxu0 0.0
    %2530 = vmatprep.subr.mxu0 0.0
    %2531 = vmatpush1.msra.mxu0 0.0
    %2532 = vmatprep.subr.mxu0 0.0
    %2533 = vmatpush1.msra.mxu0 0.0
    %2534 = vmatprep.subr.mxu0 0.0
    %2535 = vmatpush1.msra.mxu0 0.0
    %2536 = vmatprep.mubr.f32.mxu0 0.0
    %2537 = vmatmul.mubr.f32.gmra.mrb[0].mxu0 %v2222
    %v2538 = vpop.f32.mrb[0].mxu0
    %v2539 = vadd.f32 0.0, %v2538
    %v2540 = vpop.f32.mrb[0].mxu0
    %2541 = vdwg.mxu0
    %v2542 = vadd.f32 %v2398, %v2468
    %v2543 = vxor.u32 %v2542, 2147483648
    %v2544 = vmul.f32 %v2543, 1.442695
    %v2545 = vpow.pop %v2544
    %v2546 = vadd.f32 %v2545, 1.0
    %v2547 = vrcp.pop %v2546
    %v2548 = vmul.f32 1.0, %v2547
    %v2549 = vadd.f32 %v2399, %v2470
    %v2550 = vxor.u32 %v2549, 2147483648
    %v2551 = vmul.f32 %v2550, 1.442695
    %v2552 = vpow.pop %v2551
    %v2553 = vadd.f32 %v2552, 1.0
    %v2554 = vrcp.pop %v2553
    %v2555 = vmul.f32 1.0, %v2554
    %v2556 = vadd.f32 %v2539, %v610
    %v2557 = vmul.f32 %v2548, %v2556
    %v2558 = vadd.f32 %v2400, %v2557
    %v2559 = vtanh.pop %v2558
    %v2560 = vsub.f32 1.0, %v2555
    %v2561 = vmul.f32 %v2560, %v2559
    %v2562 = vmul.f32 %v2555, %v2222
    %v2563 = vadd.f32 %v2561, %v2562
    %v2564 = vsel %vm1691, %v2563, %v2222
    %v2565 = vld [vmem:[%s1693] sm:$0xff]
    %v2566 = vsel %vm1691, %v2563, 0.0
    %v2567 = vadd.f32 %v2565, %v2566
    %2568 = vst [vmem:[%s1693] sm:$0xff] %v2567
    %v2569 = vld [vmem:[%s1340 + $0x18] sm:$0xff]
    %v2570 = vld [vmem:[%s1340 + $0x20] sm:$0xff]
    %v2571 = vld [vmem:[%s1340 + $0x28] sm:$0xff]
    %2572 = vmatprep.subr.mxu0 %v558
    %2573 = vmatpush1.msra.mxu0 %v557
    %2574 = vmatprep.subr.mxu0 %v561
    %2575 = vmatpush1.msra.mxu0 %v560
    %2576 = vmatprep.subr.mxu0 %v564
    %2577 = vmatpush1.msra.mxu0 %v563
    %2578 = vmatprep.subr.mxu0 %v567
    %2579 = vmatpush1.msra.mxu0 %v566
    %2580 = vmatprep.subr.mxu0 %v570
    %2581 = vmatpush1.msra.mxu0 %v569
    %2582 = vmatprep.subr.mxu0 %v573
    %2583 = vmatpush1.msra.mxu0 %v572
    %2584 = vmatprep.subr.mxu0 %v576
    %2585 = vmatpush1.msra.mxu0 %v575
    %2586 = vmatprep.subr.mxu0 %v579
    %2587 = vmatpush1.msra.mxu0 %v578
    %2588 = vmatprep.subr.mxu0 %v582
    %2589 = vmatpush1.msra.mxu0 %v581
    %2590 = vmatprep.subr.mxu0 %v585
    %2591 = vmatpush1.msra.mxu0 %v584
    %2592 = vmatprep.subr.mxu0 %v588
    %2593 = vmatpush1.msra.mxu0 %v587
    %2594 = vmatprep.subr.mxu0 %v591
    %2595 = vmatpush1.msra.mxu0 %v590
    %2596 = vmatprep.subr.mxu0 %v594
    %2597 = vmatpush1.msra.mxu0 %v593
    %2598 = vmatprep.subr.mxu0 %v597
    %2599 = vmatpush1.msra.mxu0 %v596
    %2600 = vmatprep.subr.mxu0 %v600
    %2601 = vmatpush1.msra.mxu0 %v599
    %2602 = vmatprep.subr.mxu0 %v603
    %2603 = vmatpush1.msra.mxu0 %v602
    %2604 = vmatprep.subr.mxu0 0.0
    %2605 = vmatpush1.msra.mxu0 0.0
    %2606 = vmatprep.subr.mxu0 0.0
    %2607 = vmatpush1.msra.mxu0 0.0
    %2608 = vmatprep.subr.mxu0 0.0
    %2609 = vmatpush1.msra.mxu0 0.0
    %2610 = vmatprep.subr.mxu0 0.0
    %2611 = vmatpush1.msra.mxu0 0.0
    %2612 = vmatprep.subr.mxu0 0.0
    %2613 = vmatpush1.msra.mxu0 0.0
    %2614 = vmatprep.subr.mxu0 0.0
    %2615 = vmatpush1.msra.mxu0 0.0
    %2616 = vmatprep.subr.mxu0 0.0
    %2617 = vmatpush1.msra.mxu0 0.0
    %2618 = vmatprep.subr.mxu0 0.0
    %2619 = vmatpush1.msra.mxu0 0.0
    %2620 = vmatprep.subr.mxu0 0.0
    %2621 = vmatpush1.msra.mxu0 0.0
    %2622 = vmatprep.subr.mxu0 0.0
    %2623 = vmatpush1.msra.mxu0 0.0
    %2624 = vmatprep.subr.mxu0 0.0
    %2625 = vmatpush1.msra.mxu0 0.0
    %2626 = vmatprep.subr.mxu0 0.0
    %2627 = vmatpush1.msra.mxu0 0.0
    %2628 = vmatprep.subr.mxu0 0.0
    %2629 = vmatpush1.msra.mxu0 0.0
    %2630 = vmatprep.subr.mxu0 0.0
    %2631 = vmatpush1.msra.mxu0 0.0
    %2632 = vmatprep.subr.mxu0 0.0
    %2633 = vmatpush1.msra.mxu0 0.0
    %2634 = vmatprep.subr.mxu0 0.0
    %2635 = vmatpush1.msra.mxu0 0.0
    %2636 = vmatprep.mubr.f32.mxu0 0.0
    %2637 = vmatmul.mubr.f32.gmra.mrb[0].mxu0 %v2393
    %v2638 = vpop.f32.mrb[0].mxu0
    %v2639 = vadd.f32 0.0, %v2638
    %v2640 = vpop.f32.mrb[0].mxu0
    %v2641 = vadd.f32 0.0, %v2640
    %2642 = vdwg.mxu0
    %2643 = vmatprep.subr.mxu0 0.0
    %2644 = vmatpush1.msra.mxu0 %v559
    %2645 = vmatprep.subr.mxu0 0.0
    %2646 = vmatpush1.msra.mxu0 %v562
    %2647 = vmatprep.subr.mxu0 0.0
    %2648 = vmatpush1.msra.mxu0 %v565
    %2649 = vmatprep.subr.mxu0 0.0
    %2650 = vmatpush1.msra.mxu0 %v568
    %2651 = vmatprep.subr.mxu0 0.0
    %2652 = vmatpush1.msra.mxu0 %v571
    %2653 = vmatprep.subr.mxu0 0.0
    %2654 = vmatpush1.msra.mxu0 %v574
    %2655 = vmatprep.subr.mxu0 0.0
    %2656 = vmatpush1.msra.mxu0 %v577
    %2657 = vmatprep.subr.mxu0 0.0
    %2658 = vmatpush1.msra.mxu0 %v580
    %2659 = vmatprep.subr.mxu0 0.0
    %2660 = vmatpush1.msra.mxu0 %v583
    %2661 = vmatprep.subr.mxu0 0.0
    %2662 = vmatpush1.msra.mxu0 %v586
    %2663 = vmatprep.subr.mxu0 0.0
    %2664 = vmatpush1.msra.mxu0 %v589
    %2665 = vmatprep.subr.mxu0 0.0
    %2666 = vmatpush1.msra.mxu0 %v592
    %2667 = vmatprep.subr.mxu0 0.0
    %2668 = vmatpush1.msra.mxu0 %v595
    %2669 = vmatprep.subr.mxu0 0.0
    %2670 = vmatpush1.msra.mxu0 %v598
    %2671 = vmatprep.subr.mxu0 0.0
    %2672 = vmatpush1.msra.mxu0 %v601
    %2673 = vmatprep.subr.mxu0 0.0
    %2674 = vmatpush1.msra.mxu0 %v604
    %2675 = vmatprep.subr.mxu0 0.0
    %2676 = vmatpush1.msra.mxu0 0.0
    %2677 = vmatprep.subr.mxu0 0.0
    %2678 = vmatpush1.msra.mxu0 0.0
    %2679 = vmatprep.subr.mxu0 0.0
    %2680 = vmatpush1.msra.mxu0 0.0
    %2681 = vmatprep.subr.mxu0 0.0
    %2682 = vmatpush1.msra.mxu0 0.0
    %2683 = vmatprep.subr.mxu0 0.0
    %2684 = vmatpush1.msra.mxu0 0.0
    %2685 = vmatprep.subr.mxu0 0.0
    %2686 = vmatpush1.msra.mxu0 0.0
    %2687 = vmatprep.subr.mxu0 0.0
    %2688 = vmatpush1.msra.mxu0 0.0
    %2689 = vmatprep.subr.mxu0 0.0
    %2690 = vmatpush1.msra.mxu0 0.0
    %2691 = vmatprep.subr.mxu0 0.0
    %2692 = vmatpush1.msra.mxu0 0.0
    %2693 = vmatprep.subr.mxu0 0.0
    %2694 = vmatpush1.msra.mxu0 0.0
    %2695 = vmatprep.subr.mxu0 0.0
    %2696 = vmatpush1.msra.mxu0 0.0
    %2697 = vmatprep.subr.mxu0 0.0
    %2698 = vmatpush1.msra.mxu0 0.0
    %2699 = vmatprep.subr.mxu0 0.0
    %2700 = vmatpush1.msra.mxu0 0.0
    %2701 = vmatprep.subr.mxu0 0.0
    %2702 = vmatpush1.msra.mxu0 0.0
    %2703 = vmatprep.subr.mxu0 0.0
    %2704 = vmatpush1.msra.mxu0 0.0
    %2705 = vmatprep.subr.mxu0 0.0
    %2706 = vmatpush1.msra.mxu0 0.0
    %2707 = vmatprep.mubr.f32.mxu0 0.0
    %2708 = vmatmul.mubr.f32.gmra.mrb[0].mxu0 %v2393
    %v2709 = vpop.f32.mrb[0].mxu0
    %v2710 = vadd.f32 0.0, %v2709
    %v2711 = vpop.f32.mrb[0].mxu0
    %2712 = vdwg.mxu0
    %v2713 = vadd.f32 %v2569, %v2639
    %v2714 = vxor.u32 %v2713, 2147483648
    %v2715 = vmul.f32 %v2714, 1.442695
    %v2716 = vpow.pop %v2715
    %v2717 = vadd.f32 %v2716, 1.0
    %v2718 = vrcp.pop %v2717
    %v2719 = vmul.f32 1.0, %v2718
    %v2720 = vadd.f32 %v2570, %v2641
    %v2721 = vxor.u32 %v2720, 2147483648
    %v2722 = vmul.f32 %v2721, 1.442695
    %v2723 = vpow.pop %v2722
    %v2724 = vadd.f32 %v2723, 1.0
    %v2725 = vrcp.pop %v2724
    %v2726 = vmul.f32 1.0, %v2725
    %v2727 = vadd.f32 %v2710, %v617
    %v2728 = vmul.f32 %v2719, %v2727
    %v2729 = vadd.f32 %v2571, %v2728
    %v2730 = vtanh.pop %v2729
    %v2731 = vsub.f32 1.0, %v2726
    %v2732 = vmul.f32 %v2731, %v2730
    %v2733 = vmul.f32 %v2726, %v2393
    %v2734 = vadd.f32 %v2732, %v2733
    %v2735 = vsel %vm1512, %v2734, %v2393
    %v2736 = vld [vmem:[%s1514] sm:$0xff]
    %v2737 = vsel %vm1512, %v2734, 0.0
    %v2738 = vadd.f32 %v2736, %v2737
    %2739 = vst [vmem:[%s1514] sm:$0xff] %v2738
    %v2740 = vld [vmem:[%s1161] sm:$0xff]
    %v2741 = vld [vmem:[%s1161 + $0x8] sm:$0xff]
    %v2742 = vld [vmem:[%s1161 + $0x10] sm:$0xff]
    %2743 = vmatprep.subr.mxu0 %v510
    %2744 = vmatpush1.msra.mxu0 %v509
    %2745 = vmatprep.subr.mxu0 %v513
    %2746 = vmatpush1.msra.mxu0 %v512
    %2747 = vmatprep.subr.mxu0 %v516
    %2748 = vmatpush1.msra.mxu0 %v515
    %2749 = vmatprep.subr.mxu0 %v519
    %2750 = vmatpush1.msra.mxu0 %v518
    %2751 = vmatprep.subr.mxu0 %v522
    %2752 = vmatpush1.msra.mxu0 %v521
    %2753 = vmatprep.subr.mxu0 %v525
    %2754 = vmatpush1.msra.mxu0 %v524
    %2755 = vmatprep.subr.mxu0 %v528
    %2756 = vmatpush1.msra.mxu0 %v527
    %2757 = vmatprep.subr.mxu0 %v531
    %2758 = vmatpush1.msra.mxu0 %v530
    %2759 = vmatprep.subr.mxu0 %v534
    %2760 = vmatpush1.msra.mxu0 %v533
    %2761 = vmatprep.subr.mxu0 %v537
    %2762 = vmatpush1.msra.mxu0 %v536
    %2763 = vmatprep.subr.mxu0 %v540
    %2764 = vmatpush1.msra.mxu0 %v539
    %2765 = vmatprep.subr.mxu0 %v543
    %2766 = vmatpush1.msra.mxu0 %v542
    %2767 = vmatprep.subr.mxu0 %v546
    %2768 = vmatpush1.msra.mxu0 %v545
    %2769 = vmatprep.subr.mxu0 %v549
    %2770 = vmatpush1.msra.mxu0 %v548
    %2771 = vmatprep.subr.mxu0 %v552
    %2772 = vmatpush1.msra.mxu0 %v551
    %2773 = vmatprep.subr.mxu0 %v555
    %2774 = vmatpush1.msra.mxu0 %v554
    %2775 = vmatprep.subr.mxu0 0.0
    %2776 = vmatpush1.msra.mxu0 0.0
    %2777 = vmatprep.subr.mxu0 0.0
    %2778 = vmatpush1.msra.mxu0 0.0
    %2779 = vmatprep.subr.mxu0 0.0
    %2780 = vmatpush1.msra.mxu0 0.0
    %2781 = vmatprep.subr.mxu0 0.0
    %2782 = vmatpush1.msra.mxu0 0.0
    %2783 = vmatprep.subr.mxu0 0.0
    %2784 = vmatpush1.msra.mxu0 0.0
    %2785 = vmatprep.subr.mxu0 0.0
    %2786 = vmatpush1.msra.mxu0 0.0
    %2787 = vmatprep.subr.mxu0 0.0
    %2788 = vmatpush1.msra.mxu0 0.0
    %2789 = vmatprep.subr.mxu0 0.0
    %2790 = vmatpush1.msra.mxu0 0.0
    %2791 = vmatprep.subr.mxu0 0.0
    %2792 = vmatpush1.msra.mxu0 0.0
    %2793 = vmatprep.subr.mxu0 0.0
    %2794 = vmatpush1.msra.mxu0 0.0
    %2795 = vmatprep.subr.mxu0 0.0
    %2796 = vmatpush1.msra.mxu0 0.0
    %2797 = vmatprep.subr.mxu0 0.0
    %2798 = vmatpush1.msra.mxu0 0.0
    %2799 = vmatprep.subr.mxu0 0.0
    %2800 = vmatpush1.msra.mxu0 0.0
    %2801 = vmatprep.subr.mxu0 0.0
    %2802 = vmatpush1.msra.mxu0 0.0
    %2803 = vmatprep.subr.mxu0 0.0
    %2804 = vmatpush1.msra.mxu0 0.0
    %2805 = vmatprep.subr.mxu0 0.0
    %2806 = vmatpush1.msra.mxu0 0.0
    %2807 = vmatprep.mubr.f32.mxu0 0.0
    %2808 = vmatmul.mubr.f32.gmra.mrb[0].mxu0 %v2564
    %v2809 = vpop.f32.mrb[0].mxu0
    %v2810 = vadd.f32 0.0, %v2809
    %v2811 = vpop.f32.mrb[0].mxu0
    %v2812 = vadd.f32 0.0, %v2811
    %2813 = vdwg.mxu0
    %2814 = vmatprep.subr.mxu0 0.0
    %2815 = vmatpush1.msra.mxu0 %v511
    %2816 = vmatprep.subr.mxu0 0.0
    %2817 = vmatpush1.msra.mxu0 %v514
    %2818 = vmatprep.subr.mxu0 0.0
    %2819 = vmatpush1.msra.mxu0 %v517
    %2820 = vmatprep.subr.mxu0 0.0
    %2821 = vmatpush1.msra.mxu0 %v520
    %2822 = vmatprep.subr.mxu0 0.0
    %2823 = vmatpush1.msra.mxu0 %v523
    %2824 = vmatprep.subr.mxu0 0.0
    %2825 = vmatpush1.msra.mxu0 %v526
    %2826 = vmatprep.subr.mxu0 0.0
    %2827 = vmatpush1.msra.mxu0 %v529
    %2828 = vmatprep.subr.mxu0 0.0
    %2829 = vmatpush1.msra.mxu0 %v532
    %2830 = vmatprep.subr.mxu0 0.0
    %2831 = vmatpush1.msra.mxu0 %v535
    %2832 = vmatprep.subr.mxu0 0.0
    %2833 = vmatpush1.msra.mxu0 %v538
    %2834 = vmatprep.subr.mxu0 0.0
    %2835 = vmatpush1.msra.mxu0 %v541
    %2836 = vmatprep.subr.mxu0 0.0
    %2837 = vmatpush1.msra.mxu0 %v544
    %2838 = vmatprep.subr.mxu0 0.0
    %2839 = vmatpush1.msra.mxu0 %v547
    %2840 = vmatprep.subr.mxu0 0.0
    %2841 = vmatpush1.msra.mxu0 %v550
    %2842 = vmatprep.subr.mxu0 0.0
    %2843 = vmatpush1.msra.mxu0 %v553
    %2844 = vmatprep.subr.mxu0 0.0
    %2845 = vmatpush1.msra.mxu0 %v556
    %2846 = vmatprep.subr.mxu0 0.0
    %2847 = vmatpush1.msra.mxu0 0.0
    %2848 = vmatprep.subr.mxu0 0.0
    %2849 = vmatpush1.msra.mxu0 0.0
    %2850 = vmatprep.subr.mxu0 0.0
    %2851 = vmatpush1.msra.mxu0 0.0
    %2852 = vmatprep.subr.mxu0 0.0
    %2853 = vmatpush1.msra.mxu0 0.0
    %2854 = vmatprep.subr.mxu0 0.0
    %2855 = vmatpush1.msra.mxu0 0.0
    %2856 = vmatprep.subr.mxu0 0.0
    %2857 = vmatpush1.msra.mxu0 0.0
    %2858 = vmatprep.subr.mxu0 0.0
    %2859 = vmatpush1.msra.mxu0 0.0
    %2860 = vmatprep.subr.mxu0 0.0
    %2861 = vmatpush1.msra.mxu0 0.0
    %2862 = vmatprep.subr.mxu0 0.0
    %2863 = vmatpush1.msra.mxu0 0.0
    %2864 = vmatprep.subr.mxu0 0.0
    %2865 = vmatpush1.msra.mxu0 0.0
    %2866 = vmatprep.subr.mxu0 0.0
    %2867 = vmatpush1.msra.mxu0 0.0
    %2868 = vmatprep.subr.mxu0 0.0
    %2869 = vmatpush1.msra.mxu0 0.0
    %2870 = vmatprep.subr.mxu0 0.0
    %2871 = vmatpush1.msra.mxu0 0.0
    %2872 = vmatprep.subr.mxu0 0.0
    %2873 = vmatpush1.msra.mxu0 0.0
    %2874 = vmatprep.subr.mxu0 0.0
    %2875 = vmatpush1.msra.mxu0 0.0
    %2876 = vmatprep.subr.mxu0 0.0
    %2877 = vmatpush1.msra.mxu0 0.0
    %2878 = vmatprep.mubr.f32.mxu0 0.0
    %2879 = vmatmul.mubr.f32.gmra.mrb[0].mxu0 %v2564
    %v2880 = vpop.f32.mrb[0].mxu0
    %v2881 = vadd.f32 0.0, %v2880
    %v2882 = vpop.f32.mrb[0].mxu0
    %2883 = vdwg.mxu0
    %v2884 = vadd.f32 %v2740, %v2810
    %v2885 = vxor.u32 %v2884, 2147483648
    %v2886 = vmul.f32 %v2885, 1.442695
    %v2887 = vpow.pop %v2886
    %v2888 = vadd.f32 %v2887, 1.0
    %v2889 = vrcp.pop %v2888
    %v2890 = vmul.f32 1.0, %v2889
    %v2891 = vadd.f32 %v2741, %v2812
    %v2892 = vxor.u32 %v2891, 2147483648
    %v2893 = vmul.f32 %v2892, 1.442695
    %v2894 = vpow.pop %v2893
    %v2895 = vadd.f32 %v2894, 1.0
    %v2896 = vrcp.pop %v2895
    %v2897 = vmul.f32 1.0, %v2896
    %v2898 = vadd.f32 %v2881, %v610
    %v2899 = vmul.f32 %v2890, %v2898
    %v2900 = vadd.f32 %v2742, %v2899
    %v2901 = vtanh.pop %v2900
    %v2902 = vsub.f32 1.0, %v2897
    %v2903 = vmul.f32 %v2902, %v2901
    %v2904 = vmul.f32 %v2897, %v2564
    %v2905 = vadd.f32 %v2903, %v2904
    %v2906 = vsel %vm1333, %v2905, %v2564
    %v2907 = vld [vmem:[%s1335] sm:$0xff]
    %v2908 = vsel %vm1333, %v2905, 0.0
    %v2909 = vadd.f32 %v2907, %v2908
    %2910 = vst [vmem:[%s1335] sm:$0xff] %v2909
    %v2911 = vld [vmem:[%s982 + $0x18] sm:$0xff]
    %v2912 = vld [vmem:[%s982 + $0x20] sm:$0xff]
    %v2913 = vld [vmem:[%s982 + $0x28] sm:$0xff]
    %2914 = vmatprep.subr.mxu0 %v558
    %2915 = vmatpush1.msra.mxu0 %v557
    %2916 = vmatprep.subr.mxu0 %v561
    %2917 = vmatpush1.msra.mxu0 %v560
    %2918 = vmatprep.subr.mxu0 %v564
    %2919 = vmatpush1.msra.mxu0 %v563
    %2920 = vmatprep.subr.mxu0 %v567
    %2921 = vmatpush1.msra.mxu0 %v566
    %2922 = vmatprep.subr.mxu0 %v570
    %2923 = vmatpush1.msra.mxu0 %v569
    %2924 = vmatprep.subr.mxu0 %v573
    %2925 = vmatpush1.msra.mxu0 %v572
    %2926 = vmatprep.subr.mxu0 %v576
    %2927 = vmatpush1.msra.mxu0 %v575
    %2928 = vmatprep.subr.mxu0 %v579
    %2929 = vmatpush1.msra.mxu0 %v578
    %2930 = vmatprep.subr.mxu0 %v582
    %2931 = vmatpush1.msra.mxu0 %v581
    %2932 = vmatprep.subr.mxu0 %v585
    %2933 = vmatpush1.msra.mxu0 %v584
    %2934 = vmatprep.subr.mxu0 %v588
    %2935 = vmatpush1.msra.mxu0 %v587
    %2936 = vmatprep.subr.mxu0 %v591
    %2937 = vmatpush1.msra.mxu0 %v590
    %2938 = vmatprep.subr.mxu0 %v594
    %2939 = vmatpush1.msra.mxu0 %v593
    %2940 = vmatprep.subr.mxu0 %v597
    %2941 = vmatpush1.msra.mxu0 %v596
    %2942 = vmatprep.subr.mxu0 %v600
    %2943 = vmatpush1.msra.mxu0 %v599
    %2944 = vmatprep.subr.mxu0 %v603
    %2945 = vmatpush1.msra.mxu0 %v602
    %2946 = vmatprep.subr.mxu0 0.0
    %2947 = vmatpush1.msra.mxu0 0.0
    %2948 = vmatprep.subr.mxu0 0.0
    %2949 = vmatpush1.msra.mxu0 0.0
    %2950 = vmatprep.subr.mxu0 0.0
    %2951 = vmatpush1.msra.mxu0 0.0
    %2952 = vmatprep.subr.mxu0 0.0
    %2953 = vmatpush1.msra.mxu0 0.0
    %2954 = vmatprep.subr.mxu0 0.0
    %2955 = vmatpush1.msra.mxu0 0.0
    %2956 = vmatprep.subr.mxu0 0.0
    %2957 = vmatpush1.msra.mxu0 0.0
    %2958 = vmatprep.subr.mxu0 0.0
    %2959 = vmatpush1.msra.mxu0 0.0
    %2960 = vmatprep.subr.mxu0 0.0
    %2961 = vmatpush1.msra.mxu0 0.0
    %2962 = vmatprep.subr.mxu0 0.0
    %2963 = vmatpush1.msra.mxu0 0.0
    %2964 = vmatprep.subr.mxu0 0.0
    %2965 = vmatpush1.msra.mxu0 0.0
    %2966 = vmatprep.subr.mxu0 0.0
    %2967 = vmatpush1.msra.mxu0 0.0
    %2968 = vmatprep.subr.mxu0 0.0
    %2969 = vmatpush1.msra.mxu0 0.0
    %2970 = vmatprep.subr.mxu0 0.0
    %2971 = vmatpush1.msra.mxu0 0.0
    %2972 = vmatprep.subr.mxu0 0.0
    %2973 = vmatpush1.msra.mxu0 0.0
    %2974 = vmatprep.subr.mxu0 0.0
    %2975 = vmatpush1.msra.mxu0 0.0
    %2976 = vmatprep.subr.mxu0 0.0
    %2977 = vmatpush1.msra.mxu0 0.0
    %2978 = vmatprep.mubr.f32.mxu0 0.0
    %2979 = vmatmul.mubr.f32.gmra.mrb[0].mxu0 %v2735
    %v2980 = vpop.f32.mrb[0].mxu0
    %v2981 = vadd.f32 0.0, %v2980
    %v2982 = vpop.f32.mrb[0].mxu0
    %v2983 = vadd.f32 0.0, %v2982
    %2984 = vdwg.mxu0
    %2985 = vmatprep.subr.mxu0 0.0
    %2986 = vmatpush1.msra.mxu0 %v559
    %2987 = vmatprep.subr.mxu0 0.0
    %2988 = vmatpush1.msra.mxu0 %v562
    %2989 = vmatprep.subr.mxu0 0.0
    %2990 = vmatpush1.msra.mxu0 %v565
    %2991 = vmatprep.subr.mxu0 0.0
    %2992 = vmatpush1.msra.mxu0 %v568
    %2993 = vmatprep.subr.mxu0 0.0
    %2994 = vmatpush1.msra.mxu0 %v571
    %2995 = vmatprep.subr.mxu0 0.0
    %2996 = vmatpush1.msra.mxu0 %v574
    %2997 = vmatprep.subr.mxu0 0.0
    %2998 = vmatpush1.msra.mxu0 %v577
    %2999 = vmatprep.subr.mxu0 0.0
    %3000 = vmatpush1.msra.mxu0 %v580
    %3001 = vmatprep.subr.mxu0 0.0
    %3002 = vmatpush1.msra.mxu0 %v583
    %3003 = vmatprep.subr.mxu0 0.0
    %3004 = vmatpush1.msra.mxu0 %v586
    %3005 = vmatprep.subr.mxu0 0.0
    %3006 = vmatpush1.msra.mxu0 %v589
    %3007 = vmatprep.subr.mxu0 0.0
    %3008 = vmatpush1.msra.mxu0 %v592
    %3009 = vmatprep.subr.mxu0 0.0
    %3010 = vmatpush1.msra.mxu0 %v595
    %3011 = vmatprep.subr.mxu0 0.0
    %3012 = vmatpush1.msra.mxu0 %v598
    %3013 = vmatprep.subr.mxu0 0.0
    %3014 = vmatpush1.msra.mxu0 %v601
    %3015 = vmatprep.subr.mxu0 0.0
    %3016 = vmatpush1.msra.mxu0 %v604
    %3017 = vmatprep.subr.mxu0 0.0
    %3018 = vmatpush1.msra.mxu0 0.0
    %3019 = vmatprep.subr.mxu0 0.0
    %3020 = vmatpush1.msra.mxu0 0.0
    %3021 = vmatprep.subr.mxu0 0.0
    %3022 = vmatpush1.msra.mxu0 0.0
    %3023 = vmatprep.subr.mxu0 0.0
    %3024 = vmatpush1.msra.mxu0 0.0
    %3025 = vmatprep.subr.mxu0 0.0
    %3026 = vmatpush1.msra.mxu0 0.0
    %3027 = vmatprep.subr.mxu0 0.0
    %3028 = vmatpush1.msra.mxu0 0.0
    %3029 = vmatprep.subr.mxu0 0.0
    %3030 = vmatpush1.msra.mxu0 0.0
    %3031 = vmatprep.subr.mxu0 0.0
    %3032 = vmatpush1.msra.mxu0 0.0
    %3033 = vmatprep.subr.mxu0 0.0
    %3034 = vmatpush1.msra.mxu0 0.0
    %3035 = vmatprep.subr.mxu0 0.0
    %3036 = vmatpush1.msra.mxu0 0.0
    %3037 = vmatprep.subr.mxu0 0.0
    %3038 = vmatpush1.msra.mxu0 0.0
    %3039 = vmatprep.subr.mxu0 0.0
    %3040 = vmatpush1.msra.mxu0 0.0
    %3041 = vmatprep.subr.mxu0 0.0
    %3042 = vmatpush1.msra.mxu0 0.0
    %3043 = vmatprep.subr.mxu0 0.0
    %3044 = vmatpush1.msra.mxu0 0.0
    %3045 = vmatprep.subr.mxu0 0.0
    %3046 = vmatpush1.msra.mxu0 0.0
    %3047 = vmatprep.subr.mxu0 0.0
    %3048 = vmatpush1.msra.mxu0 0.0
    %3049 = vmatprep.mubr.f32.mxu0 0.0
    %3050 = vmatmul.mubr.f32.gmra.mrb[0].mxu0 %v2735
    %v3051 = vpop.f32.mrb[0].mxu0
    %v3052 = vadd.f32 0.0, %v3051
    %v3053 = vpop.f32.mrb[0].mxu0
    %3054 = vdwg.mxu0
    %v3055 = vadd.f32 %v2911, %v2981
    %v3056 = vxor.u32 %v3055, 2147483648
    %v3057 = vmul.f32 %v3056, 1.442695
    %v3058 = vpow.pop %v3057
    %v3059 = vadd.f32 %v3058, 1.0
    %v3060 = vrcp.pop %v3059
    %v3061 = vmul.f32 1.0, %v3060
    %v3062 = vadd.f32 %v2912, %v2983
    %v3063 = vxor.u32 %v3062, 2147483648
    %v3064 = vmul.f32 %v3063, 1.442695
    %v3065 = vpow.pop %v3064
    %v3066 = vadd.f32 %v3065, 1.0
    %v3067 = vrcp.pop %v3066
    %v3068 = vmul.f32 1.0, %v3067
    %v3069 = vadd.f32 %v3052, %v617
    %v3070 = vmul.f32 %v3061, %v3069
    %v3071 = vadd.f32 %v2913, %v3070
    %v3072 = vtanh.pop %v3071
    %v3073 = vsub.f32 1.0, %v3068
    %v3074 = vmul.f32 %v3073, %v3072
    %v3075 = vmul.f32 %v3068, %v2735
    %v3076 = vadd.f32 %v3074, %v3075
    %v3077 = vsel %vm1154, %v3076, %v2735
    %v3078 = vld [vmem:[%s1156] sm:$0xff]
    %v3079 = vsel %vm1154, %v3076, 0.0
    %v3080 = vadd.f32 %v3078, %v3079
    %3081 = vst [vmem:[%s1156] sm:$0xff] %v3080
    %v3082 = vld [vmem:[%s804] sm:$0xff]
    %v3083 = vld [vmem:[%s804 + $0x8] sm:$0xff]
    %v3084 = vld [vmem:[%s804 + $0x10] sm:$0xff]
    %3085 = vmatprep.subr.mxu0 %v510
    %3086 = vmatpush1.msra.mxu0 %v509
    %3087 = vmatprep.subr.mxu0 %v513
    %3088 = vmatpush1.msra.mxu0 %v512
    %3089 = vmatprep.subr.mxu0 %v516
    %3090 = vmatpush1.msra.mxu0 %v515
    %3091 = vmatprep.subr.mxu0 %v519
    %3092 = vmatpush1.msra.mxu0 %v518
    %3093 = vmatprep.subr.mxu0 %v522
    %3094 = vmatpush1.msra.mxu0 %v521
    %3095 = vmatprep.subr.mxu0 %v525
    %3096 = vmatpush1.msra.mxu0 %v524
    %3097 = vmatprep.subr.mxu0 %v528
    %3098 = vmatpush1.msra.mxu0 %v527
    %3099 = vmatprep.subr.mxu0 %v531
    %3100 = vmatpush1.msra.mxu0 %v530
    %3101 = vmatprep.subr.mxu0 %v534
    %3102 = vmatpush1.msra.mxu0 %v533
    %3103 = vmatprep.subr.mxu0 %v537
    %3104 = vmatpush1.msra.mxu0 %v536
    %3105 = vmatprep.subr.mxu0 %v540
    %3106 = vmatpush1.msra.mxu0 %v539
    %3107 = vmatprep.subr.mxu0 %v543
    %3108 = vmatpush1.msra.mxu0 %v542
    %3109 = vmatprep.subr.mxu0 %v546
    %3110 = vmatpush1.msra.mxu0 %v545
    %3111 = vmatprep.subr.mxu0 %v549
    %3112 = vmatpush1.msra.mxu0 %v548
    %3113 = vmatprep.subr.mxu0 %v552
    %3114 = vmatpush1.msra.mxu0 %v551
    %3115 = vmatprep.subr.mxu0 %v555
    %3116 = vmatpush1.msra.mxu0 %v554
    %3117 = vmatprep.subr.mxu0 0.0
    %3118 = vmatpush1.msra.mxu0 0.0
    %3119 = vmatprep.subr.mxu0 0.0
    %3120 = vmatpush1.msra.mxu0 0.0
    %3121 = vmatprep.subr.mxu0 0.0
    %3122 = vmatpush1.msra.mxu0 0.0
    %3123 = vmatprep.subr.mxu0 0.0
    %3124 = vmatpush1.msra.mxu0 0.0
    %3125 = vmatprep.subr.mxu0 0.0
    %3126 = vmatpush1.msra.mxu0 0.0
    %3127 = vmatprep.subr.mxu0 0.0
    %3128 = vmatpush1.msra.mxu0 0.0
    %3129 = vmatprep.subr.mxu0 0.0
    %3130 = vmatpush1.msra.mxu0 0.0
    %3131 = vmatprep.subr.mxu0 0.0
    %3132 = vmatpush1.msra.mxu0 0.0
    %3133 = vmatprep.subr.mxu0 0.0
    %3134 = vmatpush1.msra.mxu0 0.0
    %3135 = vmatprep.subr.mxu0 0.0
    %3136 = vmatpush1.msra.mxu0 0.0
    %3137 = vmatprep.subr.mxu0 0.0
    %3138 = vmatpush1.msra.mxu0 0.0
    %3139 = vmatprep.subr.mxu0 0.0
    %3140 = vmatpush1.msra.mxu0 0.0
    %3141 = vmatprep.subr.mxu0 0.0
    %3142 = vmatpush1.msra.mxu0 0.0
    %3143 = vmatprep.subr.mxu0 0.0
    %3144 = vmatpush1.msra.mxu0 0.0
    %3145 = vmatprep.subr.mxu0 0.0
    %3146 = vmatpush1.msra.mxu0 0.0
    %3147 = vmatprep.subr.mxu0 0.0
    %3148 = vmatpush1.msra.mxu0 0.0
    %3149 = vmatprep.mubr.f32.mxu0 0.0
    %3150 = vmatmul.mubr.f32.gmra.mrb[0].mxu0 %v2906
    %v3151 = vpop.f32.mrb[0].mxu0
    %v3152 = vadd.f32 0.0, %v3151
    %v3153 = vpop.f32.mrb[0].mxu0
    %v3154 = vadd.f32 0.0, %v3153
    %3155 = vdwg.mxu0
    %3156 = vmatprep.subr.mxu0 0.0
    %3157 = vmatpush1.msra.mxu0 %v511
    %3158 = vmatprep.subr.mxu0 0.0
    %3159 = vmatpush1.msra.mxu0 %v514
    %3160 = vmatprep.subr.mxu0 0.0
    %3161 = vmatpush1.msra.mxu0 %v517
    %3162 = vmatprep.subr.mxu0 0.0
    %3163 = vmatpush1.msra.mxu0 %v520
    %3164 = vmatprep.subr.mxu0 0.0
    %3165 = vmatpush1.msra.mxu0 %v523
    %3166 = vmatprep.subr.mxu0 0.0
    %3167 = vmatpush1.msra.mxu0 %v526
    %3168 = vmatprep.subr.mxu0 0.0
    %3169 = vmatpush1.msra.mxu0 %v529
    %3170 = vmatprep.subr.mxu0 0.0
    %3171 = vmatpush1.msra.mxu0 %v532
    %3172 = vmatprep.subr.mxu0 0.0
    %3173 = vmatpush1.msra.mxu0 %v535
    %3174 = vmatprep.subr.mxu0 0.0
    %3175 = vmatpush1.msra.mxu0 %v538
    %3176 = vmatprep.subr.mxu0 0.0
    %3177 = vmatpush1.msra.mxu0 %v541
    %3178 = vmatprep.subr.mxu0 0.0
    %3179 = vmatpush1.msra.mxu0 %v544
    %3180 = vmatprep.subr.mxu0 0.0
    %3181 = vmatpush1.msra.mxu0 %v547
    %3182 = vmatprep.subr.mxu0 0.0
    %3183 = vmatpush1.msra.mxu0 %v550
    %3184 = vmatprep.subr.mxu0 0.0
    %3185 = vmatpush1.msra.mxu0 %v553
    %3186 = vmatprep.subr.mxu0 0.0
    %3187 = vmatpush1.msra.mxu0 %v556
    %3188 = vmatprep.subr.mxu0 0.0
    %3189 = vmatpush1.msra.mxu0 0.0
    %3190 = vmatprep.subr.mxu0 0.0
    %3191 = vmatpush1.msra.mxu0 0.0
    %3192 = vmatprep.subr.mxu0 0.0
    %3193 = vmatpush1.msra.mxu0 0.0
    %3194 = vmatprep.subr.mxu0 0.0
    %3195 = vmatpush1.msra.mxu0 0.0
    %3196 = vmatprep.subr.mxu0 0.0
    %3197 = vmatpush1.msra.mxu0 0.0
    %3198 = vmatprep.subr.mxu0 0.0
    %3199 = vmatpush1.msra.mxu0 0.0
    %3200 = vmatprep.subr.mxu0 0.0
    %3201 = vmatpush1.msra.mxu0 0.0
    %3202 = vmatprep.subr.mxu0 0.0
    %3203 = vmatpush1.msra.mxu0 0.0
    %3204 = vmatprep.subr.mxu0 0.0
    %3205 = vmatpush1.msra.mxu0 0.0
    %3206 = vmatprep.subr.mxu0 0.0
    %3207 = vmatpush1.msra.mxu0 0.0
    %3208 = vmatprep.subr.mxu0 0.0
    %3209 = vmatpush1.msra.mxu0 0.0
    %3210 = vmatprep.subr.mxu0 0.0
    %3211 = vmatpush1.msra.mxu0 0.0
    %3212 = vmatprep.subr.mxu0 0.0
    %3213 = vmatpush1.msra.mxu0 0.0
    %3214 = vmatprep.subr.mxu0 0.0
    %3215 = vmatpush1.msra.mxu0 0.0
    %3216 = vmatprep.subr.mxu0 0.0
    %3217 = vmatpush1.msra.mxu0 0.0
    %3218 = vmatprep.subr.mxu0 0.0
    %3219 = vmatpush1.msra.mxu0 0.0
    %3220 = vmatprep.mubr.f32.mxu0 0.0
    %3221 = vmatmul.mubr.f32.gmra.mrb[0].mxu0 %v2906
    %v3222 = vpop.f32.mrb[0].mxu0
    %v3223 = vadd.f32 0.0, %v3222
    %v3224 = vpop.f32.mrb[0].mxu0
    %3225 = vdwg.mxu0
    %v3226 = vadd.f32 %v3082, %v3152
    %v3227 = vxor.u32 %v3226, 2147483648
    %v3228 = vmul.f32 %v3227, 1.442695
    %v3229 = vpow.pop %v3228
    %v3230 = vadd.f32 %v3229, 1.0
    %v3231 = vrcp.pop %v3230
    %v3232 = vmul.f32 1.0, %v3231
    %v3233 = vadd.f32 %v3083, %v3154
    %v3234 = vxor.u32 %v3233, 2147483648
    %v3235 = vmul.f32 %v3234, 1.442695
    %v3236 = vpow.pop %v3235
    %v3237 = vadd.f32 %v3236, 1.0
    %v3238 = vrcp.pop %v3237
    %v3239 = vmul.f32 1.0, %v3238
    %v3240 = vadd.f32 %v3223, %v610
    %v3241 = vmul.f32 %v3232, %v3240
    %v3242 = vadd.f32 %v3084, %v3241
    %v3243 = vtanh.pop %v3242
    %v3244 = vsub.f32 1.0, %v3239
    %v3245 = vmul.f32 %v3244, %v3243
    %v3246 = vmul.f32 %v3239, %v2906
    %v3247 = vadd.f32 %v3245, %v3246
    %v3248 = vsel %vm976, %v3247, %v2906
    %v3249 = vld [vmem:[%s978] sm:$0xff]
    %v3250 = vsel %vm976, %v3247, 0.0
    %v3251 = vadd.f32 %v3249, %v3250
    %3252 = vst [vmem:[%s978] sm:$0xff] %v3251
    %v3253 = vld [vmem:[#allocation2 + $0x18] sm:$0xff]
    %v3254 = vld [vmem:[#allocation2 + $0x20] sm:$0xff]
    %v3255 = vld [vmem:[#allocation2 + $0x28] sm:$0xff]
    %3256 = vmatprep.subr.mxu0 %v558
    %3257 = vmatpush1.msra.mxu0 %v557
    %3258 = vmatprep.subr.mxu0 %v561
    %3259 = vmatpush1.msra.mxu0 %v560
    %3260 = vmatprep.subr.mxu0 %v564
    %3261 = vmatpush1.msra.mxu0 %v563
    %3262 = vmatprep.subr.mxu0 %v567
    %3263 = vmatpush1.msra.mxu0 %v566
    %3264 = vmatprep.subr.mxu0 %v570
    %3265 = vmatpush1.msra.mxu0 %v569
    %3266 = vmatprep.subr.mxu0 %v573
    %3267 = vmatpush1.msra.mxu0 %v572
    %3268 = vmatprep.subr.mxu0 %v576
    %3269 = vmatpush1.msra.mxu0 %v575
    %3270 = vmatprep.subr.mxu0 %v579
    %3271 = vmatpush1.msra.mxu0 %v578
    %3272 = vmatprep.subr.mxu0 %v582
    %3273 = vmatpush1.msra.mxu0 %v581
    %3274 = vmatprep.subr.mxu0 %v585
    %3275 = vmatpush1.msra.mxu0 %v584
    %3276 = vmatprep.subr.mxu0 %v588
    %3277 = vmatpush1.msra.mxu0 %v587
    %3278 = vmatprep.subr.mxu0 %v591
    %3279 = vmatpush1.msra.mxu0 %v590
    %3280 = vmatprep.subr.mxu0 %v594
    %3281 = vmatpush1.msra.mxu0 %v593
    %3282 = vmatprep.subr.mxu0 %v597
    %3283 = vmatpush1.msra.mxu0 %v596
    %3284 = vmatprep.subr.mxu0 %v600
    %3285 = vmatpush1.msra.mxu0 %v599
    %3286 = vmatprep.subr.mxu0 %v603
    %3287 = vmatpush1.msra.mxu0 %v602
    %3288 = vmatprep.subr.mxu0 0.0
    %3289 = vmatpush1.msra.mxu0 0.0
    %3290 = vmatprep.subr.mxu0 0.0
    %3291 = vmatpush1.msra.mxu0 0.0
    %3292 = vmatprep.subr.mxu0 0.0
    %3293 = vmatpush1.msra.mxu0 0.0
    %3294 = vmatprep.subr.mxu0 0.0
    %3295 = vmatpush1.msra.mxu0 0.0
    %3296 = vmatprep.subr.mxu0 0.0
    %3297 = vmatpush1.msra.mxu0 0.0
    %3298 = vmatprep.subr.mxu0 0.0
    %3299 = vmatpush1.msra.mxu0 0.0
    %3300 = vmatprep.subr.mxu0 0.0
    %3301 = vmatpush1.msra.mxu0 0.0
    %3302 = vmatprep.subr.mxu0 0.0
    %3303 = vmatpush1.msra.mxu0 0.0
    %3304 = vmatprep.subr.mxu0 0.0
    %3305 = vmatpush1.msra.mxu0 0.0
    %3306 = vmatprep.subr.mxu0 0.0
    %3307 = vmatpush1.msra.mxu0 0.0
    %3308 = vmatprep.subr.mxu0 0.0
    %3309 = vmatpush1.msra.mxu0 0.0
    %3310 = vmatprep.subr.mxu0 0.0
    %3311 = vmatpush1.msra.mxu0 0.0
    %3312 = vmatprep.subr.mxu0 0.0
    %3313 = vmatpush1.msra.mxu0 0.0
    %3314 = vmatprep.subr.mxu0 0.0
    %3315 = vmatpush1.msra.mxu0 0.0
    %3316 = vmatprep.subr.mxu0 0.0
    %3317 = vmatpush1.msra.mxu0 0.0
    %3318 = vmatprep.subr.mxu0 0.0
    %3319 = vmatpush1.msra.mxu0 0.0
    %3320 = vmatprep.mubr.f32.mxu0 0.0
    %3321 = vmatmul.mubr.f32.gmra.mrb[0].mxu0 %v3077
    %v3322 = vpop.f32.mrb[0].mxu0
    %v3323 = vadd.f32 0.0, %v3322
    %v3324 = vpop.f32.mrb[0].mxu0
    %v3325 = vadd.f32 0.0, %v3324
    %3326 = vdwg.mxu0
    %3327 = vmatprep.subr.mxu0 0.0
    %3328 = vmatpush1.msra.mxu0 %v559
    %3329 = vmatprep.subr.mxu0 0.0
    %3330 = vmatpush1.msra.mxu0 %v562
    %3331 = vmatprep.subr.mxu0 0.0
    %3332 = vmatpush1.msra.mxu0 %v565
    %3333 = vmatprep.subr.mxu0 0.0
    %3334 = vmatpush1.msra.mxu0 %v568
    %3335 = vmatprep.subr.mxu0 0.0
    %3336 = vmatpush1.msra.mxu0 %v571
    %3337 = vmatprep.subr.mxu0 0.0
    %3338 = vmatpush1.msra.mxu0 %v574
    %3339 = vmatprep.subr.mxu0 0.0
    %3340 = vmatpush1.msra.mxu0 %v577
    %3341 = vmatprep.subr.mxu0 0.0
    %3342 = vmatpush1.msra.mxu0 %v580
    %3343 = vmatprep.subr.mxu0 0.0
    %3344 = vmatpush1.msra.mxu0 %v583
    %3345 = vmatprep.subr.mxu0 0.0
    %3346 = vmatpush1.msra.mxu0 %v586
    %3347 = vmatprep.subr.mxu0 0.0
    %3348 = vmatpush1.msra.mxu0 %v589
    %3349 = vmatprep.subr.mxu0 0.0
    %3350 = vmatpush1.msra.mxu0 %v592
    %3351 = vmatprep.subr.mxu0 0.0
    %3352 = vmatpush1.msra.mxu0 %v595
    %3353 = vmatprep.subr.mxu0 0.0
    %3354 = vmatpush1.msra.mxu0 %v598
    %3355 = vmatprep.subr.mxu0 0.0
    %3356 = vmatpush1.msra.mxu0 %v601
    %3357 = vmatprep.subr.mxu0 0.0
    %3358 = vmatpush1.msra.mxu0 %v604
    %3359 = vmatprep.subr.mxu0 0.0
    %3360 = vmatpush1.msra.mxu0 0.0
    %3361 = vmatprep.subr.mxu0 0.0
    %3362 = vmatpush1.msra.mxu0 0.0
    %3363 = vmatprep.subr.mxu0 0.0
    %3364 = vmatpush1.msra.mxu0 0.0
    %3365 = vmatprep.subr.mxu0 0.0
    %3366 = vmatpush1.msra.mxu0 0.0
    %3367 = vmatprep.subr.mxu0 0.0
    %3368 = vmatpush1.msra.mxu0 0.0
    %3369 = vmatprep.subr.mxu0 0.0
    %3370 = vmatpush1.msra.mxu0 0.0
    %3371 = vmatprep.subr.mxu0 0.0
    %3372 = vmatpush1.msra.mxu0 0.0
    %3373 = vmatprep.subr.mxu0 0.0
    %3374 = vmatpush1.msra.mxu0 0.0
    %3375 = vmatprep.subr.mxu0 0.0
    %3376 = vmatpush1.msra.mxu0 0.0
    %3377 = vmatprep.subr.mxu0 0.0
    %3378 = vmatpush1.msra.mxu0 0.0
    %3379 = vmatprep.subr.mxu0 0.0
    %3380 = vmatpush1.msra.mxu0 0.0
    %3381 = vmatprep.subr.mxu0 0.0
    %3382 = vmatpush1.msra.mxu0 0.0
    %3383 = vmatprep.subr.mxu0 0.0
    %3384 = vmatpush1.msra.mxu0 0.0
    %3385 = vmatprep.subr.mxu0 0.0
    %3386 = vmatpush1.msra.mxu0 0.0
    %3387 = vmatprep.subr.mxu0 0.0
    %3388 = vmatpush1.msra.mxu0 0.0
    %3389 = vmatprep.subr.mxu0 0.0
    %3390 = vmatpush1.msra.mxu0 0.0
    %3391 = vmatprep.mubr.f32.mxu0 0.0
    %3392 = vmatmul.mubr.f32.gmra.mrb[0].mxu0 %v3077
    %v3393 = vpop.f32.mrb[0].mxu0
    %v3394 = vadd.f32 0.0, %v3393
    %v3395 = vpop.f32.mrb[0].mxu0
    %3396 = vdwg.mxu0
    %v3397 = vadd.f32 %v3253, %v3323
    %v3398 = vxor.u32 %v3397, 2147483648
    %v3399 = vmul.f32 %v3398, 1.442695
    %v3400 = vpow.pop %v3399
    %v3401 = vadd.f32 %v3400, 1.0
    %v3402 = vrcp.pop %v3401
    %v3403 = vmul.f32 1.0, %v3402
    %v3404 = vadd.f32 %v3254, %v3325
    %v3405 = vxor.u32 %v3404, 2147483648
    %v3406 = vmul.f32 %v3405, 1.442695
    %v3407 = vpow.pop %v3406
    %v3408 = vadd.f32 %v3407, 1.0
    %v3409 = vrcp.pop %v3408
    %v3410 = vmul.f32 1.0, %v3409
    %v3411 = vadd.f32 %v3394, %v617
    %v3412 = vmul.f32 %v3403, %v3411
    %v3413 = vadd.f32 %v3255, %v3412
    %v3414 = vtanh.pop %v3413
    %v3415 = vsub.f32 1.0, %v3410
    %v3416 = vmul.f32 %v3415, %v3414
    %v3417 = vmul.f32 %v3410, %v3077
    %v3418 = vadd.f32 %v3416, %v3417
    %v3419 = vsel %vm799, %v3418, %v3077
    %v3420 = vld [vmem:[#allocation3] sm:$0xff]
    %v3421 = vsel %vm799, %v3418, 0.0
    %v3422 = vadd.f32 %v3420, %v3421
    %3423 = vst [vmem:[#allocation3] sm:$0xff] %v3422
    %3424 = vst [vmem:[#allocation5] sm:$0xff] %v3248
    %s3425 = scalar_lea.vmem [#allocation5], 8
    %3426 = vst [vmem:[%s3425] sm:$0xff] %v3419
    // Predicated region
    $region34: #{encoder_forward.1} parent=1 // pred_check
      _
    $region35: #{encoder_forward.1} parent=1 // pred_check_branch
      %3428 = sbr.rel (0) target = $region37
    $region36: #{encoder_forward.1} parent=1 // pred_region
      %s3430 = ssub.s32 1024, 1024
      %3431 = vsyncadd [#allocation4], %s3430
      %s3432 = sshll.u32 [#allocation3], 4
      %s3433 = int_to_ptr.vmem [resolvable:$true] %s3432
      %3438 = dma.vmem_to_hbm [thread:$0]  %s3433, 1024, %s8, [#allocation4], 128, 128, 8
    $region37: #{encoder_forward.1} parent=1 // pred_fallthru
      _
    // Predicated region
    $region38: #{encoder_forward.1} parent=1 // pred_check
      _
    $region39: #{encoder_forward.1} parent=1 // pred_check_branch
      %3440 = sbr.rel (0) target = $region41
    $region40: #{encoder_forward.1} parent=1 // pred_region
      %s3442 = ssub.s32 256, 256
      %3443 = vsyncadd [#allocation6], %s3442
      %s3444 = sshll.u32 [#allocation5], 4
      %s3445 = int_to_ptr.vmem [resolvable:$true] %s3444
      %3450 = dma.vmem_to_hbm [thread:$0]  %s3445, 256, %s9, [#allocation6], 128, 128, 8
    $region41: #{encoder_forward.1} parent=1 // pred_fallthru
      _
    // Predicated region
    $region42: #{encoder_forward.1} parent=1 // pred_check
      _
    $region43: #{encoder_forward.1} parent=1 // pred_check_branch
      %3452 = sbr.rel (0) target = $region45
    $region44: #{encoder_forward.1} parent=1 // pred_region
      %3453 = dma.done [#allocation4], 1024
    $region45: #{encoder_forward.1} parent=1 // pred_fallthru
      _
    // Predicated region
    $region46: #{encoder_forward.1} parent=1 // pred_check
      _
    $region47: #{encoder_forward.1} parent=1 // pred_check_branch
      %3455 = sbr.rel (0) target = $region49
    $region48: #{encoder_forward.1} parent=1 // pred_region
      %3456 = dma.done [#allocation6], 256
    $region49: #{encoder_forward.1} parent=1 // pred_fallthru
      _
    %3457 = vsyncpa [#allocation4], 1
    %3458 = vsyncpa [#allocation6], 1

</llo_original>
